<compile_context>
chip_gen: v5e
topology: v5e:2x2
jax: 0.10.0
libtpu: 0.0.40
codegen_flags: <defaults>
</compile_context>

<pallas_src>
import functools
import math

import jax
import jax.numpy as jnp
from jax.experimental import pallas as pl
from jax.experimental.pallas import tpu as pltpu

PAD_TOKEN_ID = 0
SOS_TOKEN_ID = 1
_MASK_VALUE = -1e30  # large finite negative: exp() underflows to 0, no NaN on full masking
_LN_EPS = 1e-5


# ----------------------------- tiling / spec helpers -----------------------------

def _pick_row_tile(m, cap=512):
    """Largest row tile <= cap that divides m and is a multiple of 8 (else full m)."""
    for c in (512, 256, 128, 64, 32, 16, 8):
        if c <= cap and m % c == 0:
            return c
    return m


def _pick_lane_tile(n, cap=2048):
    """Largest lane tile <= cap (multiple of 128) dividing n, else full n."""
    for c in (2048, 1024, 512, 256, 128):
        if c <= cap and n % c == 0:
            return c
    return n


def _full_spec(shape):
    # Whole-array block, constant index map across the grid (weights / biases / LN params).
    return pl.BlockSpec(shape, lambda *_: (0,) * len(shape))


def _vmem_limit(block_bytes):
    """Scoped VMEM limit from block footprint: 2x (double-buffer) + 50% headroom,
    clamped to a range safe on v5e/v6e (128 MiB phys) and v7x (64 MiB phys)."""
    need = 2 * int(block_bytes)
    need = need + need // 2 + (4 << 20)
    return int(max(32 << 20, min(need, 64 << 20)))


def _cparams(semantics, vmem_bytes):
    return pltpu.CompilerParams(dimension_semantics=semantics,
                                vmem_limit_bytes=vmem_bytes)


# ----------------------------- generic tiled linear (K/V projections) -----------------------------

def _linear_kernel(x_ref, w_ref, b_ref, o_ref):
    o_ref[...] = (jnp.dot(x_ref[...], w_ref[...], preferred_element_type=jnp.float32)
                  + b_ref[...]).astype(o_ref.dtype)


def linear(x2d, w, b, out_dtype=jnp.bfloat16):
    """x2d: (M, D) bf16, w: (D, N) bf16, b: (N,) f32 -> (M, N) bf16."""
    M, D = x2d.shape
    N = w.shape[1]
    tm = _pick_row_tile(M, cap=512)
    tn = _pick_lane_tile(N, cap=1024)
    est = (tm * D + D * tn + tm * tn) * 2 + tn * 4
    return pl.pallas_call(
        _linear_kernel,
        grid=(M // tm, N // tn),
        in_specs=[pl.BlockSpec((tm, D), lambda i, j: (i, 0)),
                  pl.BlockSpec((D, tn), lambda i, j: (0, j)),
                  pl.BlockSpec((1, tn), lambda i, j: (0, j))],
        out_specs=pl.BlockSpec((tm, tn), lambda i, j: (i, j)),
        out_shape=jax.ShapeDtypeStruct((M, N), out_dtype),
        compiler_params=_cparams(("parallel", "parallel"), _vmem_limit(est)),
    )(x2d, w, b.reshape(1, N))


# ----------------------------- fused attention sub-layer -----------------------------

def _attn_block_kernel(*refs, num_heads, scale, eps, causal, has_kbias, q_tile):
    if has_kbias:
        (x_ref, k_ref, v_ref, kb_ref, wq_ref, bq_ref,
         wo_ref, bo_ref, g_ref, be_ref, o_ref) = refs
    else:
        (x_ref, k_ref, v_ref, wq_ref, bq_ref,
         wo_ref, bo_ref, g_ref, be_ref, o_ref) = refs
        kb_ref = None

    x = x_ref[0]                                   # (tq, D) bf16 — query source / residual
    k = k_ref[0]                                   # (Tk, D) bf16 (precomputed K)
    v = v_ref[0]                                   # (Tk, D) bf16 (precomputed V)
    Tq, D = x.shape
    Tk = k.shape[0]
    H = num_heads
    hd = D // H

    # Q projection for this row tile (bf16 MXU, f32 accumulate).
    q = (jnp.dot(x, wq_ref[...], preferred_element_type=jnp.float32)
         + bq_ref[...]).astype(x.dtype)            # (tq, D) bf16

    if causal:
        q0 = pl.program_id(1) * q_tile             # global row offset of this q tile
        row = jax.lax.broadcasted_iota(jnp.int32, (Tq, Tk), 0) + q0
        col = jax.lax.broadcasted_iota(jnp.int32, (Tq, Tk), 1)
        causal_ok = col <= row
    if has_kbias:
        kb = kb_ref[0]                             # (1, Tk) additive f32 bias (0 / -1e30)

    o_heads = []
    for h in range(H):                             # static unroll over heads
        qh = q[:, h * hd:(h + 1) * hd]             # (tq, hd)
        kh = k[:, h * hd:(h + 1) * hd]             # (Tk, hd)
        vh = v[:, h * hd:(h + 1) * hd]             # (Tk, hd)
        # q @ k^T (contract last dims of both, no explicit transpose).
        s = jax.lax.dot_general(qh, kh, (((1,), (1,)), ((), ())),
                                preferred_element_type=jnp.float32) * scale   # (tq, Tk)
        if causal:
            s = jnp.where(causal_ok, s, _MASK_VALUE)
        if has_kbias:
            s = s + kb
        m = jnp.max(s, axis=-1, keepdims=True)
        p = jnp.exp(s - m)
        p = p / jnp.sum(p, axis=-1, keepdims=True)     # exact softmax (matches torch)
        o_heads.append(jnp.dot(p.astype(v.dtype), vh,
                               preferred_element_type=jnp.float32))            # (tq, hd)

    # Lane-dense head concat, then ONE K=D output-projection matmul on the MXU.
    o_cat = jnp.concatenate(o_heads, axis=-1).astype(x.dtype)                  # (tq, D)
    proj = jnp.dot(o_cat, wo_ref[...], preferred_element_type=jnp.float32) + bo_ref[...]

    # Residual add + LayerNorm epilogue (post-norm, PyTorch default).
    y = x.astype(jnp.float32) + proj
    mean = jnp.mean(y, axis=-1, keepdims=True)
    var = jnp.mean(jnp.square(y - mean), axis=-1, keepdims=True)
    y = (y - mean) * jax.lax.rsqrt(var + eps)
    o_ref[0] = (y * g_ref[...] + be_ref[...]).astype(o_ref.dtype)


def attn_block(x, k, v, key_bias, ap, ln_g, ln_b, *, num_heads, causal, eps=_LN_EPS):
    """Fused attention sub-layer (Q proj + softmax attention + Wo + residual + LN).

    x:        (B, T, D) bf16   query source / residual
    k, v:     (B, Tk, D) bf16  precomputed keys / values
    key_bias: None or (B, 1, Tk) f32 additive bias (0 / -1e30) for key padding
    """
    B, T, D = x.shape
    Tk = k.shape[1]
    assert D % num_heads == 0
    scale = 1.0 / math.sqrt(D // num_heads)
    tq = _pick_row_tile(T, cap=256)
    has_kbias = key_bias is not None

    kernel = functools.partial(_attn_block_kernel, num_heads=num_heads, scale=scale,
                               eps=eps, causal=causal, has_kbias=has_kbias, q_tile=tq)

    in_specs = [
        pl.BlockSpec((1, tq, D), lambda b, i: (b, i, 0)),     # x row tile
        pl.BlockSpec((1, Tk, D), lambda b, i: (b, 0, 0)),     # K (full key axis)
        pl.BlockSpec((1, Tk, D), lambda b, i: (b, 0, 0)),     # V
    ]
    inputs = [x, k, v]
    if has_kbias:
        in_specs.append(pl.BlockSpec((1, 1, Tk), lambda b, i: (b, 0, 0)))
        inputs.append(key_bias)
    in_specs += [
        _full_spec((D, D)), _full_spec((1, D)),               # wq, bq
        _full_spec((D, D)), _full_spec((1, D)),               # wo, bo
        _full_spec((1, D)), _full_spec((1, D)),               # ln gamma, beta
    ]
    inputs += [ap["wq"], ap["bq"].reshape(1, D),
               ap["wo"], ap["bo"].reshape(1, D),
               ln_g.reshape(1, D), ln_b.reshape(1, D)]

    est = (2 * tq * D + 2 * Tk * D + 2 * D * D) * 2 + 6 * D * 4 \
        + (Tk * 4 if has_kbias else 0) + tq * Tk * 4
    return pl.pallas_call(
        kernel,
        grid=(B, T // tq),
        in_specs=in_specs,
        out_specs=pl.BlockSpec((1, tq, D), lambda b, i: (b, i, 0)),
        out_shape=jax.ShapeDtypeStruct((B, T, D), x.dtype),
        compiler_params=_cparams(("parallel", "parallel"), _vmem_limit(est)),
    )(*inputs)


# ----------------------------- fused feed-forward sub-layer -----------------------------

def _ffn_block_kernel(x_ref, w1_ref, b1_ref, w2_ref, b2_ref, g_ref, be_ref,
                      o_ref, acc_ref, *, eps):
    f = pl.program_id(1)

    @pl.when(f == 0)
    def _():
        acc_ref[...] = jnp.zeros_like(acc_ref)

    x = x_ref[...]                                                        # (tm, D) bf16
    h = jnp.dot(x, w1_ref[...], preferred_element_type=jnp.float32) + b1_ref[...]
    h = jnp.maximum(h, 0.0).astype(x.dtype)                               # ReLU, bf16
    acc_ref[...] += jnp.dot(h, w2_ref[...], preferred_element_type=jnp.float32)

    @pl.when(f == pl.num_programs(1) - 1)
    def _():
        y = acc_ref[...] + b2_ref[...] + x.astype(jnp.float32)            # residual
        mean = jnp.mean(y, axis=-1, keepdims=True)
        var = jnp.mean(jnp.square(y - mean), axis=-1, keepdims=True)
        y = (y - mean) * jax.lax.rsqrt(var + eps)
        o_ref[...] = (y * g_ref[...] + be_ref[...]).astype(o_ref.dtype)


def ffn_block(x2d, lp, eps=_LN_EPS):
    """linear1 + ReLU + linear2 + residual + LayerNorm, tiled over (rows, dim_ff)."""
    M, D = x2d.shape
    F = lp["w1"].shape[1]
    tm = _pick_row_tile(M, cap=512)
    tf = _pick_lane_tile(F, cap=1024)
    est = (2 * tm * D + D * tf + tf * D + tm * tf) * 2 + (tf + 3 * D) * 4 + tm * D * 4
    return pl.pallas_call(
        functools.partial(_ffn_block_kernel, eps=eps),
        grid=(M // tm, F // tf),
        in_specs=[
            pl.BlockSpec((tm, D), lambda i, f: (i, 0)),
            pl.BlockSpec((D, tf), lambda i, f: (0, f)),
            pl.BlockSpec((1, tf), lambda i, f: (0, f)),
            pl.BlockSpec((tf, D), lambda i, f: (f, 0)),
            _full_spec((1, D)), _full_spec((1, D)), _full_spec((1, D)),
        ],
        out_specs=pl.BlockSpec((tm, D), lambda i, f: (i, 0)),
        out_shape=jax.ShapeDtypeStruct((M, D), x2d.dtype),
        scratch_shapes=[pltpu.VMEM((tm, D), jnp.float32)],
        compiler_params=_cparams(("parallel", "arbitrary"), _vmem_limit(est)),
    )(x2d, lp["w1"], lp["b1"].reshape(1, F), lp["w2"], lp["b2"].reshape(1, D),
      lp["ln3_g"].reshape(1, D), lp["ln3_b"].reshape(1, D))


# ----------------------------- fused final LayerNorm + vocab projection -----------------------------

def _ln_vocab_kernel(x_ref, g_ref, be_ref, w_ref, b_ref, o_ref, xn_ref, *, eps):
    # LayerNorm of the row tile is computed once (j == 0) and reused for all vocab tiles.
    @pl.when(pl.program_id(1) == 0)
    def _():
        x = x_ref[...].astype(jnp.float32)
        mean = jnp.mean(x, axis=-1, keepdims=True)
        var = jnp.mean(jnp.square(x - mean), axis=-1, keepdims=True)
        y = (x - mean) * jax.lax.rsqrt(var + eps)
        xn_ref[...] = (y * g_ref[...] + be_ref[...]).astype(xn_ref.dtype)

    o_ref[...] = (jnp.dot(xn_ref[...], w_ref[...], preferred_element_type=jnp.float32)
                  + b_ref[...]).astype(o_ref.dtype)


def final_ln_vocab(x2d, gamma, beta, w, b, eps=_LN_EPS):
    """LayerNorm(x) @ w + b, tiled over (row tiles, vocab tiles). Returns f32 logits."""
    M, D = x2d.shape
    V = w.shape[1]
    tm = _pick_row_tile(M, cap=512)
    tn = _pick_lane_tile(V, cap=2048)
    est = tm * D * 2 + D * tn * 2 + tm * tn * 4 + (2 * D + tn) * 4 + tm * D * 2
    return pl.pallas_call(
        functools.partial(_ln_vocab_kernel, eps=eps),
        grid=(M // tm, V // tn),
        in_specs=[
            pl.BlockSpec((tm, D), lambda i, j: (i, 0)),
            _full_spec((1, D)), _full_spec((1, D)),
            pl.BlockSpec((D, tn), lambda i, j: (0, j)),
            pl.BlockSpec((1, tn), lambda i, j: (0, j)),
        ],
        out_specs=pl.BlockSpec((tm, tn), lambda i, j: (i, j)),
        out_shape=jax.ShapeDtypeStruct((M, V), jnp.float32),
        scratch_shapes=[pltpu.VMEM((tm, D), jnp.bfloat16)],
        compiler_params=_cparams(("parallel", "arbitrary"), _vmem_limit(est)),
    )(x2d, gamma.reshape(1, D), beta.reshape(1, D), w, b.reshape(1, V))


# ----------------------------- forward pass (JAX glue calling fused kernels) -----------------------------

def transformer_decoder_forward(params, src_key_padding_mask, enc_outputs, tgt_seqs,
                                *, num_heads):
    """Equivalent of TransformerDecoder._decode_step (training-path forward).

    src_key_padding_mask: (B, S) bool (True = padded)
    enc_outputs:          (S, B, D) sequence-first memory
    tgt_seqs:             (B, T) int token ids
    num_heads:            static Python int (bound via functools.partial before jit)
    returns logits:       (B, T, vocab_size) float32
    """
    B, T = tgt_seqs.shape
    S = enc_outputs.shape[0]
    D = params["pe"].shape[1]

    # Embedding gather + positional encoding at the JAX level (no rectangular tiling).
    x = (jnp.take(params["embedding"], tgt_seqs, axis=0).astype(jnp.float32)
         + params["pe"][:T]).astype(jnp.bfloat16)                            # (B, T, D)

    # Batch-first layout throughout (math identical to PyTorch's seq-first internals).
    memory = jnp.transpose(enc_outputs, (1, 0, 2)).astype(jnp.bfloat16)      # (B, S, D)
    memory2d = memory.reshape(B * S, D)

    # Memory key-padding mask -> tiny per-batch additive row (no (B*H,T,S) bias tensor).
    # (PyTorch ignores tgt_key_padding_mask in this module: it is computed but not passed.)
    key_bias = jnp.where(src_key_padding_mask, _MASK_VALUE, 0.0
                         ).astype(jnp.float32).reshape(B, 1, S)

    for lp in params["layers"]:
        sa, ca = lp["self_attn"], lp["cross_attn"]

        # --- causal self-attention (K/V projected once in a batched tiled matmul) ---
        kv = linear(x.reshape(B * T, D), sa["wkv"], sa["bkv"]).reshape(B, T, 2 * D)
        x = attn_block(x, kv[..., :D], kv[..., D:], None, sa,
                       lp["ln1_g"], lp["ln1_b"], num_heads=num_heads, causal=True)

        # --- cross-attention over encoder memory w/ key-padding mask ---
        kv = linear(memory2d, ca["wkv"], ca["bkv"]).reshape(B, S, 2 * D)
        x = attn_block(x, kv[..., :D], kv[..., D:], key_bias, ca,
                       lp["ln2_g"], lp["ln2_b"], num_heads=num_heads, causal=False)

        # --- ReLU feed-forward ---
        x = ffn_block(x.reshape(B * T, D), lp).reshape(B, T, D)

    logits = final_ln_vocab(x.reshape(B * T, D),
                            params["final_ln_g"], params["final_ln_b"],
                            params["out_w"], params["out_b"])                # (B*T, V) f32
    return logits.reshape(B, T, -1)

# TODO(synk): eval-mode autoregressive greedy-decode loop (topk over max_seq_len steps)
# is host-level control flow around repeated _decode_step calls and is not kernelized.
# NOTE: weight layout here is x @ W with W shaped (in, out); PyTorch nn.Linear stores
# (out, in) — transpose when importing a torch checkpoint.


# ----------------------------- Deterministic parameter init -----------------------------

def _xavier_uniform(key, shape, dtype=jnp.bfloat16):
    fan_in, fan_out = shape[0], shape[1]
    limit = math.sqrt(6.0 / (fan_in + fan_out))
    return jax.random.uniform(key, shape, jnp.float32, -limit, limit).astype(dtype)


def _make_pe(max_len, d_model):
    pos = jnp.arange(max_len, dtype=jnp.float32)[:, None]
    div = jnp.exp(jnp.arange(0, d_model, 2, dtype=jnp.float32)
                  * -(math.log(10000.0) / d_model))
    pe = jnp.zeros((max_len, d_model), jnp.float32)
    pe = pe.at[:, 0::2].set(jnp.sin(pos * div))
    pe = pe.at[:, 1::2].set(jnp.cos(pos * div))
    return pe


def init_params(key, d_model, num_heads, vocab_size, num_layers, dim_ff, max_seq_len):
    del num_heads  # static config, kept out of the (traced) params pytree
    keys = jax.random.split(key, 2 + num_layers)
    params = {}
    params["embedding"] = _xavier_uniform(keys[0], (vocab_size, d_model))    # bf16
    params["pe"] = _make_pe(max_seq_len, d_model)                            # f32

    z = lambda n: jnp.zeros((n,), jnp.float32)
    o = lambda n: jnp.ones((n,), jnp.float32)

    def attn_params(k):
        kq, kk, kv, ko = jax.random.split(k, 4)
        return dict(
            wq=_xavier_uniform(kq, (d_model, d_model)), bq=z(d_model),
            wkv=jnp.concatenate([_xavier_uniform(kk, (d_model, d_model)),
                                 _xavier_uniform(kv, (d_model, d_model))], axis=1),
            bkv=z(2 * d_model),
            wo=_xavier_uniform(ko, (d_model, d_model)), bo=z(d_model))

    layers = []
    for l in range(num_layers):
        lk = jax.random.split(keys[2 + l], 4)
        layers.append(dict(
            self_attn=attn_params(lk[0]),
            cross_attn=attn_params(lk[1]),
            w1=_xavier_uniform(lk[2], (d_model, dim_ff)), b1=z(dim_ff),
            w2=_xavier_uniform(lk[3], (dim_ff, d_model)), b2=z(d_model),
            ln1_g=o(d_model), ln1_b=z(d_model),
            ln2_g=o(d_model), ln2_b=z(d_model),
            ln3_g=o(d_model), ln3_b=z(d_model),
        ))
    params["layers"] = layers
    params["final_ln_g"] = o(d_model)
    params["final_ln_b"] = z(d_model)
    params["out_w"] = _xavier_uniform(keys[1], (d_model, vocab_size))        # bf16
    params["out_b"] = jnp.zeros((vocab_size,), jnp.float32)
    return params


# ----------------------------- Demo -----------------------------

if __name__ == "__main__":
    d_model, num_heads, vocab_size = 32, 4, 40
    num_layers, dim_ff, max_seq_len = 2, 64, 16
    B, T, S = 2, 8, 8

    key = jax.random.PRNGKey(0)
    pkey, dkey1, dkey2 = jax.random.split(key, 3)
    params = init_params(pkey, d_model, num_heads, vocab_size,
                         num_layers, dim_ff, max_seq_len)

    enc_outputs = jax.random.normal(dkey1, (S, B, d_model), jnp.float32)   # (S, B, D)
    tgt_seqs = jax.random.randint(dkey2, (B, T), 2, vocab_size)            # (B, T)
    src_key_padding_mask = jnp.zeros((B, S), dtype=bool).at[1, S - 2:].set(True)

    fwd = jax.jit(functools.partial(transformer_decoder_forward, num_heads=num_heads))
    logits = fwd(params, src_key_padding_mask, enc_outputs, tgt_seqs)
    jax.block_until_ready(logits)

    assert logits.shape == (B, T, vocab_size), logits.shape
    assert bool(jnp.all(jnp.isfinite(logits)))
    print("KERNEL_OK")
</pallas_src>

<mosaic_0001>
module attributes {stable_mosaic.version = 11 : i64} {
  func.func @_linear_kernel(%arg0: i32, %arg1: i32, %arg2: memref<16x32xbf16, #tpu.memory_space<vmem>>, %arg3: memref<32x64xbf16, #tpu.memory_space<vmem>>, %arg4: memref<1x64xf32, #tpu.memory_space<vmem>>, %arg5: memref<16x64xbf16, #tpu.memory_space<vmem>>) attributes {dimension_semantics = [#tpu.dimension_semantics<parallel>, #tpu.dimension_semantics<parallel>], iteration_bounds = array<i64: 1, 1>, scalar_prefetch = 0 : i64, scratch_operands = 0 : i64, tpu.core_type = #tpu.core_type<tc>, window_params = [{transform_indices = @transform_0, window_bounds = array<i64: 16, 32>}, {transform_indices = @transform_1, window_bounds = array<i64: 32, 64>}, {transform_indices = @transform_2, window_bounds = array<i64: 1, 64>}, {transform_indices = @transform_3, window_bounds = array<i64: 16, 64>}]} {
    %c0 = arith.constant 0 : index
    %c0_0 = arith.constant 0 : index
    %0 = vector.load %arg2[%c0, %c0_0] : memref<16x32xbf16, #tpu.memory_space<vmem>>, vector<16x32xbf16>
    %c0_1 = arith.constant 0 : index
    %c0_2 = arith.constant 0 : index
    %1 = vector.load %arg3[%c0_1, %c0_2] : memref<32x64xbf16, #tpu.memory_space<vmem>>, vector<32x64xbf16>
    %cst = arith.constant dense<0.000000e+00> : vector<16x64xf32>
    %2 = tpu.matmul %0, %1, %cst {dimension_numbers = #tpu.dot_dimension_numbers<[1], [0], [0], [1], [0, 0, 1, 1], [], []>} : vector<16x32xbf16>, vector<32x64xbf16>, vector<16x64xf32> -> vector<16x64xf32>
    %c0_3 = arith.constant 0 : index
    %c0_4 = arith.constant 0 : index
    %3 = vector.load %arg4[%c0_3, %c0_4] : memref<1x64xf32, #tpu.memory_space<vmem>>, vector<1x64xf32>
    %4 = vector.broadcast %3 : vector<1x64xf32> to vector<16x64xf32>
    %5 = arith.addf %2, %4 : vector<16x64xf32>
    %6 = arith.truncf %5 : vector<16x64xf32> to vector<16x64xbf16>
    %c0_5 = arith.constant 0 : index
    %c0_6 = arith.constant 0 : index
    %7 = vector.load %arg5[%c0_5, %c0_6] : memref<16x64xbf16, #tpu.memory_space<vmem>>, vector<16x64xbf16>
    tpu.vector_store %arg5[%c0_5, %c0_6], %6 {strides = array<i32>} : memref<16x64xbf16, #tpu.memory_space<vmem>>, vector<16x64xbf16>,
    return
  }
  func.func @transform_0(%arg0: i32, %arg1: i32) -> (i32, i32) {
    %c0_i32 = arith.constant 0 : i32
    %c0_i32_0 = arith.constant 0 : i32
    return %arg0, %c0_i32 : i32, i32
  }
  func.func @transform_1(%arg0: i32, %arg1: i32) -> (i32, i32) {
    %c0_i32 = arith.constant 0 : i32
    %c0_i32_0 = arith.constant 0 : i32
    return %c0_i32, %arg1 : i32, i32
  }
  func.func @transform_2(%arg0: i32, %arg1: i32) -> (i32, i32) {
    %c0_i32 = arith.constant 0 : i32
    %c0_i32_0 = arith.constant 0 : i32
    return %c0_i32, %arg1 : i32, i32
  }
  func.func @transform_3(%arg0: i32, %arg1: i32) -> (i32, i32) {
    %c0_i32 = arith.constant 0 : i32
    return %arg0, %arg1 : i32, i32
  }
}

module attributes {stable_mosaic.version = 11 : i64} {
  func.func @_attn_block_kernel(%arg0: i32, %arg1: i32, %arg2: memref<1x8x32xbf16, #tpu.memory_space<vmem>>, %arg3: memref<1x8x32xbf16, #tpu.memory_space<vmem>>, %arg4: memref<1x8x32xbf16, #tpu.memory_space<vmem>>, %arg5: memref<1x1x8xf32, #tpu.memory_space<vmem>>, %arg6: memref<32x32xbf16, #tpu.memory_space<vmem>>, %arg7: memref<1x32xf32, #tpu.memory_space<vmem>>, %arg8: memref<32x32xbf16, #tpu.memory_space<vmem>>, %arg9: memref<1x32xf32, #tpu.memory_space<vmem>>, %arg10: memref<1x32xf32, #tpu.memory_space<vmem>>, %arg11: memref<1x32xf32, #tpu.memory_space<vmem>>, %arg12: memref<1x8x32xbf16, #tpu.memory_space<vmem>>) attributes {dimension_semantics = [#tpu.dimension_semantics<parallel>, #tpu.dimension_semantics<parallel>], iteration_bounds = array<i64: 2, 1>, scalar_prefetch = 0 : i64, scratch_operands = 0 : i64, tpu.core_type = #tpu.core_type<tc>, window_params = [{transform_indices = @transform_0, window_bounds = array<i64: 1, 8, 32>}, {transform_indices = @transform_1, window_bounds = array<i64: 1, 8, 32>}, {transform_indices = @transform_2, window_bounds = array<i64: 1, 8, 32>}, {transform_indices = @transform_3, window_bounds = array<i64: 1, 1, 8>}, {pipeline_mode = #tpu.pipeline_mode<synchronous>, transform_indices = @transform_4, window_bounds = array<i64: 32, 32>}, {pipeline_mode = #tpu.pipeline_mode<synchronous>, transform_indices = @transform_5, window_bounds = array<i64: 1, 32>}, {pipeline_mode = #tpu.pipeline_mode<synchronous>, transform_indices = @transform_6, window_bounds = array<i64: 32, 32>}, {pipeline_mode = #tpu.pipeline_mode<synchronous>, transform_indices = @transform_7, window_bounds = array<i64: 1, 32>}, {pipeline_mode = #tpu.pipeline_mode<synchronous>, transform_indices = @transform_8, window_bounds = array<i64: 1, 32>}, {pipeline_mode = #tpu.pipeline_mode<synchronous>, transform_indices = @transform_9, window_bounds = array<i64: 1, 32>}, {transform_indices = @transform_10, window_bounds = array<i64: 1, 8, 32>}]} {
    %c0 = arith.constant 0 : index
    %c0_0 = arith.constant 0 : index
    %c0_1 = arith.constant 0 : index
    %0 = vector.load %arg2[%c0, %c0_0, %c0_1] : memref<1x8x32xbf16, #tpu.memory_space<vmem>>, vector<1x8x32xbf16>
    %1 = vector.shape_cast %0 : vector<1x8x32xbf16> to vector<8x32xbf16>
    %c0_2 = arith.constant 0 : index
    %c0_3 = arith.constant 0 : index
    %c0_4 = arith.constant 0 : index
    %2 = vector.load %arg3[%c0_2, %c0_3, %c0_4] : memref<1x8x32xbf16, #tpu.memory_space<vmem>>, vector<1x8x32xbf16>
    %3 = vector.shape_cast %2 : vector<1x8x32xbf16> to vector<8x32xbf16>
    %c0_5 = arith.constant 0 : index
    %c0_6 = arith.constant 0 : index
    %c0_7 = arith.constant 0 : index
    %4 = vector.load %arg4[%c0_5, %c0_6, %c0_7] : memref<1x8x32xbf16, #tpu.memory_space<vmem>>, vector<1x8x32xbf16>
    %5 = vector.shape_cast %4 : vector<1x8x32xbf16> to vector<8x32xbf16>
    %c0_8 = arith.constant 0 : index
    %c0_9 = arith.constant 0 : index
    %6 = vector.load %arg6[%c0_8, %c0_9] : memref<32x32xbf16, #tpu.memory_space<vmem>>, vector<32x32xbf16>
    %cst = arith.constant dense<0.000000e+00> : vector<8x32xf32>
    %7 = tpu.matmul %1, %6, %cst {dimension_numbers = #tpu.dot_dimension_numbers<[1], [0], [0], [1], [0, 0, 1, 1], [], []>} : vector<8x32xbf16>, vector<32x32xbf16>, vector<8x32xf32> -> vector<8x32xf32>
    %c0_10 = arith.constant 0 : index
    %c0_11 = arith.constant 0 : index
    %8 = vector.load %arg7[%c0_10, %c0_11] : memref<1x32xf32, #tpu.memory_space<vmem>>, vector<1x32xf32>
    %9 = vector.broadcast %8 : vector<1x32xf32> to vector<8x32xf32>
    %10 = arith.addf %7, %9 : vector<8x32xf32>
    %11 = arith.truncf %10 : vector<8x32xf32> to vector<8x32xbf16>
    %c0_12 = arith.constant 0 : index
    %c0_13 = arith.constant 0 : index
    %c0_14 = arith.constant 0 : index
    %12 = vector.load %arg5[%c0_12, %c0_13, %c0_14] : memref<1x1x8xf32, #tpu.memory_space<vmem>>, vector<1x1x8xf32>
    %13 = vector.shape_cast %12 : vector<1x1x8xf32> to vector<1x8xf32>
    %14 = vector.extract_strided_slice %11 {offsets = [0, 0], sizes = [8, 8], strides = [1, 1]} : vector<8x32xbf16> to vector<8x8xbf16>
    %15 = vector.extract_strided_slice %3 {offsets = [0, 0], sizes = [8, 8], strides = [1, 1]} : vector<8x32xbf16> to vector<8x8xbf16>
    %16 = vector.extract_strided_slice %5 {offsets = [0, 0], sizes = [8, 8], strides = [1, 1]} : vector<8x32xbf16> to vector<8x8xbf16>
    %cst_15 = arith.constant dense<0.000000e+00> : vector<8x8xf32>
    %17 = tpu.matmul %14, %15, %cst_15 {dimension_numbers = #tpu.dot_dimension_numbers<[1], [1], [0], [0], [0, 0, 1, 0], [], []>} : vector<8x8xbf16>, vector<8x8xbf16>, vector<8x8xf32> -> vector<8x8xf32>
    %cst_16 = arith.constant 0.353553385 : f32
    %18 = vector.broadcast %cst_16 : f32 to vector<8x8xf32>
    %19 = arith.mulf %17, %18 : vector<8x8xf32>
    %20 = vector.broadcast %13 : vector<1x8xf32> to vector<8x8xf32>
    %21 = arith.addf %19, %20 : vector<8x8xf32>
    %cst_17 = arith.constant dense<0xFF800000> : vector<8xf32>
    %22 = vector.multi_reduction <maximumf>, %21, %cst_17 [1] : vector<8x8xf32> to vector<8xf32>
    %23 = vector.shape_cast %22 : vector<8xf32> to vector<8x1xf32>
    %24 = vector.broadcast %23 : vector<8x1xf32> to vector<8x8xf32>
    %25 = arith.subf %21, %24 : vector<8x8xf32>
    %26 = math.exp %25 : vector<8x8xf32>
    %cst_18 = arith.constant dense<0.000000e+00> : vector<8xf32>
    %27 = vector.multi_reduction <add>, %26, %cst_18 [1] : vector<8x8xf32> to vector<8xf32>
    %28 = vector.shape_cast %27 : vector<8xf32> to vector<8x1xf32>
    %29 = vector.broadcast %28 : vector<8x1xf32> to vector<8x8xf32>
    %30 = arith.divf %26, %29 : vector<8x8xf32>
    %31 = arith.truncf %30 : vector<8x8xf32> to vector<8x8xbf16>
    %cst_19 = arith.constant dense<0.000000e+00> : vector<8x8xf32>
    %32 = tpu.matmul %31, %16, %cst_19 {dimension_numbers = #tpu.dot_dimension_numbers<[1], [0], [0], [1], [0, 0, 1, 1], [], []>} : vector<8x8xbf16>, vector<8x8xbf16>, vector<8x8xf32> -> vector<8x8xf32>
    %33 = vector.extract_strided_slice %11 {offsets = [0, 8], sizes = [8, 8], strides = [1, 1]} : vector<8x32xbf16> to vector<8x8xbf16>
    %34 = vector.extract_strided_slice %3 {offsets = [0, 8], sizes = [8, 8], strides = [1, 1]} : vector<8x32xbf16> to vector<8x8xbf16>
    %35 = vector.extract_strided_slice %5 {offsets = [0, 8], sizes = [8, 8], strides = [1, 1]} : vector<8x32xbf16> to vector<8x8xbf16>
    %cst_20 = arith.constant dense<0.000000e+00> : vector<8x8xf32>
    %36 = tpu.matmul %33, %34, %cst_20 {dimension_numbers = #tpu.dot_dimension_numbers<[1], [1], [0], [0], [0, 0, 1, 0], [], []>} : vector<8x8xbf16>, vector<8x8xbf16>, vector<8x8xf32> -> vector<8x8xf32>
    %cst_21 = arith.constant 0.353553385 : f32
    %37 = vector.broadcast %cst_21 : f32 to vector<8x8xf32>
    %38 = arith.mulf %36, %37 : vector<8x8xf32>
    %39 = vector.broadcast %13 : vector<1x8xf32> to vector<8x8xf32>
    %40 = arith.addf %38, %39 : vector<8x8xf32>
    %cst_22 = arith.constant dense<0xFF800000> : vector<8xf32>
    %41 = vector.multi_reduction <maximumf>, %40, %cst_22 [1] : vector<8x8xf32> to vector<8xf32>
    %42 = vector.shape_cast %41 : vector<8xf32> to vector<8x1xf32>
    %43 = vector.broadcast %42 : vector<8x1xf32> to vector<8x8xf32>
    %44 = arith.subf %40, %43 : vector<8x8xf32>
    %45 = math.exp %44 : vector<8x8xf32>
    %cst_23 = arith.constant dense<0.000000e+00> : vector<8xf32>
    %46 = vector.multi_reduction <add>, %45, %cst_23 [1] : vector<8x8xf32> to vector<8xf32>
    %47 = vector.shape_cast %46 : vector<8xf32> to vector<8x1xf32>
    %48 = vector.broadcast %47 : vector<8x1xf32> to vector<8x8xf32>
    %49 = arith.divf %45, %48 : vector<8x8xf32>
    %50 = arith.truncf %49 : vector<8x8xf32> to vector<8x8xbf16>
    %cst_24 = arith.constant dense<0.000000e+00> : vector<8x8xf32>
    %51 = tpu.matmul %50, %35, %cst_24 {dimension_numbers = #tpu.dot_dimension_numbers<[1], [0], [0], [1], [0, 0, 1, 1], [], []>} : vector<8x8xbf16>, vector<8x8xbf16>, vector<8x8xf32> -> vector<8x8xf32>
    %52 = vector.extract_strided_slice %11 {offsets = [0, 16], sizes = [8, 8], strides = [1, 1]} : vector<8x32xbf16> to vector<8x8xbf16>
    %53 = vector.extract_strided_slice %3 {offsets = [0, 16], sizes = [8, 8], strides = [1, 1]} : vector<8x32xbf16> to vector<8x8xbf16>
    %54 = vector.extract_strided_slice %5 {offsets = [0, 16], sizes = [8, 8], strides = [1, 1]} : vector<8x32xbf16> to vector<8x8xbf16>
    %cst_25 = arith.constant dense<0.000000e+00> : vector<8x8xf32>
    %55 = tpu.matmul %52, %53, %cst_25 {dimension_numbers = #tpu.dot_dimension_numbers<[1], [1], [0], [0], [0, 0, 1, 0], [], []>} : vector<8x8xbf16>, vector<8x8xbf16>, vector<8x8xf32> -> vector<8x8xf32>
    %cst_26 = arith.constant 0.353553385 : f32
    %56 = vector.broadcast %cst_26 : f32 to vector<8x8xf32>
    %57 = arith.mulf %55, %56 : vector<8x8xf32>
    %58 = vector.broadcast %13 : vector<1x8xf32> to vector<8x8xf32>
    %59 = arith.addf %57, %58 : vector<8x8xf32>
    %cst_27 = arith.constant dense<0xFF800000> : vector<8xf32>
    %60 = vector.multi_reduction <maximumf>, %59, %cst_27 [1] : vector<8x8xf32> to vector<8xf32>
    %61 = vector.shape_cast %60 : vector<8xf32> to vector<8x1xf32>
    %62 = vector.broadcast %61 : vector<8x1xf32> to vector<8x8xf32>
    %63 = arith.subf %59, %62 : vector<8x8xf32>
    %64 = math.exp %63 : vector<8x8xf32>
    %cst_28 = arith.constant dense<0.000000e+00> : vector<8xf32>
    %65 = vector.multi_reduction <add>, %64, %cst_28 [1] : vector<8x8xf32> to vector<8xf32>
    %66 = vector.shape_cast %65 : vector<8xf32> to vector<8x1xf32>
    %67 = vector.broadcast %66 : vector<8x1xf32> to vector<8x8xf32>
    %68 = arith.divf %64, %67 : vector<8x8xf32>
    %69 = arith.truncf %68 : vector<8x8xf32> to vector<8x8xbf16>
    %cst_29 = arith.constant dense<0.000000e+00> : vector<8x8xf32>
    %70 = tpu.matmul %69, %54, %cst_29 {dimension_numbers = #tpu.dot_dimension_numbers<[1], [0], [0], [1], [0, 0, 1, 1], [], []>} : vector<8x8xbf16>, vector<8x8xbf16>, vector<8x8xf32> -> vector<8x8xf32>
    %71 = vector.extract_strided_slice %11 {offsets = [0, 24], sizes = [8, 8], strides = [1, 1]} : vector<8x32xbf16> to vector<8x8xbf16>
    %72 = vector.extract_strided_slice %3 {offsets = [0, 24], sizes = [8, 8], strides = [1, 1]} : vector<8x32xbf16> to vector<8x8xbf16>
    %73 = vector.extract_strided_slice %5 {offsets = [0, 24], sizes = [8, 8], strides = [1, 1]} : vector<8x32xbf16> to vector<8x8xbf16>
    %cst_30 = arith.constant dense<0.000000e+00> : vector<8x8xf32>
    %74 = tpu.matmul %71, %72, %cst_30 {dimension_numbers = #tpu.dot_dimension_numbers<[1], [1], [0], [0], [0, 0, 1, 0], [], []>} : vector<8x8xbf16>, vector<8x8xbf16>, vector<8x8xf32> -> vector<8x8xf32>
    %cst_31 = arith.constant 0.353553385 : f32
    %75 = vector.broadcast %cst_31 : f32 to vector<8x8xf32>
    %76 = arith.mulf %74, %75 : vector<8x8xf32>
    %77 = vector.broadcast %13 : vector<1x8xf32> to vector<8x8xf32>
    %78 = arith.addf %76, %77 : vector<8x8xf32>
    %cst_32 = arith.constant dense<0xFF800000> : vector<8xf32>
    %79 = vector.multi_reduction <maximumf>, %78, %cst_32 [1] : vector<8x8xf32> to vector<8xf32>
    %80 = vector.shape_cast %79 : vector<8xf32> to vector<8x1xf32>
    %81 = vector.broadcast %80 : vector<8x1xf32> to vector<8x8xf32>
    %82 = arith.subf %78, %81 : vector<8x8xf32>
    %83 = math.exp %82 : vector<8x8xf32>
    %cst_33 = arith.constant dense<0.000000e+00> : vector<8xf32>
    %84 = vector.multi_reduction <add>, %83, %cst_33 [1] : vector<8x8xf32> to vector<8xf32>
    %85 = vector.shape_cast %84 : vector<8xf32> to vector<8x1xf32>
    %86 = vector.broadcast %85 : vector<8x1xf32> to vector<8x8xf32>
    %87 = arith.divf %83, %86 : vector<8x8xf32>
    %88 = arith.truncf %87 : vector<8x8xf32> to vector<8x8xbf16>
    %cst_34 = arith.constant dense<0.000000e+00> : vector<8x8xf32>
    %89 = tpu.matmul %88, %73, %cst_34 {dimension_numbers = #tpu.dot_dimension_numbers<[1], [0], [0], [1], [0, 0, 1, 1], [], []>} : vector<8x8xbf16>, vector<8x8xbf16>, vector<8x8xf32> -> vector<8x8xf32>
    %90 = tpu.concatenate %32, %51, %70, %89 in 1 : vector<8x8xf32>, vector<8x8xf32>, vector<8x8xf32>, vector<8x8xf32> -> vector<8x32xf32>
    %91 = arith.truncf %90 : vector<8x32xf32> to vector<8x32xbf16>
    %c0_35 = arith.constant 0 : index
    %c0_36 = arith.constant 0 : index
    %92 = vector.load %arg8[%c0_35, %c0_36] : memref<32x32xbf16, #tpu.memory_space<vmem>>, vector<32x32xbf16>
    %cst_37 = arith.constant dense<0.000000e+00> : vector<8x32xf32>
    %93 = tpu.matmul %91, %92, %cst_37 {dimension_numbers = #tpu.dot_dimension_numbers<[1], [0], [0], [1], [0, 0, 1, 1], [], []>} : vector<8x32xbf16>, vector<32x32xbf16>, vector<8x32xf32> -> vector<8x32xf32>
    %c0_38 = arith.constant 0 : index
    %c0_39 = arith.constant 0 : index
    %94 = vector.load %arg9[%c0_38, %c0_39] : memref<1x32xf32, #tpu.memory_space<vmem>>, vector<1x32xf32>
    %95 = vector.broadcast %94 : vector<1x32xf32> to vector<8x32xf32>
    %96 = arith.addf %93, %95 : vector<8x32xf32>
    %97 = arith.extf %1 : vector<8x32xbf16> to vector<8x32xf32>
    %98 = arith.addf %97, %96 : vector<8x32xf32>
    %cst_40 = arith.constant dense<0.000000e+00> : vector<8xf32>
    %99 = vector.multi_reduction <add>, %98, %cst_40 [1] : vector<8x32xf32> to vector<8xf32>
    %100 = vector.shape_cast %99 : vector<8xf32> to vector<8x1xf32>
    %cst_41 = arith.constant 3.200000e+01 : f32
    %101 = vector.broadcast %cst_41 : f32 to vector<8x1xf32>
    %102 = arith.divf %100, %101 : vector<8x1xf32>
    %103 = vector.broadcast %102 : vector<8x1xf32> to vector<8x32xf32>
    %104 = arith.subf %98, %103 : vector<8x32xf32>
    %105 = arith.mulf %104, %104 : vector<8x32xf32>
    %cst_42 = arith.constant dense<0.000000e+00> : vector<8xf32>
    %106 = vector.multi_reduction <add>, %105, %cst_42 [1] : vector<8x32xf32> to vector<8xf32>
    %107 = vector.shape_cast %106 : vector<8xf32> to vector<8x1xf32>
    %cst_43 = arith.constant 3.200000e+01 : f32
    %108 = vector.broadcast %cst_43 : f32 to vector<8x1xf32>
    %109 = arith.divf %107, %108 : vector<8x1xf32>
    %110 = vector.broadcast %102 : vector<8x1xf32> to vector<8x32xf32>
    %111 = arith.subf %98, %110 : vector<8x32xf32>
    %cst_44 = arith.constant 9.99999974E-6 : f32
    %112 = vector.broadcast %cst_44 : f32 to vector<8x1xf32>
    %113 = arith.addf %109, %112 : vector<8x1xf32>
    %114 = math.rsqrt %113 : vector<8x1xf32>
    %115 = vector.broadcast %114 : vector<8x1xf32> to vector<8x32xf32>
    %116 = arith.mulf %111, %115 : vector<8x32xf32>
    %c0_45 = arith.constant 0 : index
    %c0_46 = arith.constant 0 : index
    %117 = vector.load %arg10[%c0_45, %c0_46] : memref<1x32xf32, #tpu.memory_space<vmem>>, vector<1x32xf32>
    %118 = vector.broadcast %117 : vector<1x32xf32> to vector<8x32xf32>
    %119 = arith.mulf %116, %118 : vector<8x32xf32>
    %c0_47 = arith.constant 0 : index
    %c0_48 = arith.constant 0 : index
    %120 = vector.load %arg11[%c0_47, %c0_48] : memref<1x32xf32, #tpu.memory_space<vmem>>, vector<1x32xf32>
    %121 = vector.broadcast %120 : vector<1x32xf32> to vector<8x32xf32>
    %122 = arith.addf %119, %121 : vector<8x32xf32>
    %123 = arith.truncf %122 : vector<8x32xf32> to vector<8x32xbf16>
    %c0_49 = arith.constant 0 : index
    %c0_50 = arith.constant 0 : index
    %c0_51 = arith.constant 0 : index
    %124 = vector.load %arg12[%c0_49, %c0_50, %c0_51] : memref<1x8x32xbf16, #tpu.memory_space<vmem>>, vector<1x8x32xbf16>
    %125 = vector.shape_cast %124 : vector<1x8x32xbf16> to vector<8x32xbf16>
    %126 = vector.shape_cast %123 : vector<8x32xbf16> to vector<1x8x32xbf16>
    tpu.vector_store %arg12[%c0_49, %c0_50, %c0_51], %126 {strides = array<i32>} : memref<1x8x32xbf16, #tpu.memory_space<vmem>>, vector<1x8x32xbf16>,
    return
  }
  func.func @transform_0(%arg0: i32, %arg1: i32) -> (i32, i32, i32) {
    %c0_i32 = arith.constant 0 : i32
    %c0_i32_0 = arith.constant 0 : i32
    return %arg0, %arg1, %c0_i32 : i32, i32, i32
  }
  func.func @transform_1(%arg0: i32, %arg1: i32) -> (i32, i32, i32) {
    %c0_i32 = arith.constant 0 : i32
    %c0_i32_0 = arith.constant 0 : i32
    %c0_i32_1 = arith.constant 0 : i32
    return %arg0, %c0_i32, %c0_i32_0 : i32, i32, i32
  }
  func.func @transform_2(%arg0: i32, %arg1: i32) -> (i32, i32, i32) {
    %c0_i32 = arith.constant 0 : i32
    %c0_i32_0 = arith.constant 0 : i32
    %c0_i32_1 = arith.constant 0 : i32
    return %arg0, %c0_i32, %c0_i32_0 : i32, i32, i32
  }
  func.func @transform_3(%arg0: i32, %arg1: i32) -> (i32, i32, i32) {
    %c0_i32 = arith.constant 0 : i32
    %c0_i32_0 = arith.constant 0 : i32
    %c0_i32_1 = arith.constant 0 : i32
    return %arg0, %c0_i32, %c0_i32_0 : i32, i32, i32
  }
  func.func @transform_4(%arg0: i32, %arg1: i32) -> (i32, i32) {
    %c0_i32 = arith.constant 0 : i32
    %c0_i32_0 = arith.constant 0 : i32
    %c0_i32_1 = arith.constant 0 : i32
    return %c0_i32, %c0_i32_0 : i32, i32
  }
  func.func @transform_5(%arg0: i32, %arg1: i32) -> (i32, i32) {
    %c0_i32 = arith.constant 0 : i32
    %c0_i32_0 = arith.constant 0 : i32
    %c0_i32_1 = arith.constant 0 : i32
    return %c0_i32, %c0_i32_0 : i32, i32
  }
  func.func @transform_6(%arg0: i32, %arg1: i32) -> (i32, i32) {
    %c0_i32 = arith.constant 0 : i32
    %c0_i32_0 = arith.constant 0 : i32
    %c0_i32_1 = arith.constant 0 : i32
    return %c0_i32, %c0_i32_0 : i32, i32
  }
  func.func @transform_7(%arg0: i32, %arg1: i32) -> (i32, i32) {
    %c0_i32 = arith.constant 0 : i32
    %c0_i32_0 = arith.constant 0 : i32
    %c0_i32_1 = arith.constant 0 : i32
    return %c0_i32, %c0_i32_0 : i32, i32
  }
  func.func @transform_8(%arg0: i32, %arg1: i32) -> (i32, i32) {
    %c0_i32 = arith.constant 0 : i32
    %c0_i32_0 = arith.constant 0 : i32
    %c0_i32_1 = arith.constant 0 : i32
    return %c0_i32, %c0_i32_0 : i32, i32
  }
  func.func @transform_9(%arg0: i32, %arg1: i32) -> (i32, i32) {
    %c0_i32 = arith.constant 0 : i32
    %c0_i32_0 = arith.constant 0 : i32
    %c0_i32_1 = arith.constant 0 : i32
    return %c0_i32, %c0_i32_0 : i32, i32
  }
  func.func @transform_10(%arg0: i32, %arg1: i32) -> (i32, i32, i32) {
    %c0_i32 = arith.constant 0 : i32
    %c0_i32_0 = arith.constant 0 : i32
    return %arg0, %arg1, %c0_i32 : i32, i32, i32
  }
}

module attributes {stable_mosaic.version = 11 : i64} {
  func.func @_attn_block_kernel(%arg0: i32, %arg1: i32, %arg2: memref<1x8x32xbf16, #tpu.memory_space<vmem>>, %arg3: memref<1x8x32xbf16, #tpu.memory_space<vmem>>, %arg4: memref<1x8x32xbf16, #tpu.memory_space<vmem>>, %arg5: memref<32x32xbf16, #tpu.memory_space<vmem>>, %arg6: memref<1x32xf32, #tpu.memory_space<vmem>>, %arg7: memref<32x32xbf16, #tpu.memory_space<vmem>>, %arg8: memref<1x32xf32, #tpu.memory_space<vmem>>, %arg9: memref<1x32xf32, #tpu.memory_space<vmem>>, %arg10: memref<1x32xf32, #tpu.memory_space<vmem>>, %arg11: memref<1x8x32xbf16, #tpu.memory_space<vmem>>) attributes {dimension_semantics = [#tpu.dimension_semantics<parallel>, #tpu.dimension_semantics<parallel>], iteration_bounds = array<i64: 2, 1>, scalar_prefetch = 0 : i64, scratch_operands = 0 : i64, tpu.core_type = #tpu.core_type<tc>, window_params = [{transform_indices = @transform_0, window_bounds = array<i64: 1, 8, 32>}, {transform_indices = @transform_1, window_bounds = array<i64: 1, 8, 32>}, {transform_indices = @transform_2, window_bounds = array<i64: 1, 8, 32>}, {pipeline_mode = #tpu.pipeline_mode<synchronous>, transform_indices = @transform_3, window_bounds = array<i64: 32, 32>}, {pipeline_mode = #tpu.pipeline_mode<synchronous>, transform_indices = @transform_4, window_bounds = array<i64: 1, 32>}, {pipeline_mode = #tpu.pipeline_mode<synchronous>, transform_indices = @transform_5, window_bounds = array<i64: 32, 32>}, {pipeline_mode = #tpu.pipeline_mode<synchronous>, transform_indices = @transform_6, window_bounds = array<i64: 1, 32>}, {pipeline_mode = #tpu.pipeline_mode<synchronous>, transform_indices = @transform_7, window_bounds = array<i64: 1, 32>}, {pipeline_mode = #tpu.pipeline_mode<synchronous>, transform_indices = @transform_8, window_bounds = array<i64: 1, 32>}, {transform_indices = @transform_9, window_bounds = array<i64: 1, 8, 32>}]} {
    %c0 = arith.constant 0 : index
    %c0_0 = arith.constant 0 : index
    %c0_1 = arith.constant 0 : index
    %0 = vector.load %arg2[%c0, %c0_0, %c0_1] : memref<1x8x32xbf16, #tpu.memory_space<vmem>>, vector<1x8x32xbf16>
    %1 = vector.shape_cast %0 : vector<1x8x32xbf16> to vector<8x32xbf16>
    %c0_2 = arith.constant 0 : index
    %c0_3 = arith.constant 0 : index
    %c0_4 = arith.constant 0 : index
    %2 = vector.load %arg3[%c0_2, %c0_3, %c0_4] : memref<1x8x32xbf16, #tpu.memory_space<vmem>>, vector<1x8x32xbf16>
    %3 = vector.shape_cast %2 : vector<1x8x32xbf16> to vector<8x32xbf16>
    %c0_5 = arith.constant 0 : index
    %c0_6 = arith.constant 0 : index
    %c0_7 = arith.constant 0 : index
    %4 = vector.load %arg4[%c0_5, %c0_6, %c0_7] : memref<1x8x32xbf16, #tpu.memory_space<vmem>>, vector<1x8x32xbf16>
    %5 = vector.shape_cast %4 : vector<1x8x32xbf16> to vector<8x32xbf16>
    %c0_8 = arith.constant 0 : index
    %c0_9 = arith.constant 0 : index
    %6 = vector.load %arg5[%c0_8, %c0_9] : memref<32x32xbf16, #tpu.memory_space<vmem>>, vector<32x32xbf16>
    %cst = arith.constant dense<0.000000e+00> : vector<8x32xf32>
    %7 = tpu.matmul %1, %6, %cst {dimension_numbers = #tpu.dot_dimension_numbers<[1], [0], [0], [1], [0, 0, 1, 1], [], []>} : vector<8x32xbf16>, vector<32x32xbf16>, vector<8x32xf32> -> vector<8x32xf32>
    %c0_10 = arith.constant 0 : index
    %c0_11 = arith.constant 0 : index
    %8 = vector.load %arg6[%c0_10, %c0_11] : memref<1x32xf32, #tpu.memory_space<vmem>>, vector<1x32xf32>
    %9 = vector.broadcast %8 : vector<1x32xf32> to vector<8x32xf32>
    %10 = arith.addf %7, %9 : vector<8x32xf32>
    %11 = arith.truncf %10 : vector<8x32xf32> to vector<8x32xbf16>
    %c8_i32 = arith.constant 8 : i32
    %12 = arith.muli %arg1, %c8_i32 : i32
    %13 = tpu.iota {dimensions = array<i32: 0>} : vector<8x8xi32>
    %14 = vector.broadcast %12 : i32 to vector<8x8xi32>
    %15 = arith.addi %13, %14 : vector<8x8xi32>
    %16 = tpu.iota {dimensions = array<i32: 1>} : vector<8x8xi32>
    %17 = arith.cmpi sle, %16, %15 : vector<8x8xi32>
    %18 = vector.extract_strided_slice %11 {offsets = [0, 0], sizes = [8, 8], strides = [1, 1]} : vector<8x32xbf16> to vector<8x8xbf16>
    %19 = vector.extract_strided_slice %3 {offsets = [0, 0], sizes = [8, 8], strides = [1, 1]} : vector<8x32xbf16> to vector<8x8xbf16>
    %20 = vector.extract_strided_slice %5 {offsets = [0, 0], sizes = [8, 8], strides = [1, 1]} : vector<8x32xbf16> to vector<8x8xbf16>
    %cst_12 = arith.constant dense<0.000000e+00> : vector<8x8xf32>
    %21 = tpu.matmul %18, %19, %cst_12 {dimension_numbers = #tpu.dot_dimension_numbers<[1], [1], [0], [0], [0, 0, 1, 0], [], []>} : vector<8x8xbf16>, vector<8x8xbf16>, vector<8x8xf32> -> vector<8x8xf32>
    %cst_13 = arith.constant 0.353553385 : f32
    %22 = vector.broadcast %cst_13 : f32 to vector<8x8xf32>
    %23 = arith.mulf %21, %22 : vector<8x8xf32>
    %cst_14 = arith.constant -1.000000e+30 : f32
    %24 = vector.broadcast %cst_14 : f32 to vector<8x8xf32>
    %25 = arith.select %17, %23, %24 : vector<8x8xi1>, vector<8x8xf32>
    %cst_15 = arith.constant dense<0xFF800000> : vector<8xf32>
    %26 = vector.multi_reduction <maximumf>, %25, %cst_15 [1] : vector<8x8xf32> to vector<8xf32>
    %27 = vector.shape_cast %26 : vector<8xf32> to vector<8x1xf32>
    %28 = vector.broadcast %27 : vector<8x1xf32> to vector<8x8xf32>
    %29 = arith.subf %25, %28 : vector<8x8xf32>
    %30 = math.exp %29 : vector<8x8xf32>
    %cst_16 = arith.constant dense<0.000000e+00> : vector<8xf32>
    %31 = vector.multi_reduction <add>, %30, %cst_16 [1] : vector<8x8xf32> to vector<8xf32>
    %32 = vector.shape_cast %31 : vector<8xf32> to vector<8x1xf32>
    %33 = vector.broadcast %32 : vector<8x1xf32> to vector<8x8xf32>
    %34 = arith.divf %30, %33 : vector<8x8xf32>
    %35 = arith.truncf %34 : vector<8x8xf32> to vector<8x8xbf16>
    %cst_17 = arith.constant dense<0.000000e+00> : vector<8x8xf32>
    %36 = tpu.matmul %35, %20, %cst_17 {dimension_numbers = #tpu.dot_dimension_numbers<[1], [0], [0], [1], [0, 0, 1, 1], [], []>} : vector<8x8xbf16>, vector<8x8xbf16>, vector<8x8xf32> -> vector<8x8xf32>
    %37 = vector.extract_strided_slice %11 {offsets = [0, 8], sizes = [8, 8], strides = [1, 1]} : vector<8x32xbf16> to vector<8x8xbf16>
    %38 = vector.extract_strided_slice %3 {offsets = [0, 8], sizes = [8, 8], strides = [1, 1]} : vector<8x32xbf16> to vector<8x8xbf16>
    %39 = vector.extract_strided_slice %5 {offsets = [0, 8], sizes = [8, 8], strides = [1, 1]} : vector<8x32xbf16> to vector<8x8xbf16>
    %cst_18 = arith.constant dense<0.000000e+00> : vector<8x8xf32>
    %40 = tpu.matmul %37, %38, %cst_18 {dimension_numbers = #tpu.dot_dimension_numbers<[1], [1], [0], [0], [0, 0, 1, 0], [], []>} : vector<8x8xbf16>, vector<8x8xbf16>, vector<8x8xf32> -> vector<8x8xf32>
    %cst_19 = arith.constant 0.353553385 : f32
    %41 = vector.broadcast %cst_19 : f32 to vector<8x8xf32>
    %42 = arith.mulf %40, %41 : vector<8x8xf32>
    %cst_20 = arith.constant -1.000000e+30 : f32
    %43 = vector.broadcast %cst_20 : f32 to vector<8x8xf32>
    %44 = arith.select %17, %42, %43 : vector<8x8xi1>, vector<8x8xf32>
    %cst_21 = arith.constant dense<0xFF800000> : vector<8xf32>
    %45 = vector.multi_reduction <maximumf>, %44, %cst_21 [1] : vector<8x8xf32> to vector<8xf32>
    %46 = vector.shape_cast %45 : vector<8xf32> to vector<8x1xf32>
    %47 = vector.broadcast %46 : vector<8x1xf32> to vector<8x8xf32>
    %48 = arith.subf %44, %47 : vector<8x8xf32>
    %49 = math.exp %48 : vector<8x8xf32>
    %cst_22 = arith.constant dense<0.000000e+00> : vector<8xf32>
    %50 = vector.multi_reduction <add>, %49, %cst_22 [1] : vector<8x8xf32> to vector<8xf32>
    %51 = vector.shape_cast %50 : vector<8xf32> to vector<8x1xf32>
    %52 = vector.broadcast %51 : vector<8x1xf32> to vector<8x8xf32>
    %53 = arith.divf %49, %52 : vector<8x8xf32>
    %54 = arith.truncf %53 : vector<8x8xf32> to vector<8x8xbf16>
    %cst_23 = arith.constant dense<0.000000e+00> : vector<8x8xf32>
    %55 = tpu.matmul %54, %39, %cst_23 {dimension_numbers = #tpu.dot_dimension_numbers<[1], [0], [0], [1], [0, 0, 1, 1], [], []>} : vector<8x8xbf16>, vector<8x8xbf16>, vector<8x8xf32> -> vector<8x8xf32>
    %56 = vector.extract_strided_slice %11 {offsets = [0, 16], sizes = [8, 8], strides = [1, 1]} : vector<8x32xbf16> to vector<8x8xbf16>
    %57 = vector.extract_strided_slice %3 {offsets = [0, 16], sizes = [8, 8], strides = [1, 1]} : vector<8x32xbf16> to vector<8x8xbf16>
    %58 = vector.extract_strided_slice %5 {offsets = [0, 16], sizes = [8, 8], strides = [1, 1]} : vector<8x32xbf16> to vector<8x8xbf16>
    %cst_24 = arith.constant dense<0.000000e+00> : vector<8x8xf32>
    %59 = tpu.matmul %56, %57, %cst_24 {dimension_numbers = #tpu.dot_dimension_numbers<[1], [1], [0], [0], [0, 0, 1, 0], [], []>} : vector<8x8xbf16>, vector<8x8xbf16>, vector<8x8xf32> -> vector<8x8xf32>
    %cst_25 = arith.constant 0.353553385 : f32
    %60 = vector.broadcast %cst_25 : f32 to vector<8x8xf32>
    %61 = arith.mulf %59, %60 : vector<8x8xf32>
    %cst_26 = arith.constant -1.000000e+30 : f32
    %62 = vector.broadcast %cst_26 : f32 to vector<8x8xf32>
    %63 = arith.select %17, %61, %62 : vector<8x8xi1>, vector<8x8xf32>
    %cst_27 = arith.constant dense<0xFF800000> : vector<8xf32>
    %64 = vector.multi_reduction <maximumf>, %63, %cst_27 [1] : vector<8x8xf32> to vector<8xf32>
    %65 = vector.shape_cast %64 : vector<8xf32> to vector<8x1xf32>
    %66 = vector.broadcast %65 : vector<8x1xf32> to vector<8x8xf32>
    %67 = arith.subf %63, %66 : vector<8x8xf32>
    %68 = math.exp %67 : vector<8x8xf32>
    %cst_28 = arith.constant dense<0.000000e+00> : vector<8xf32>
    %69 = vector.multi_reduction <add>, %68, %cst_28 [1] : vector<8x8xf32> to vector<8xf32>
    %70 = vector.shape_cast %69 : vector<8xf32> to vector<8x1xf32>
    %71 = vector.broadcast %70 : vector<8x1xf32> to vector<8x8xf32>
    %72 = arith.divf %68, %71 : vector<8x8xf32>
    %73 = arith.truncf %72 : vector<8x8xf32> to vector<8x8xbf16>
    %cst_29 = arith.constant dense<0.000000e+00> : vector<8x8xf32>
    %74 = tpu.matmul %73, %58, %cst_29 {dimension_numbers = #tpu.dot_dimension_numbers<[1], [0], [0], [1], [0, 0, 1, 1], [], []>} : vector<8x8xbf16>, vector<8x8xbf16>, vector<8x8xf32> -> vector<8x8xf32>
    %75 = vector.extract_strided_slice %11 {offsets = [0, 24], sizes = [8, 8], strides = [1, 1]} : vector<8x32xbf16> to vector<8x8xbf16>
    %76 = vector.extract_strided_slice %3 {offsets = [0, 24], sizes = [8, 8], strides = [1, 1]} : vector<8x32xbf16> to vector<8x8xbf16>
    %77 = vector.extract_strided_slice %5 {offsets = [0, 24], sizes = [8, 8], strides = [1, 1]} : vector<8x32xbf16> to vector<8x8xbf16>
    %cst_30 = arith.constant dense<0.000000e+00> : vector<8x8xf32>
    %78 = tpu.matmul %75, %76, %cst_30 {dimension_numbers = #tpu.dot_dimension_numbers<[1], [1], [0], [0], [0, 0, 1, 0], [], []>} : vector<8x8xbf16>, vector<8x8xbf16>, vector<8x8xf32> -> vector<8x8xf32>
    %cst_31 = arith.constant 0.353553385 : f32
    %79 = vector.broadcast %cst_31 : f32 to vector<8x8xf32>
    %80 = arith.mulf %78, %79 : vector<8x8xf32>
    %cst_32 = arith.constant -1.000000e+30 : f32
    %81 = vector.broadcast %cst_32 : f32 to vector<8x8xf32>
    %82 = arith.select %17, %80, %81 : vector<8x8xi1>, vector<8x8xf32>
    %cst_33 = arith.constant dense<0xFF800000> : vector<8xf32>
    %83 = vector.multi_reduction <maximumf>, %82, %cst_33 [1] : vector<8x8xf32> to vector<8xf32>
    %84 = vector.shape_cast %83 : vector<8xf32> to vector<8x1xf32>
    %85 = vector.broadcast %84 : vector<8x1xf32> to vector<8x8xf32>
    %86 = arith.subf %82, %85 : vector<8x8xf32>
    %87 = math.exp %86 : vector<8x8xf32>
    %cst_34 = arith.constant dense<0.000000e+00> : vector<8xf32>
    %88 = vector.multi_reduction <add>, %87, %cst_34 [1] : vector<8x8xf32> to vector<8xf32>
    %89 = vector.shape_cast %88 : vector<8xf32> to vector<8x1xf32>
    %90 = vector.broadcast %89 : vector<8x1xf32> to vector<8x8xf32>
    %91 = arith.divf %87, %90 : vector<8x8xf32>
    %92 = arith.truncf %91 : vector<8x8xf32> to vector<8x8xbf16>
    %cst_35 = arith.constant dense<0.000000e+00> : vector<8x8xf32>
    %93 = tpu.matmul %92, %77, %cst_35 {dimension_numbers = #tpu.dot_dimension_numbers<[1], [0], [0], [1], [0, 0, 1, 1], [], []>} : vector<8x8xbf16>, vector<8x8xbf16>, vector<8x8xf32> -> vector<8x8xf32>
    %94 = tpu.concatenate %36, %55, %74, %93 in 1 : vector<8x8xf32>, vector<8x8xf32>, vector<8x8xf32>, vector<8x8xf32> -> vector<8x32xf32>
    %95 = arith.truncf %94 : vector<8x32xf32> to vector<8x32xbf16>
    %c0_36 = arith.constant 0 : index
    %c0_37 = arith.constant 0 : index
    %96 = vector.load %arg7[%c0_36, %c0_37] : memref<32x32xbf16, #tpu.memory_space<vmem>>, vector<32x32xbf16>
    %cst_38 = arith.constant dense<0.000000e+00> : vector<8x32xf32>
    %97 = tpu.matmul %95, %96, %cst_38 {dimension_numbers = #tpu.dot_dimension_numbers<[1], [0], [0], [1], [0, 0, 1, 1], [], []>} : vector<8x32xbf16>, vector<32x32xbf16>, vector<8x32xf32> -> vector<8x32xf32>
    %c0_39 = arith.constant 0 : index
    %c0_40 = arith.constant 0 : index
    %98 = vector.load %arg8[%c0_39, %c0_40] : memref<1x32xf32, #tpu.memory_space<vmem>>, vector<1x32xf32>
    %99 = vector.broadcast %98 : vector<1x32xf32> to vector<8x32xf32>
    %100 = arith.addf %97, %99 : vector<8x32xf32>
    %101 = arith.extf %1 : vector<8x32xbf16> to vector<8x32xf32>
    %102 = arith.addf %101, %100 : vector<8x32xf32>
    %cst_41 = arith.constant dense<0.000000e+00> : vector<8xf32>
    %103 = vector.multi_reduction <add>, %102, %cst_41 [1] : vector<8x32xf32> to vector<8xf32>
    %104 = vector.shape_cast %103 : vector<8xf32> to vector<8x1xf32>
    %cst_42 = arith.constant 3.200000e+01 : f32
    %105 = vector.broadcast %cst_42 : f32 to vector<8x1xf32>
    %106 = arith.divf %104, %105 : vector<8x1xf32>
    %107 = vector.broadcast %106 : vector<8x1xf32> to vector<8x32xf32>
    %108 = arith.subf %102, %107 : vector<8x32xf32>
    %109 = arith.mulf %108, %108 : vector<8x32xf32>
    %cst_43 = arith.constant dense<0.000000e+00> : vector<8xf32>
    %110 = vector.multi_reduction <add>, %109, %cst_43 [1] : vector<8x32xf32> to vector<8xf32>
    %111 = vector.shape_cast %110 : vector<8xf32> to vector<8x1xf32>
    %cst_44 = arith.constant 3.200000e+01 : f32
    %112 = vector.broadcast %cst_44 : f32 to vector<8x1xf32>
    %113 = arith.divf %111, %112 : vector<8x1xf32>
    %114 = vector.broadcast %106 : vector<8x1xf32> to vector<8x32xf32>
    %115 = arith.subf %102, %114 : vector<8x32xf32>
    %cst_45 = arith.constant 9.99999974E-6 : f32
    %116 = vector.broadcast %cst_45 : f32 to vector<8x1xf32>
    %117 = arith.addf %113, %116 : vector<8x1xf32>
    %118 = math.rsqrt %117 : vector<8x1xf32>
    %119 = vector.broadcast %118 : vector<8x1xf32> to vector<8x32xf32>
    %120 = arith.mulf %115, %119 : vector<8x32xf32>
    %c0_46 = arith.constant 0 : index
    %c0_47 = arith.constant 0 : index
    %121 = vector.load %arg9[%c0_46, %c0_47] : memref<1x32xf32, #tpu.memory_space<vmem>>, vector<1x32xf32>
    %122 = vector.broadcast %121 : vector<1x32xf32> to vector<8x32xf32>
    %123 = arith.mulf %120, %122 : vector<8x32xf32>
    %c0_48 = arith.constant 0 : index
    %c0_49 = arith.constant 0 : index
    %124 = vector.load %arg10[%c0_48, %c0_49] : memref<1x32xf32, #tpu.memory_space<vmem>>, vector<1x32xf32>
    %125 = vector.broadcast %124 : vector<1x32xf32> to vector<8x32xf32>
    %126 = arith.addf %123, %125 : vector<8x32xf32>
    %127 = arith.truncf %126 : vector<8x32xf32> to vector<8x32xbf16>
    %c0_50 = arith.constant 0 : index
    %c0_51 = arith.constant 0 : index
    %c0_52 = arith.constant 0 : index
    %128 = vector.load %arg11[%c0_50, %c0_51, %c0_52] : memref<1x8x32xbf16, #tpu.memory_space<vmem>>, vector<1x8x32xbf16>
    %129 = vector.shape_cast %128 : vector<1x8x32xbf16> to vector<8x32xbf16>
    %130 = vector.shape_cast %127 : vector<8x32xbf16> to vector<1x8x32xbf16>
    tpu.vector_store %arg11[%c0_50, %c0_51, %c0_52], %130 {strides = array<i32>} : memref<1x8x32xbf16, #tpu.memory_space<vmem>>, vector<1x8x32xbf16>,
    return
  }
  func.func @transform_0(%arg0: i32, %arg1: i32) -> (i32, i32, i32) {
    %c0_i32 = arith.constant 0 : i32
    %c0_i32_0 = arith.constant 0 : i32
    return %arg0, %arg1, %c0_i32 : i32, i32, i32
  }
  func.func @transform_1(%arg0: i32, %arg1: i32) -> (i32, i32, i32) {
    %c0_i32 = arith.constant 0 : i32
    %c0_i32_0 = arith.constant 0 : i32
    %c0_i32_1 = arith.constant 0 : i32
    return %arg0, %c0_i32, %c0_i32_0 : i32, i32, i32
  }
  func.func @transform_2(%arg0: i32, %arg1: i32) -> (i32, i32, i32) {
    %c0_i32 = arith.constant 0 : i32
    %c0_i32_0 = arith.constant 0 : i32
    %c0_i32_1 = arith.constant 0 : i32
    return %arg0, %c0_i32, %c0_i32_0 : i32, i32, i32
  }
  func.func @transform_3(%arg0: i32, %arg1: i32) -> (i32, i32) {
    %c0_i32 = arith.constant 0 : i32
    %c0_i32_0 = arith.constant 0 : i32
    %c0_i32_1 = arith.constant 0 : i32
    return %c0_i32, %c0_i32_0 : i32, i32
  }
  func.func @transform_4(%arg0: i32, %arg1: i32) -> (i32, i32) {
    %c0_i32 = arith.constant 0 : i32
    %c0_i32_0 = arith.constant 0 : i32
    %c0_i32_1 = arith.constant 0 : i32
    return %c0_i32, %c0_i32_0 : i32, i32
  }
  func.func @transform_5(%arg0: i32, %arg1: i32) -> (i32, i32) {
    %c0_i32 = arith.constant 0 : i32
    %c0_i32_0 = arith.constant 0 : i32
    %c0_i32_1 = arith.constant 0 : i32
    return %c0_i32, %c0_i32_0 : i32, i32
  }
  func.func @transform_6(%arg0: i32, %arg1: i32) -> (i32, i32) {
    %c0_i32 = arith.constant 0 : i32
    %c0_i32_0 = arith.constant 0 : i32
    %c0_i32_1 = arith.constant 0 : i32
    return %c0_i32, %c0_i32_0 : i32, i32
  }
  func.func @transform_7(%arg0: i32, %arg1: i32) -> (i32, i32) {
    %c0_i32 = arith.constant 0 : i32
    %c0_i32_0 = arith.constant 0 : i32
    %c0_i32_1 = arith.constant 0 : i32
    return %c0_i32, %c0_i32_0 : i32, i32
  }
  func.func @transform_8(%arg0: i32, %arg1: i32) -> (i32, i32) {
    %c0_i32 = arith.constant 0 : i32
    %c0_i32_0 = arith.constant 0 : i32
    %c0_i32_1 = arith.constant 0 : i32
    return %c0_i32, %c0_i32_0 : i32, i32
  }
  func.func @transform_9(%arg0: i32, %arg1: i32) -> (i32, i32, i32) {
    %c0_i32 = arith.constant 0 : i32
    %c0_i32_0 = arith.constant 0 : i32
    return %arg0, %arg1, %c0_i32 : i32, i32, i32
  }
}

module attributes {stable_mosaic.version = 11 : i64} {
  func.func @_ffn_block_kernel(%arg0: i32, %arg1: i32, %arg2: memref<16x32xbf16, #tpu.memory_space<vmem>>, %arg3: memref<32x64xbf16, #tpu.memory_space<vmem>>, %arg4: memref<1x64xf32, #tpu.memory_space<vmem>>, %arg5: memref<64x32xbf16, #tpu.memory_space<vmem>>, %arg6: memref<1x32xf32, #tpu.memory_space<vmem>>, %arg7: memref<1x32xf32, #tpu.memory_space<vmem>>, %arg8: memref<1x32xf32, #tpu.memory_space<vmem>>, %arg9: memref<16x32xbf16, #tpu.memory_space<vmem>>, %arg10: memref<16x32xf32, #tpu.memory_space<vmem>>) attributes {dimension_semantics = [#tpu.dimension_semantics<parallel>, #tpu.dimension_semantics<arbitrary>], iteration_bounds = array<i64: 1, 1>, scalar_prefetch = 0 : i64, scratch_operands = 1 : i64, tpu.core_type = #tpu.core_type<tc>, window_params = [{transform_indices = @transform_0, window_bounds = array<i64: 16, 32>}, {transform_indices = @transform_1, window_bounds = array<i64: 32, 64>}, {transform_indices = @transform_2, window_bounds = array<i64: 1, 64>}, {transform_indices = @transform_3, window_bounds = array<i64: 64, 32>}, {pipeline_mode = #tpu.pipeline_mode<synchronous>, transform_indices = @transform_4, window_bounds = array<i64: 1, 32>}, {pipeline_mode = #tpu.pipeline_mode<synchronous>, transform_indices = @transform_5, window_bounds = array<i64: 1, 32>}, {pipeline_mode = #tpu.pipeline_mode<synchronous>, transform_indices = @transform_6, window_bounds = array<i64: 1, 32>}, {transform_indices = @transform_7, window_bounds = array<i64: 16, 32>}]} {
    %c0_i32 = arith.constant 0 : i32
    %0 = arith.cmpi eq, %arg1, %c0_i32 : i32
    %1 = arith.extui %0 : i1 to i32
    %c0_i32_0 = arith.constant 0 : i32
    %2 = arith.cmpi ne, %1, %c0_i32_0 : i32
    scf.if %2 {
      %cst_16 = arith.constant 0.000000e+00 : f32
      %20 = vector.broadcast %cst_16 : f32 to vector<16x32xf32>
      %c0_17 = arith.constant 0 : index
      %c0_18 = arith.constant 0 : index
      %21 = vector.load %arg10[%c0_17, %c0_18] : memref<16x32xf32, #tpu.memory_space<vmem>>, vector<16x32xf32>
      tpu.vector_store %arg10[%c0_17, %c0_18], %20 {strides = array<i32>} : memref<16x32xf32, #tpu.memory_space<vmem>>, vector<16x32xf32>,
    } else {
    }
    %c0 = arith.constant 0 : index
    %c0_1 = arith.constant 0 : index
    %3 = vector.load %arg2[%c0, %c0_1] : memref<16x32xbf16, #tpu.memory_space<vmem>>, vector<16x32xbf16>
    %c0_2 = arith.constant 0 : index
    %c0_3 = arith.constant 0 : index
    %4 = vector.load %arg3[%c0_2, %c0_3] : memref<32x64xbf16, #tpu.memory_space<vmem>>, vector<32x64xbf16>
    %cst = arith.constant dense<0.000000e+00> : vector<16x64xf32>
    %5 = tpu.matmul %3, %4, %cst {dimension_numbers = #tpu.dot_dimension_numbers<[1], [0], [0], [1], [0, 0, 1, 1], [], []>} : vector<16x32xbf16>, vector<32x64xbf16>, vector<16x64xf32> -> vector<16x64xf32>
    %c0_4 = arith.constant 0 : index
    %c0_5 = arith.constant 0 : index
    %6 = vector.load %arg4[%c0_4, %c0_5] : memref<1x64xf32, #tpu.memory_space<vmem>>, vector<1x64xf32>
    %7 = vector.broadcast %6 : vector<1x64xf32> to vector<16x64xf32>
    %8 = arith.addf %5, %7 : vector<16x64xf32>
    %cst_6 = arith.constant 0.000000e+00 : f32
    %9 = vector.broadcast %cst_6 : f32 to vector<16x64xf32>
    %10 = arith.maximumf %8, %9 : vector<16x64xf32>
    %11 = arith.truncf %10 : vector<16x64xf32> to vector<16x64xbf16>
    %c0_7 = arith.constant 0 : index
    %c0_8 = arith.constant 0 : index
    %12 = vector.load %arg10[%c0_7, %c0_8] : memref<16x32xf32, #tpu.memory_space<vmem>>, vector<16x32xf32>
    %c0_9 = arith.constant 0 : index
    %c0_10 = arith.constant 0 : index
    %13 = vector.load %arg5[%c0_9, %c0_10] : memref<64x32xbf16, #tpu.memory_space<vmem>>, vector<64x32xbf16>
    %cst_11 = arith.constant dense<0.000000e+00> : vector<16x32xf32>
    %14 = tpu.matmul %11, %13, %cst_11 {dimension_numbers = #tpu.dot_dimension_numbers<[1], [0], [0], [1], [0, 0, 1, 1], [], []>} : vector<16x64xbf16>, vector<64x32xbf16>, vector<16x32xf32> -> vector<16x32xf32>
    %15 = arith.addf %12, %14 : vector<16x32xf32>
    %c0_12 = arith.constant 0 : index
    %c0_13 = arith.constant 0 : index
    %16 = vector.load %arg10[%c0_12, %c0_13] : memref<16x32xf32, #tpu.memory_space<vmem>>, vector<16x32xf32>
    tpu.vector_store %arg10[%c0_12, %c0_13], %15 {strides = array<i32>} : memref<16x32xf32, #tpu.memory_space<vmem>>, vector<16x32xf32>,
    %c0_i32_14 = arith.constant 0 : i32
    %17 = arith.cmpi eq, %arg1, %c0_i32_14 : i32
    %18 = arith.extui %17 : i1 to i32
    %c0_i32_15 = arith.constant 0 : i32
    %19 = arith.cmpi ne, %18, %c0_i32_15 : i32
    scf.if %19 {
      %c0_16 = arith.constant 0 : index
      %c0_17 = arith.constant 0 : index
      %20 = vector.load %arg10[%c0_16, %c0_17] : memref<16x32xf32, #tpu.memory_space<vmem>>, vector<16x32xf32>
      %c0_18 = arith.constant 0 : index
      %c0_19 = arith.constant 0 : index
      %21 = vector.load %arg6[%c0_18, %c0_19] : memref<1x32xf32, #tpu.memory_space<vmem>>, vector<1x32xf32>
      %22 = vector.broadcast %21 : vector<1x32xf32> to vector<16x32xf32>
      %23 = arith.addf %20, %22 : vector<16x32xf32>
      %24 = arith.extf %3 : vector<16x32xbf16> to vector<16x32xf32>
      %25 = arith.addf %23, %24 : vector<16x32xf32>
      %cst_20 = arith.constant dense<0.000000e+00> : vector<16xf32>
      %26 = vector.multi_reduction <add>, %25, %cst_20 [1] : vector<16x32xf32> to vector<16xf32>
      %27 = vector.shape_cast %26 : vector<16xf32> to vector<16x1xf32>
      %cst_21 = arith.constant 3.200000e+01 : f32
      %28 = vector.broadcast %cst_21 : f32 to vector<16x1xf32>
      %29 = arith.divf %27, %28 : vector<16x1xf32>
      %30 = vector.broadcast %29 : vector<16x1xf32> to vector<16x32xf32>
      %31 = arith.subf %25, %30 : vector<16x32xf32>
      %32 = arith.mulf %31, %31 : vector<16x32xf32>
      %cst_22 = arith.constant dense<0.000000e+00> : vector<16xf32>
      %33 = vector.multi_reduction <add>, %32, %cst_22 [1] : vector<16x32xf32> to vector<16xf32>
      %34 = vector.shape_cast %33 : vector<16xf32> to vector<16x1xf32>
      %cst_23 = arith.constant 3.200000e+01 : f32
      %35 = vector.broadcast %cst_23 : f32 to vector<16x1xf32>
      %36 = arith.divf %34, %35 : vector<16x1xf32>
      %37 = vector.broadcast %29 : vector<16x1xf32> to vector<16x32xf32>
      %38 = arith.subf %25, %37 : vector<16x32xf32>
      %cst_24 = arith.constant 9.99999974E-6 : f32
      %39 = vector.broadcast %cst_24 : f32 to vector<16x1xf32>
      %40 = arith.addf %36, %39 : vector<16x1xf32>
      %41 = math.rsqrt %40 : vector<16x1xf32>
      %42 = vector.broadcast %41 : vector<16x1xf32> to vector<16x32xf32>
      %43 = arith.mulf %38, %42 : vector<16x32xf32>
      %c0_25 = arith.constant 0 : index
      %c0_26 = arith.constant 0 : index
      %44 = vector.load %arg7[%c0_25, %c0_26] : memref<1x32xf32, #tpu.memory_space<vmem>>, vector<1x32xf32>
      %45 = vector.broadcast %44 : vector<1x32xf32> to vector<16x32xf32>
      %46 = arith.mulf %43, %45 : vector<16x32xf32>
      %c0_27 = arith.constant 0 : index
      %c0_28 = arith.constant 0 : index
      %47 = vector.load %arg8[%c0_27, %c0_28] : memref<1x32xf32, #tpu.memory_space<vmem>>, vector<1x32xf32>
      %48 = vector.broadcast %47 : vector<1x32xf32> to vector<16x32xf32>
      %49 = arith.addf %46, %48 : vector<16x32xf32>
      %50 = arith.truncf %49 : vector<16x32xf32> to vector<16x32xbf16>
      %c0_29 = arith.constant 0 : index
      %c0_30 = arith.constant 0 : index
      %51 = vector.load %arg9[%c0_29, %c0_30] : memref<16x32xbf16, #tpu.memory_space<vmem>>, vector<16x32xbf16>
      tpu.vector_store %arg9[%c0_29, %c0_30], %50 {strides = array<i32>} : memref<16x32xbf16, #tpu.memory_space<vmem>>, vector<16x32xbf16>,
    } else {
    }
    return
  }
  func.func @transform_0(%arg0: i32, %arg1: i32) -> (i32, i32) {
    %c0_i32 = arith.constant 0 : i32
    %c0_i32_0 = arith.constant 0 : i32
    return %arg0, %c0_i32 : i32, i32
  }
  func.func @transform_1(%arg0: i32, %arg1: i32) -> (i32, i32) {
    %c0_i32 = arith.constant 0 : i32
    %c0_i32_0 = arith.constant 0 : i32
    return %c0_i32, %arg1 : i32, i32
  }
  func.func @transform_2(%arg0: i32, %arg1: i32) -> (i32, i32) {
    %c0_i32 = arith.constant 0 : i32
    %c0_i32_0 = arith.constant 0 : i32
    return %c0_i32, %arg1 : i32, i32
  }
  func.func @transform_3(%arg0: i32, %arg1: i32) -> (i32, i32) {
    %c0_i32 = arith.constant 0 : i32
    %c0_i32_0 = arith.constant 0 : i32
    return %arg1, %c0_i32 : i32, i32
  }
  func.func @transform_4(%arg0: i32, %arg1: i32) -> (i32, i32) {
    %c0_i32 = arith.constant 0 : i32
    %c0_i32_0 = arith.constant 0 : i32
    %c0_i32_1 = arith.constant 0 : i32
    return %c0_i32, %c0_i32_0 : i32, i32
  }
  func.func @transform_5(%arg0: i32, %arg1: i32) -> (i32, i32) {
    %c0_i32 = arith.constant 0 : i32
    %c0_i32_0 = arith.constant 0 : i32
    %c0_i32_1 = arith.constant 0 : i32
    return %c0_i32, %c0_i32_0 : i32, i32
  }
  func.func @transform_6(%arg0: i32, %arg1: i32) -> (i32, i32) {
    %c0_i32 = arith.constant 0 : i32
    %c0_i32_0 = arith.constant 0 : i32
    %c0_i32_1 = arith.constant 0 : i32
    return %c0_i32, %c0_i32_0 : i32, i32
  }
  func.func @transform_7(%arg0: i32, %arg1: i32) -> (i32, i32) {
    %c0_i32 = arith.constant 0 : i32
    %c0_i32_0 = arith.constant 0 : i32
    return %arg0, %c0_i32 : i32, i32
  }
}

module attributes {stable_mosaic.version = 11 : i64} {
  func.func @_ln_vocab_kernel(%arg0: i32, %arg1: i32, %arg2: memref<16x32xbf16, #tpu.memory_space<vmem>>, %arg3: memref<1x32xf32, #tpu.memory_space<vmem>>, %arg4: memref<1x32xf32, #tpu.memory_space<vmem>>, %arg5: memref<32x40xbf16, #tpu.memory_space<vmem>>, %arg6: memref<1x40xf32, #tpu.memory_space<vmem>>, %arg7: memref<16x40xf32, #tpu.memory_space<vmem>>, %arg8: memref<16x32xbf16, #tpu.memory_space<vmem>>) attributes {dimension_semantics = [#tpu.dimension_semantics<parallel>, #tpu.dimension_semantics<arbitrary>], iteration_bounds = array<i64: 1, 1>, scalar_prefetch = 0 : i64, scratch_operands = 1 : i64, tpu.core_type = #tpu.core_type<tc>, window_params = [{transform_indices = @transform_0, window_bounds = array<i64: 16, 32>}, {pipeline_mode = #tpu.pipeline_mode<synchronous>, transform_indices = @transform_1, window_bounds = array<i64: 1, 32>}, {pipeline_mode = #tpu.pipeline_mode<synchronous>, transform_indices = @transform_2, window_bounds = array<i64: 1, 32>}, {transform_indices = @transform_3, window_bounds = array<i64: 32, 40>}, {transform_indices = @transform_4, window_bounds = array<i64: 1, 40>}, {transform_indices = @transform_5, window_bounds = array<i64: 16, 40>}]} {
    %c0_i32 = arith.constant 0 : i32
    %0 = arith.cmpi eq, %arg1, %c0_i32 : i32
    %1 = arith.extui %0 : i1 to i32
    %c0_i32_0 = arith.constant 0 : i32
    %2 = arith.cmpi ne, %1, %c0_i32_0 : i32
    scf.if %2 {
      %c0_8 = arith.constant 0 : index
      %c0_9 = arith.constant 0 : index
      %10 = vector.load %arg2[%c0_8, %c0_9] : memref<16x32xbf16, #tpu.memory_space<vmem>>, vector<16x32xbf16>
      %11 = arith.extf %10 : vector<16x32xbf16> to vector<16x32xf32>
      %cst_10 = arith.constant dense<0.000000e+00> : vector<16xf32>
      %12 = vector.multi_reduction <add>, %11, %cst_10 [1] : vector<16x32xf32> to vector<16xf32>
      %13 = vector.shape_cast %12 : vector<16xf32> to vector<16x1xf32>
      %cst_11 = arith.constant 3.200000e+01 : f32
      %14 = vector.broadcast %cst_11 : f32 to vector<16x1xf32>
      %15 = arith.divf %13, %14 : vector<16x1xf32>
      %16 = vector.broadcast %15 : vector<16x1xf32> to vector<16x32xf32>
      %17 = arith.subf %11, %16 : vector<16x32xf32>
      %18 = arith.mulf %17, %17 : vector<16x32xf32>
      %cst_12 = arith.constant dense<0.000000e+00> : vector<16xf32>
      %19 = vector.multi_reduction <add>, %18, %cst_12 [1] : vector<16x32xf32> to vector<16xf32>
      %20 = vector.shape_cast %19 : vector<16xf32> to vector<16x1xf32>
      %cst_13 = arith.constant 3.200000e+01 : f32
      %21 = vector.broadcast %cst_13 : f32 to vector<16x1xf32>
      %22 = arith.divf %20, %21 : vector<16x1xf32>
      %23 = vector.broadcast %15 : vector<16x1xf32> to vector<16x32xf32>
      %24 = arith.subf %11, %23 : vector<16x32xf32>
      %cst_14 = arith.constant 9.99999974E-6 : f32
      %25 = vector.broadcast %cst_14 : f32 to vector<16x1xf32>
      %26 = arith.addf %22, %25 : vector<16x1xf32>
      %27 = math.rsqrt %26 : vector<16x1xf32>
      %28 = vector.broadcast %27 : vector<16x1xf32> to vector<16x32xf32>
      %29 = arith.mulf %24, %28 : vector<16x32xf32>
      %c0_15 = arith.constant 0 : index
      %c0_16 = arith.constant 0 : index
      %30 = vector.load %arg3[%c0_15, %c0_16] : memref<1x32xf32, #tpu.memory_space<vmem>>, vector<1x32xf32>
      %31 = vector.broadcast %30 : vector<1x32xf32> to vector<16x32xf32>
      %32 = arith.mulf %29, %31 : vector<16x32xf32>
      %c0_17 = arith.constant 0 : index
      %c0_18 = arith.constant 0 : index
      %33 = vector.load %arg4[%c0_17, %c0_18] : memref<1x32xf32, #tpu.memory_space<vmem>>, vector<1x32xf32>
      %34 = vector.broadcast %33 : vector<1x32xf32> to vector<16x32xf32>
      %35 = arith.addf %32, %34 : vector<16x32xf32>
      %36 = arith.truncf %35 : vector<16x32xf32> to vector<16x32xbf16>
      %c0_19 = arith.constant 0 : index
      %c0_20 = arith.constant 0 : index
      %37 = vector.load %arg8[%c0_19, %c0_20] : memref<16x32xbf16, #tpu.memory_space<vmem>>, vector<16x32xbf16>
      tpu.vector_store %arg8[%c0_19, %c0_20], %36 {strides = array<i32>} : memref<16x32xbf16, #tpu.memory_space<vmem>>, vector<16x32xbf16>,
    } else {
    }
    %c0 = arith.constant 0 : index
    %c0_1 = arith.constant 0 : index
    %3 = vector.load %arg8[%c0, %c0_1] : memref<16x32xbf16, #tpu.memory_space<vmem>>, vector<16x32xbf16>
    %c0_2 = arith.constant 0 : index
    %c0_3 = arith.constant 0 : index
    %4 = vector.load %arg5[%c0_2, %c0_3] : memref<32x40xbf16, #tpu.memory_space<vmem>>, vector<32x40xbf16>
    %cst = arith.constant dense<0.000000e+00> : vector<16x40xf32>
    %5 = tpu.matmul %3, %4, %cst {dimension_numbers = #tpu.dot_dimension_numbers<[1], [0], [0], [1], [0, 0, 1, 1], [], []>} : vector<16x32xbf16>, vector<32x40xbf16>, vector<16x40xf32> -> vector<16x40xf32>
    %c0_4 = arith.constant 0 : index
    %c0_5 = arith.constant 0 : index
    %6 = vector.load %arg6[%c0_4, %c0_5] : memref<1x40xf32, #tpu.memory_space<vmem>>, vector<1x40xf32>
    %7 = vector.broadcast %6 : vector<1x40xf32> to vector<16x40xf32>
    %8 = arith.addf %5, %7 : vector<16x40xf32>
    %c0_6 = arith.constant 0 : index
    %c0_7 = arith.constant 0 : index
    %9 = vector.load %arg7[%c0_6, %c0_7] : memref<16x40xf32, #tpu.memory_space<vmem>>, vector<16x40xf32>
    tpu.vector_store %arg7[%c0_6, %c0_7], %8 {strides = array<i32>} : memref<16x40xf32, #tpu.memory_space<vmem>>, vector<16x40xf32>,
    return
  }
  func.func @transform_0(%arg0: i32, %arg1: i32) -> (i32, i32) {
    %c0_i32 = arith.constant 0 : i32
    %c0_i32_0 = arith.constant 0 : i32
    return %arg0, %c0_i32 : i32, i32
  }
  func.func @transform_1(%arg0: i32, %arg1: i32) -> (i32, i32) {
    %c0_i32 = arith.constant 0 : i32
    %c0_i32_0 = arith.constant 0 : i32
    %c0_i32_1 = arith.constant 0 : i32
    return %c0_i32, %c0_i32_0 : i32, i32
  }
  func.func @transform_2(%arg0: i32, %arg1: i32) -> (i32, i32) {
    %c0_i32 = arith.constant 0 : i32
    %c0_i32_0 = arith.constant 0 : i32
    %c0_i32_1 = arith.constant 0 : i32
    return %c0_i32, %c0_i32_0 : i32, i32
  }
  func.func @transform_3(%arg0: i32, %arg1: i32) -> (i32, i32) {
    %c0_i32 = arith.constant 0 : i32
    %c0_i32_0 = arith.constant 0 : i32
    return %c0_i32, %arg1 : i32, i32
  }
  func.func @transform_4(%arg0: i32, %arg1: i32) -> (i32, i32) {
    %c0_i32 = arith.constant 0 : i32
    %c0_i32_0 = arith.constant 0 : i32
    return %c0_i32, %arg1 : i32, i32
  }
  func.func @transform_5(%arg0: i32, %arg1: i32) -> (i32, i32) {
    %c0_i32 = arith.constant 0 : i32
    return %arg0, %arg1 : i32, i32
  }
}

</mosaic_0001>

<llo_original>
// kernel: transformer_decoder_forward.11
$region0: #{transformer_decoder_forward.11}
  #allocation0 [shape = 'u32[]', space=smem, size = 0x4, offset = 0x4, fixed_abs, tag = 'smem constant byte address 0x4 - core index']
  #allocation1 [shape = 'u32[72,128]{1,0:T(1,128)}', space=vmem, size = 0x9000, scoped, tag = 'internal scratch']
  %s0 = inlined_call_operand.vmem [shape: bf16[16,32], index: 0, kind: input, shape index: {}]
  %s1 = inlined_call_operand.vmem [shape: bf16[32,64], index: 1, kind: input, shape index: {}]
  %s2 = inlined_call_operand.vmem [shape: f32[1,64], index: 2, kind: input, shape index: {}]
  %s3 = inlined_call_operand.vmem [shape: bf16[16,64], index: 3, kind: output, shape index: {}]
  %s4 = sld [smem:[#allocation0]]
  $region22: #{transformer_decoder_forward.11} parent=0
    _
  %s6 = ssub.s32 1, %s4
  %s7 = scalar_select 0, %s6, %s4
  // Predicated region
  $region2: #{transformer_decoder_forward.11} parent=0 // pred_check
    _
  $region3: #{transformer_decoder_forward.11} parent=0 // pred_check_branch
    %9 = sbr.rel (0) target = $region5
  $region4: #{transformer_decoder_forward.11} parent=0 // pred_region
    _
  $region5: #{transformer_decoder_forward.11} parent=0 // pred_fallthru
    _
  // Predicated region
  $region6: #{transformer_decoder_forward.11} parent=0 // pred_check
    _
  $region7: #{transformer_decoder_forward.11} parent=0 // pred_check_branch
    %11 = sbr.rel (0) target = $region9
  $region8: #{transformer_decoder_forward.11} parent=0 // pred_region
    _
  $region9: #{transformer_decoder_forward.11} parent=0 // pred_fallthru
    _
  // Predicated region
  $region10: #{transformer_decoder_forward.11} parent=0 // pred_check
    _
  $region11: #{transformer_decoder_forward.11} parent=0 // pred_check_branch
    %13 = sbr.rel (0) target = $region13
  $region12: #{transformer_decoder_forward.11} parent=0 // pred_region
    _
  $region13: #{transformer_decoder_forward.11} parent=0 // pred_fallthru
    _
  %v15 = vld [vmem:[%s0] sm:$0xf]
  %v16 = vld [vmem:[%s0 + $0x4] sm:$0xf]
  %v17 = vld [vmem:[%s1] sm:$0xf]
  %v18 = vld [vmem:[%s1 + $0x4] sm:$0xf]
  %v19 = vld [vmem:[%s1 + $0x8] sm:$0xf]
  %v20 = vld [vmem:[%s1 + $0xc] sm:$0xf]
  %v21 = vld [vmem:[%s2] sm:$0x1]
  %v23 = vperm.slane %v21, 0
  %v27 = vunpack.c.l.b16 %v15
  %v28 = vunpack.c.l.b16 %v16
  %v29 = vpack.c.b16 %v28, %v27
  %v34 = vunpack.c.l.b16 %v17
  %v35 = vunpack.c.l.b16 %v18
  %v36 = vunpack.c.l.b16 %v19
  %v37 = vunpack.c.l.b16 %v20
  %v38 = vpack.c.b16 %v35, %v34
  %v39 = vpack.c.b16 %v37, %v36
  %vm42 = vcmask 261120
  %v44 = vsel %vm42, %v29, 0
  %46 = vmatpush.bf16.msra.mxu0 0
  %47 = vmatpush.bf16.msra.mxu0 0
  %48 = vmatpush.bf16.msra.mxu0 0
  %49 = vmatpush.bf16.msra.mxu0 0
  %50 = vmatpush.bf16.msra.mxu0 0
  %51 = vmatpush.bf16.msra.mxu0 0
  %52 = vmatpush.bf16.msra.mxu0 %v39
  %53 = vmatpush.bf16.msra.mxu0 %v38
  %54 = vmatmul.bf16.gmra.mxu0 %v44
  %v55 = vpop.f32.mrf.mxu0
  %v56 = vadd.f32 %v23, %v55
  %v57 = vpop.f32.mrf.mxu0
  %v58 = vadd.f32 %v23, %v57
  %59 = vdwg.mxu0
  %v60 = vpack.c.bf16 %v56, %v56
  %v61 = vpack.c.bf16 %v58, %v58
  %vm62 = vcmask 519168
  %63 = vst.msk [vmem:[%s3] sm:$0xf] %vm62, %v60
  %64 = vst.msk [vmem:[%s3 + $0x4] sm:$0xf] %vm62, %v61
  // Predicated region
  $region14: #{transformer_decoder_forward.11} parent=0 // pred_check
    _
  $region15: #{transformer_decoder_forward.11} parent=0 // pred_check_branch
    %66 = sbr.rel (0) target = $region17
  $region16: #{transformer_decoder_forward.11} parent=0 // pred_region
    _
  $region17: #{transformer_decoder_forward.11} parent=0 // pred_fallthru
    _
  // Predicated region
  $region18: #{transformer_decoder_forward.11} parent=0 // pred_check
    _
  $region19: #{transformer_decoder_forward.11} parent=0 // pred_check_branch
    %68 = sbr.rel (0) target = $region21
  $region20: #{transformer_decoder_forward.11} parent=0 // pred_region
    _
  $region21: #{transformer_decoder_forward.11} parent=0 // pred_fallthru
    _

// kernel: transformer_decoder_forward.15
$region0: #{transformer_decoder_forward.15}
  #allocation0 [shape = 'u32[]', space=smem, size = 0x4, offset = 0x4, fixed_abs, tag = 'smem constant byte address 0x4 - core index']
  #allocation1 [shape = 'u32[72,128]{1,0:T(1,128)}', space=vmem, size = 0x9000, scoped, tag = 'internal scratch']
  #allocation2 [shape = 'f32[16,32]{1,0:T(8,128)}', space=vmem, size = 0x2000, scoped, tag = 'scratch operand']
  %s0 = inlined_call_operand.vmem [shape: bf16[16,32], index: 0, kind: input, shape index: {}]
  %s1 = inlined_call_operand.vmem [shape: bf16[32,64], index: 1, kind: input, shape index: {}]
  %s2 = inlined_call_operand.vmem [shape: f32[1,64], index: 2, kind: input, shape index: {}]
  %s3 = inlined_call_operand.vmem [shape: bf16[64,32], index: 3, kind: input, shape index: {}]
  %s4 = inlined_call_operand.vmem [shape: f32[1,32], index: 4, kind: input, shape index: {}]
  %s5 = inlined_call_operand.vmem [shape: f32[1,32], index: 5, kind: input, shape index: {}]
  %s6 = inlined_call_operand.vmem [shape: f32[1,32], index: 6, kind: input, shape index: {}]
  %s7 = inlined_call_operand.vmem [shape: bf16[16,32], index: 7, kind: output, shape index: {}]
  %s8 = sld [smem:[#allocation0]]
  $region46: #{transformer_decoder_forward.15} parent=0
    _
  %s10 = ssub.s32 1, %s8
  %s11 = scalar_select 0, %s10, %s8
  // Predicated region
  $region2: #{transformer_decoder_forward.15} parent=0 // pred_check
    _
  $region3: #{transformer_decoder_forward.15} parent=0 // pred_check_branch
    %13 = sbr.rel (0) target = $region5
  $region4: #{transformer_decoder_forward.15} parent=0 // pred_region
    _
  $region5: #{transformer_decoder_forward.15} parent=0 // pred_fallthru
    _
  // Predicated region
  $region6: #{transformer_decoder_forward.15} parent=0 // pred_check
    _
  $region7: #{transformer_decoder_forward.15} parent=0 // pred_check_branch
    %15 = sbr.rel (0) target = $region9
  $region8: #{transformer_decoder_forward.15} parent=0 // pred_region
    _
  $region9: #{transformer_decoder_forward.15} parent=0 // pred_fallthru
    _
  // Predicated region
  $region10: #{transformer_decoder_forward.15} parent=0 // pred_check
    _
  $region11: #{transformer_decoder_forward.15} parent=0 // pred_check_branch
    %17 = sbr.rel (0) target = $region13
  $region12: #{transformer_decoder_forward.15} parent=0 // pred_region
    _
  $region13: #{transformer_decoder_forward.15} parent=0 // pred_fallthru
    _
  // Predicated region
  $region14: #{transformer_decoder_forward.15} parent=0 // pred_check
    _
  $region15: #{transformer_decoder_forward.15} parent=0 // pred_check_branch
    %19 = sbr.rel (0) target = $region17
  $region16: #{transformer_decoder_forward.15} parent=0 // pred_region
    _
  $region17: #{transformer_decoder_forward.15} parent=0 // pred_fallthru
    _
  // Predicated region
  $region18: #{transformer_decoder_forward.15} parent=0 // pred_check
    _
  $region19: #{transformer_decoder_forward.15} parent=0 // pred_check_branch
    %21 = sbr.rel (0) target = $region21
  $region20: #{transformer_decoder_forward.15} parent=0 // pred_region
    _
  $region21: #{transformer_decoder_forward.15} parent=0 // pred_fallthru
    _
  // Predicated region
  $region22: #{transformer_decoder_forward.15} parent=0 // pred_check
    _
  $region23: #{transformer_decoder_forward.15} parent=0 // pred_check_branch
    %23 = sbr.rel (0) target = $region25
  $region24: #{transformer_decoder_forward.15} parent=0 // pred_region
    _
  $region25: #{transformer_decoder_forward.15} parent=0 // pred_fallthru
    _
  // Predicated region
  $region26: #{transformer_decoder_forward.15} parent=0 // pred_check
    _
  $region27: #{transformer_decoder_forward.15} parent=0 // pred_check_branch
    %25 = sbr.rel (0) target = $region29
  $region28: #{transformer_decoder_forward.15} parent=0 // pred_region
    _
  $region29: #{transformer_decoder_forward.15} parent=0 // pred_fallthru
    _
  %p27 = scmp.eq.s32.totalorder 0, 0
  // Predicated region
  $region30: #{transformer_decoder_forward.15} parent=0 // pred_check
    %p28 = pneg %p27
  $region31: #{transformer_decoder_forward.15} parent=0 // pred_check_branch
    %30 = sbr.rel (%p28) target = $region33
  $region32: #{transformer_decoder_forward.15} parent=0 // pred_region
    %vm31 = vcmask 261120
    %32 = vst.msk [vmem:[#allocation2] sm:$0xff] %vm31, 0.0
    %33 = vst.msk [vmem:[#allocation2 + $0x8] sm:$0xff] %vm31, 0.0
  $region33: #{transformer_decoder_forward.15} parent=0 // pred_fallthru
    _
  %v34 = vld [vmem:[%s0] sm:$0xf]
  %v35 = vld [vmem:[%s0 + $0x4] sm:$0xf]
  %v36 = vld [vmem:[%s1] sm:$0xf]
  %v37 = vld [vmem:[%s1 + $0x4] sm:$0xf]
  %v38 = vld [vmem:[%s1 + $0x8] sm:$0xf]
  %v39 = vld [vmem:[%s1 + $0xc] sm:$0xf]
  %v40 = vld [vmem:[%s2] sm:$0x1]
  %v42 = vperm.slane %v40, 0
  %v46 = vunpack.c.l.b16 %v34
  %v47 = vunpack.c.l.b16 %v35
  %v48 = vpack.c.b16 %v47, %v46
  %v53 = vunpack.c.l.b16 %v36
  %v54 = vunpack.c.l.b16 %v37
  %v55 = vunpack.c.l.b16 %v38
  %v56 = vunpack.c.l.b16 %v39
  %v57 = vpack.c.b16 %v54, %v53
  %v58 = vpack.c.b16 %v56, %v55
  %vm61 = vcmask 261120
  %v63 = vsel %vm61, %v48, 0
  %65 = vmatpush.bf16.msra.mxu0 0
  %66 = vmatpush.bf16.msra.mxu0 0
  %67 = vmatpush.bf16.msra.mxu0 0
  %68 = vmatpush.bf16.msra.mxu0 0
  %69 = vmatpush.bf16.msra.mxu0 0
  %70 = vmatpush.bf16.msra.mxu0 0
  %71 = vmatpush.bf16.msra.mxu0 %v58
  %72 = vmatpush.bf16.msra.mxu0 %v57
  %73 = vmatmul.bf16.gmra.mxu0 %v63
  %v74 = vpop.f32.mrf.mxu0
  %v75 = vadd.f32 %v42, %v74
  %v76 = vpop.f32.mrf.mxu0
  %v77 = vadd.f32 %v42, %v76
  %78 = vdwg.mxu0
  %v79 = vmax.f32 %v75, 0.0
  %v80 = vmax.f32 %v77, 0.0
  %v81 = vpack.c.bf16 %v80, %v79
  %v82 = vld [vmem:[#allocation2] sm:$0xff]
  %v83 = vld [vmem:[#allocation2 + $0x8] sm:$0xff]
  %v84 = vld [vmem:[%s3] sm:$0xf]
  %v85 = vld [vmem:[%s3 + $0x4] sm:$0xf]
  %v86 = vld [vmem:[%s3 + $0x8] sm:$0xf]
  %v87 = vld [vmem:[%s3 + $0xc] sm:$0xf]
  %v88 = vld [vmem:[%s3 + $0x10] sm:$0xf]
  %v89 = vld [vmem:[%s3 + $0x14] sm:$0xf]
  %v90 = vld [vmem:[%s3 + $0x18] sm:$0xf]
  %v91 = vld [vmem:[%s3 + $0x1c] sm:$0xf]
  %v100 = vunpack.c.l.b16 %v84
  %v101 = vunpack.c.l.b16 %v85
  %v102 = vunpack.c.l.b16 %v86
  %v103 = vunpack.c.l.b16 %v87
  %v104 = vunpack.c.l.b16 %v88
  %v105 = vunpack.c.l.b16 %v89
  %v106 = vunpack.c.l.b16 %v90
  %v107 = vunpack.c.l.b16 %v91
  %v108 = vpack.c.b16 %v101, %v100
  %v109 = vpack.c.b16 %v103, %v102
  %v110 = vpack.c.b16 %v105, %v104
  %v111 = vpack.c.b16 %v107, %v106
  %vm116 = vcmask 523264
  %v118 = vsel %vm116, %v81, 0
  %120 = vmatpush.bf16.msra.mxu0 0
  %121 = vmatpush.bf16.msra.mxu0 0
  %122 = vmatpush.bf16.msra.mxu0 0
  %123 = vmatpush.bf16.msra.mxu0 0
  %124 = vmatpush.bf16.msra.mxu0 %v111
  %125 = vmatpush.bf16.msra.mxu0 %v110
  %126 = vmatpush.bf16.msra.mxu0 %v109
  %127 = vmatpush.bf16.msra.mxu0 %v108
  %128 = vmatmul.bf16.gmra.mxu0 %v118
  %v129 = vpop.f32.mrf.mxu0
  %v130 = vadd.f32 0.0, %v129
  %v131 = vpop.f32.mrf.mxu0
  %v132 = vadd.f32 0.0, %v131
  %133 = vdwg.mxu0
  %v134 = vadd.f32 %v82, %v130
  %v135 = vadd.f32 %v83, %v132
  %136 = vst.msk [vmem:[#allocation2] sm:$0xff] %vm61, %v134
  %137 = vst.msk [vmem:[#allocation2 + $0x8] sm:$0xff] %vm61, %v135
  // Predicated region
  $region34: #{transformer_decoder_forward.15} parent=0 // pred_check
    %p138 = pneg %p27
  $region35: #{transformer_decoder_forward.15} parent=0 // pred_check_branch
    %140 = sbr.rel (%p138) target = $region37
  $region36: #{transformer_decoder_forward.15} parent=0 // pred_region
    %v141 = vld [vmem:[#allocation2] sm:$0xff]
    %v142 = vld [vmem:[#allocation2 + $0x8] sm:$0xff]
    %v143 = vld [vmem:[%s4] sm:$0x1]
    %v145 = vperm.slane %v143, 0
    %v147 = vadd.f32 %v141, %v145
    %v148 = vadd.f32 %v142, %v145
    %v149 = vunpack.c.l.bf16 %v34
    %v150 = vunpack.c.l.bf16 %v35
    %v151 = vadd.f32 %v147, %v149
    %v152 = vadd.f32 %v148, %v150
    %v153 = vsel %vm61, %v151, 0.0
    %154 = vadd.xlane.f32.xlu0 %v153
    %v155 = vpop.xlane.xlu0 %154
    %v156 = vsel %vm61, %v152, 0.0
    %157 = vadd.xlane.f32.xlu0 %v156
    %v158 = vpop.xlane.xlu0 %157
    %v159 = vrcp.pop 32.0
    %v160 = vmul.f32 32.0, %v159
    %v161 = vsub.f32 1.0, %v160
    %v162 = vmul.f32 %v159, %v161
    %v163 = vadd.f32 %v159, %v162
    %vm164 = vweird.f32 %v159
    %v165 = vsel %vm164, %v159, %v163
    %v166 = vmul.f32 %v155, %v165
    %v167 = vmul.f32 %v158, %v165
    %v168 = vsub.f32 %v151, %v166
    %v169 = vsub.f32 %v152, %v167
    %v170 = vmul.f32 %v168, %v168
    %v171 = vmul.f32 %v169, %v169
    %v172 = vsel %vm61, %v170, 0.0
    %173 = vadd.xlane.f32.xlu0 %v172
    %v174 = vpop.xlane.xlu0 %173
    %v175 = vsel %vm61, %v171, 0.0
    %176 = vadd.xlane.f32.xlu0 %v175
    %v177 = vpop.xlane.xlu0 %176
    %v178 = vmul.f32 %v174, %v165
    %v179 = vmul.f32 %v177, %v165
    %v180 = vadd.f32 %v178, 1e-05
    %v181 = vadd.f32 %v179, 1e-05
    %v182 = vrsqrt.pop %v180
    %v183 = vmul.f32 %v182, %v180
    %v184 = vmul.f32 %v183, %v182
    %v185 = vmul.f32 0.5, %v184
    %v186 = vsub.f32 1.5, %v185
    %v187 = vmul.f32 %v182, %v186
    %vm188 = vweird.f32 %v180
    %vm189 = vweird.f32 %v182
    %vm190 = vmor %vm188, %vm189
    %v191 = vsel %vm190, %v182, %v187
    %v192 = vrsqrt.pop %v181
    %v193 = vmul.f32 %v192, %v181
    %v194 = vmul.f32 %v193, %v192
    %v195 = vmul.f32 0.5, %v194
    %v196 = vsub.f32 1.5, %v195
    %v197 = vmul.f32 %v192, %v196
    %vm198 = vweird.f32 %v181
    %vm199 = vweird.f32 %v192
    %vm200 = vmor %vm198, %vm199
    %v201 = vsel %vm200, %v192, %v197
    %v202 = vmul.f32 %v168, %v191
    %v203 = vmul.f32 %v169, %v201
    %v204 = vld [vmem:[%s5] sm:$0x1]
    %v206 = vperm.slane %v204, 0
    %v208 = vmul.f32 %v202, %v206
    %v209 = vmul.f32 %v203, %v206
    %v210 = vld [vmem:[%s6] sm:$0x1]
    %v212 = vperm.slane %v210, 0
    %v214 = vadd.f32 %v208, %v212
    %v215 = vadd.f32 %v209, %v212
    %v216 = vpack.c.bf16 %v214, %v214
    %v217 = vpack.c.bf16 %v215, %v215
    %vm218 = vcmask 257024
    %219 = vst.msk [vmem:[%s7] sm:$0xf] %vm218, %v216
    %220 = vst.msk [vmem:[%s7 + $0x4] sm:$0xf] %vm218, %v217
  $region37: #{transformer_decoder_forward.15} parent=0 // pred_fallthru
    _
  // Predicated region
  $region38: #{transformer_decoder_forward.15} parent=0 // pred_check
    _
  $region39: #{transformer_decoder_forward.15} parent=0 // pred_check_branch
    %222 = sbr.rel (0) target = $region41
  $region40: #{transformer_decoder_forward.15} parent=0 // pred_region
    _
  $region41: #{transformer_decoder_forward.15} parent=0 // pred_fallthru
    _
  // Predicated region
  $region42: #{transformer_decoder_forward.15} parent=0 // pred_check
    _
  $region43: #{transformer_decoder_forward.15} parent=0 // pred_check_branch
    %224 = sbr.rel (0) target = $region45
  $region44: #{transformer_decoder_forward.15} parent=0 // pred_region
    _
  $region45: #{transformer_decoder_forward.15} parent=0 // pred_fallthru
    _

// kernel: transformer_decoder_forward.14
$region0: #{transformer_decoder_forward.14}
  #allocation0 [shape = 'u32[]', space=smem, size = 0x4, offset = 0x4, fixed_abs, tag = 'smem constant byte address 0x4 - core index']
  #allocation1 [shape = 'u32[72,128]{1,0:T(1,128)}', space=vmem, size = 0x9000, scoped, tag = 'internal scratch']
  %s0 = inlined_call_operand.vmem [shape: bf16[2,8,32], index: 0, kind: input, shape index: {}]
  %s1 = inlined_call_operand.vmem [shape: bf16[2,8,32], index: 1, kind: input, shape index: {}]
  %s2 = inlined_call_operand.vmem [shape: bf16[2,8,32], index: 2, kind: input, shape index: {}]
  %s3 = inlined_call_operand.vmem [shape: f32[2,1,8], index: 3, kind: input, shape index: {}]
  %s4 = inlined_call_operand.vmem [shape: bf16[32,32], index: 4, kind: input, shape index: {}]
  %s5 = inlined_call_operand.vmem [shape: f32[1,32], index: 5, kind: input, shape index: {}]
  %s6 = inlined_call_operand.vmem [shape: bf16[32,32], index: 6, kind: input, shape index: {}]
  %s7 = inlined_call_operand.vmem [shape: f32[1,32], index: 7, kind: input, shape index: {}]
  %s8 = inlined_call_operand.vmem [shape: f32[1,32], index: 8, kind: input, shape index: {}]
  %s9 = inlined_call_operand.vmem [shape: f32[1,32], index: 9, kind: input, shape index: {}]
  %s10 = inlined_call_operand.vmem [shape: bf16[2,8,32], index: 10, kind: output, shape index: {}]
  %s11 = sld [smem:[#allocation0]]
  $region73: #{transformer_decoder_forward.14} parent=0
    _
  %s13 = ssub.s32 1, %s11
  %s14 = scalar_select 0, %s13, %s11
  loop: start=0, step=1, limit=4
  $region2: #{transformer_decoder_forward.14} parent=0 // loop_pre_header
    _
  $region3: #{transformer_decoder_forward.14} parent=0 // loop_header
    %s16 = sphi 0, %s20
    %p17 = scmp.ge.s32.totalorder %s16, 4
    %s23 = sphi 0, %s35
    %s24 = sphi 0, %s31
    %s25 = sphi 0, %s23
    %s26 = sphi 0, %s24
    %s27 = sphi 0, %s25
    %s28 = sphi 0, %s26
    %s40 = sphi 0, %s42
    %s43 = sphi 0, %s40
    %s44 = sphi 0, %s43
    %s60 = sphi 0, %s44
    %s66 = sphi 0, %s68
    %s69 = sphi 0, %s66
    %s70 = sphi 0, %s69
    %s86 = sphi 0, %s70
    %s92 = sphi 0, %s94
    %s95 = sphi 0, %s92
    %s96 = sphi 0, %s95
    %s112 = sphi 0, %s96
    %s118 = sphi 0, %s120
    %s121 = sphi 0, %s118
    %s122 = sphi 0, %s121
    %s138 = sphi 0, %s122
    %s142 = sphi 0, %s142
    %s144 = sphi 0, %s142
    %s145 = sphi 0, %s144
    %s159 = sphi 0, %s145
    %s163 = sphi 0, %s163
    %s165 = sphi 0, %s163
    %s166 = sphi 0, %s165
    %s180 = sphi 0, %s166
    %s184 = sphi 0, %s184
    %s186 = sphi 0, %s184
    %s187 = sphi 0, %s186
    %s201 = sphi 0, %s187
    %s205 = sphi 0, %s205
    %s207 = sphi 0, %s205
    %s208 = sphi 0, %s207
    %s222 = sphi 0, %s208
    %s226 = sphi 0, %s226
    %s228 = sphi 0, %s226
    %s229 = sphi 0, %s228
    %s243 = sphi 0, %s229
    %s247 = sphi 0, %s247
    %s249 = sphi 0, %s247
    %s250 = sphi 0, %s249
    %s264 = sphi 0, %s250
    %s272 = sphi 0, %s274
    %s275 = sphi 0, %s272
    %s276 = sphi 0, %s275
    %s292 = sphi 0, %s276
  $region4: #{transformer_decoder_forward.14} parent=0 // loop_header_branch
    %19 = sbr.rel (%p17) target = $region8
  $region5: #{transformer_decoder_forward.14} parent=0 // loop_body
    %s21 = ssub.s32 %s16, 1
    %s22 = ssub.s32 %s16, 2
    %s29 = sadd.s32 1, %s24
    %p30 = scmp.ge.s32.totalorder %s29, 1
    %s31 = scalar_select %p30, 0, %s29
    %s32 = sadd.s32 1, %s23
    %s33 = scalar_select %p30, %s32, %s23
    %p34 = scmp.ge.s32.totalorder %s33, 2
    %s35 = scalar_select %p34, 0, %s33
    %s36 = ssub.s32 %s23, %s35
    %s37 = ssub.s32 %s24, %s31
    %s38 = sor.u32 %s36, %s37
    %p39 = scmp.eq.s32.totalorder %s38, 0
    %s41 = sadd.s32 %s40, 1
    %s42 = scalar_select %p39, %s40, %s41
    %p45 = pneg %p39
    %p46 = scmp.eq.s32.totalorder %s16, 1
    %p47 = por %p45, %p46
    %p48 = scmp.ne.s32.totalorder %s40, %s43
    %p49 = scmp.eq.s32.totalorder %s16, 0
    %p50 = por %p48, %p49
    %p51 = scmp.ne.s32.totalorder %s40, %s43
    %p52 = scmp.eq.s32.totalorder %s21, 1
    %p53 = por %p51, %p52
    %p54 = scmp.ne.s32.totalorder %s43, %s44
    %p55 = scmp.eq.s32.totalorder %s21, 0
    %p56 = por %p54, %p55
    %p57 = scmp.ne.s32.totalorder %s43, %s44
    %p58 = scmp.eq.s32.totalorder %s22, 1
    %p59 = por %p57, %p58
    %p61 = scmp.ne.s32.totalorder %s44, %s60
    %p62 = scmp.eq.s32.totalorder %s22, 0
    %p63 = por %p61, %p62
    %s64 = ssub.s32 %s23, %s35
    %p65 = scmp.eq.s32.totalorder %s64, 0
    %s67 = sadd.s32 %s66, 1
    %s68 = scalar_select %p65, %s66, %s67
    %p71 = pneg %p65
    %p72 = scmp.eq.s32.totalorder %s16, 1
    %p73 = por %p71, %p72
    %p74 = scmp.ne.s32.totalorder %s66, %s69
    %p75 = scmp.eq.s32.totalorder %s16, 0
    %p76 = por %p74, %p75
    %p77 = scmp.ne.s32.totalorder %s66, %s69
    %p78 = scmp.eq.s32.totalorder %s21, 1
    %p79 = por %p77, %p78
    %p80 = scmp.ne.s32.totalorder %s69, %s70
    %p81 = scmp.eq.s32.totalorder %s21, 0
    %p82 = por %p80, %p81
    %p83 = scmp.ne.s32.totalorder %s69, %s70
    %p84 = scmp.eq.s32.totalorder %s22, 1
    %p85 = por %p83, %p84
    %p87 = scmp.ne.s32.totalorder %s70, %s86
    %p88 = scmp.eq.s32.totalorder %s22, 0
    %p89 = por %p87, %p88
    %s90 = ssub.s32 %s23, %s35
    %p91 = scmp.eq.s32.totalorder %s90, 0
    %s93 = sadd.s32 %s92, 1
    %s94 = scalar_select %p91, %s92, %s93
    %p97 = pneg %p91
    %p98 = scmp.eq.s32.totalorder %s16, 1
    %p99 = por %p97, %p98
    %p100 = scmp.ne.s32.totalorder %s92, %s95
    %p101 = scmp.eq.s32.totalorder %s16, 0
    %p102 = por %p100, %p101
    %p103 = scmp.ne.s32.totalorder %s92, %s95
    %p104 = scmp.eq.s32.totalorder %s21, 1
    %p105 = por %p103, %p104
    %p106 = scmp.ne.s32.totalorder %s95, %s96
    %p107 = scmp.eq.s32.totalorder %s21, 0
    %p108 = por %p106, %p107
    %p109 = scmp.ne.s32.totalorder %s95, %s96
    %p110 = scmp.eq.s32.totalorder %s22, 1
    %p111 = por %p109, %p110
    %p113 = scmp.ne.s32.totalorder %s96, %s112
    %p114 = scmp.eq.s32.totalorder %s22, 0
    %p115 = por %p113, %p114
    %s116 = ssub.s32 %s23, %s35
    %p117 = scmp.eq.s32.totalorder %s116, 0
    %s119 = sadd.s32 %s118, 1
    %s120 = scalar_select %p117, %s118, %s119
    %p123 = pneg %p117
    %p124 = scmp.eq.s32.totalorder %s16, 1
    %p125 = por %p123, %p124
    %p126 = scmp.ne.s32.totalorder %s118, %s121
    %p127 = scmp.eq.s32.totalorder %s16, 0
    %p128 = por %p126, %p127
    %p129 = scmp.ne.s32.totalorder %s118, %s121
    %p130 = scmp.eq.s32.totalorder %s21, 1
    %p131 = por %p129, %p130
    %p132 = scmp.ne.s32.totalorder %s121, %s122
    %p133 = scmp.eq.s32.totalorder %s21, 0
    %p134 = por %p132, %p133
    %p135 = scmp.ne.s32.totalorder %s121, %s122
    %p136 = scmp.eq.s32.totalorder %s22, 1
    %p137 = por %p135, %p136
    %p139 = scmp.ne.s32.totalorder %s122, %s138
    %p140 = scmp.eq.s32.totalorder %s22, 0
    %p141 = por %p139, %p140
    %s143 = sadd.s32 %s142, 1
    %p146 = scmp.eq.s32.totalorder %s16, 1
    %p147 = scmp.ne.s32.totalorder %s142, %s144
    %p148 = scmp.eq.s32.totalorder %s16, 0
    %p149 = por %p147, %p148
    %p150 = scmp.ne.s32.totalorder %s142, %s144
    %p151 = scmp.eq.s32.totalorder %s21, 1
    %p152 = por %p150, %p151
    %p153 = scmp.ne.s32.totalorder %s144, %s145
    %p154 = scmp.eq.s32.totalorder %s21, 0
    %p155 = por %p153, %p154
    %p156 = scmp.ne.s32.totalorder %s144, %s145
    %p157 = scmp.eq.s32.totalorder %s22, 1
    %p158 = por %p156, %p157
    %p160 = scmp.ne.s32.totalorder %s145, %s159
    %p161 = scmp.eq.s32.totalorder %s22, 0
    %p162 = por %p160, %p161
    %s164 = sadd.s32 %s163, 1
    %p167 = scmp.eq.s32.totalorder %s16, 1
    %p168 = scmp.ne.s32.totalorder %s163, %s165
    %p169 = scmp.eq.s32.totalorder %s16, 0
    %p170 = por %p168, %p169
    %p171 = scmp.ne.s32.totalorder %s163, %s165
    %p172 = scmp.eq.s32.totalorder %s21, 1
    %p173 = por %p171, %p172
    %p174 = scmp.ne.s32.totalorder %s165, %s166
    %p175 = scmp.eq.s32.totalorder %s21, 0
    %p176 = por %p174, %p175
    %p177 = scmp.ne.s32.totalorder %s165, %s166
    %p178 = scmp.eq.s32.totalorder %s22, 1
    %p179 = por %p177, %p178
    %p181 = scmp.ne.s32.totalorder %s166, %s180
    %p182 = scmp.eq.s32.totalorder %s22, 0
    %p183 = por %p181, %p182
    %s185 = sadd.s32 %s184, 1
    %p188 = scmp.eq.s32.totalorder %s16, 1
    %p189 = scmp.ne.s32.totalorder %s184, %s186
    %p190 = scmp.eq.s32.totalorder %s16, 0
    %p191 = por %p189, %p190
    %p192 = scmp.ne.s32.totalorder %s184, %s186
    %p193 = scmp.eq.s32.totalorder %s21, 1
    %p194 = por %p192, %p193
    %p195 = scmp.ne.s32.totalorder %s186, %s187
    %p196 = scmp.eq.s32.totalorder %s21, 0
    %p197 = por %p195, %p196
    %p198 = scmp.ne.s32.totalorder %s186, %s187
    %p199 = scmp.eq.s32.totalorder %s22, 1
    %p200 = por %p198, %p199
    %p202 = scmp.ne.s32.totalorder %s187, %s201
    %p203 = scmp.eq.s32.totalorder %s22, 0
    %p204 = por %p202, %p203
    %s206 = sadd.s32 %s205, 1
    %p209 = scmp.eq.s32.totalorder %s16, 1
    %p210 = scmp.ne.s32.totalorder %s205, %s207
    %p211 = scmp.eq.s32.totalorder %s16, 0
    %p212 = por %p210, %p211
    %p213 = scmp.ne.s32.totalorder %s205, %s207
    %p214 = scmp.eq.s32.totalorder %s21, 1
    %p215 = por %p213, %p214
    %p216 = scmp.ne.s32.totalorder %s207, %s208
    %p217 = scmp.eq.s32.totalorder %s21, 0
    %p218 = por %p216, %p217
    %p219 = scmp.ne.s32.totalorder %s207, %s208
    %p220 = scmp.eq.s32.totalorder %s22, 1
    %p221 = por %p219, %p220
    %p223 = scmp.ne.s32.totalorder %s208, %s222
    %p224 = scmp.eq.s32.totalorder %s22, 0
    %p225 = por %p223, %p224
    %s227 = sadd.s32 %s226, 1
    %p230 = scmp.eq.s32.totalorder %s16, 1
    %p231 = scmp.ne.s32.totalorder %s226, %s228
    %p232 = scmp.eq.s32.totalorder %s16, 0
    %p233 = por %p231, %p232
    %p234 = scmp.ne.s32.totalorder %s226, %s228
    %p235 = scmp.eq.s32.totalorder %s21, 1
    %p236 = por %p234, %p235
    %p237 = scmp.ne.s32.totalorder %s228, %s229
    %p238 = scmp.eq.s32.totalorder %s21, 0
    %p239 = por %p237, %p238
    %p240 = scmp.ne.s32.totalorder %s228, %s229
    %p241 = scmp.eq.s32.totalorder %s22, 1
    %p242 = por %p240, %p241
    %p244 = scmp.ne.s32.totalorder %s229, %s243
    %p245 = scmp.eq.s32.totalorder %s22, 0
    %p246 = por %p244, %p245
    %s248 = sadd.s32 %s247, 1
    %p251 = scmp.eq.s32.totalorder %s16, 1
    %p252 = scmp.ne.s32.totalorder %s247, %s249
    %p253 = scmp.eq.s32.totalorder %s16, 0
    %p254 = por %p252, %p253
    %p255 = scmp.ne.s32.totalorder %s247, %s249
    %p256 = scmp.eq.s32.totalorder %s21, 1
    %p257 = por %p255, %p256
    %p258 = scmp.ne.s32.totalorder %s249, %s250
    %p259 = scmp.eq.s32.totalorder %s21, 0
    %p260 = por %p258, %p259
    %p261 = scmp.ne.s32.totalorder %s249, %s250
    %p262 = scmp.eq.s32.totalorder %s22, 1
    %p263 = por %p261, %p262
    %p265 = scmp.ne.s32.totalorder %s250, %s264
    %p266 = scmp.eq.s32.totalorder %s22, 0
    %p267 = por %p265, %p266
    %s268 = ssub.s32 %s23, %s35
    %s269 = ssub.s32 %s24, %s31
    %s270 = sor.u32 %s268, %s269
    %p271 = scmp.eq.s32.totalorder %s270, 0
    %s273 = sadd.s32 %s272, 1
    %s274 = scalar_select %p271, %s272, %s273
    %p277 = pneg %p271
    %p278 = scmp.eq.s32.totalorder %s16, 1
    %p279 = por %p277, %p278
    %p280 = scmp.ne.s32.totalorder %s272, %s275
    %p281 = scmp.eq.s32.totalorder %s16, 0
    %p282 = por %p280, %p281
    %p283 = scmp.ne.s32.totalorder %s272, %s275
    %p284 = scmp.eq.s32.totalorder %s21, 1
    %p285 = por %p283, %p284
    %p286 = scmp.ne.s32.totalorder %s275, %s276
    %p287 = scmp.eq.s32.totalorder %s21, 0
    %p288 = por %p286, %p287
    %p289 = scmp.ne.s32.totalorder %s275, %s276
    %p290 = scmp.eq.s32.totalorder %s22, 1
    %p291 = por %p289, %p290
    %p293 = scmp.ne.s32.totalorder %s276, %s292
    %p294 = scmp.eq.s32.totalorder %s22, 0
    %p295 = por %p293, %p294
    %p296 = scmp.le.s32.totalorder 1, %s16
    %p297 = scmp.lt.s32.totalorder %s16, 3
    %p298 = pnand %p296, %p297
    %p299 = pneg %p298
    // Predicated region
    $region9: #{transformer_decoder_forward.14} parent=5 // pred_check
      _
    $region10: #{transformer_decoder_forward.14} parent=5 // pred_check_branch
      %301 = sbr.rel (%p298) target = $region12
    $region11: #{transformer_decoder_forward.14} parent=5 // pred_region
      %s302 = ssub.s32 %s16, 1
      // Predicated region
      $region13: #{transformer_decoder_forward.14} parent=11 // pred_check
        %p303 = pneg %p155
      $region14: #{transformer_decoder_forward.14} parent=11 // pred_check_branch
        %305 = sbr.rel (%p303) target = $region16
      $region15: #{transformer_decoder_forward.14} parent=11 // pred_region
        _
      $region16: #{transformer_decoder_forward.14} parent=11 // pred_fallthru
        _
      // Predicated region
      $region17: #{transformer_decoder_forward.14} parent=11 // pred_check
        %p306 = pneg %p176
      $region18: #{transformer_decoder_forward.14} parent=11 // pred_check_branch
        %308 = sbr.rel (%p306) target = $region20
      $region19: #{transformer_decoder_forward.14} parent=11 // pred_region
        _
      $region20: #{transformer_decoder_forward.14} parent=11 // pred_fallthru
        _
      // Predicated region
      $region21: #{transformer_decoder_forward.14} parent=11 // pred_check
        %p309 = pneg %p197
      $region22: #{transformer_decoder_forward.14} parent=11 // pred_check_branch
        %311 = sbr.rel (%p309) target = $region24
      $region23: #{transformer_decoder_forward.14} parent=11 // pred_region
        _
      $region24: #{transformer_decoder_forward.14} parent=11 // pred_fallthru
        _
      // Predicated region
      $region25: #{transformer_decoder_forward.14} parent=11 // pred_check
        %p312 = pneg %p218
      $region26: #{transformer_decoder_forward.14} parent=11 // pred_check_branch
        %314 = sbr.rel (%p312) target = $region28
      $region27: #{transformer_decoder_forward.14} parent=11 // pred_region
        _
      $region28: #{transformer_decoder_forward.14} parent=11 // pred_fallthru
        _
      // Predicated region
      $region29: #{transformer_decoder_forward.14} parent=11 // pred_check
        %p315 = pneg %p239
      $region30: #{transformer_decoder_forward.14} parent=11 // pred_check_branch
        %317 = sbr.rel (%p315) target = $region32
      $region31: #{transformer_decoder_forward.14} parent=11 // pred_region
        _
      $region32: #{transformer_decoder_forward.14} parent=11 // pred_fallthru
        _
      // Predicated region
      $region33: #{transformer_decoder_forward.14} parent=11 // pred_check
        %p318 = pneg %p260
      $region34: #{transformer_decoder_forward.14} parent=11 // pred_check_branch
        %320 = sbr.rel (%p318) target = $region36
      $region35: #{transformer_decoder_forward.14} parent=11 // pred_region
        _
      $region36: #{transformer_decoder_forward.14} parent=11 // pred_fallthru
        _
    $region12: #{transformer_decoder_forward.14} parent=5 // pred_fallthru
      _
    %p321 = scmp.lt.s32.totalorder %s16, 2
    // Predicated region
    $region37: #{transformer_decoder_forward.14} parent=5 // pred_check
      %p322 = pneg %p321
    $region38: #{transformer_decoder_forward.14} parent=5 // pred_check_branch
      %324 = sbr.rel (%p322) target = $region40
    $region39: #{transformer_decoder_forward.14} parent=5 // pred_region
      // Predicated region
      $region41: #{transformer_decoder_forward.14} parent=39 // pred_check
        %p325 = pneg %p50
      $region42: #{transformer_decoder_forward.14} parent=39 // pred_check_branch
        %327 = sbr.rel (%p325) target = $region44
      $region43: #{transformer_decoder_forward.14} parent=39 // pred_region
        %p328 = scmp.lt.s32.totalorder %s23, 1
        %s329 = scalar_select %p328, %s23, 1
        %p330 = scmp.lt.s32.totalorder %s24, 0
        %s331 = scalar_select %p330, %s24, 0
        %s332 = sadd.s32 %s331, %s329
        %s333 = smul.addr %s332, 4
        %s334 = scalar_lea.vmem %s0, %s333
      $region44: #{transformer_decoder_forward.14} parent=39 // pred_fallthru
        _
      // Predicated region
      $region45: #{transformer_decoder_forward.14} parent=39 // pred_check
        %p335 = pneg %p76
      $region46: #{transformer_decoder_forward.14} parent=39 // pred_check_branch
        %337 = sbr.rel (%p335) target = $region48
      $region47: #{transformer_decoder_forward.14} parent=39 // pred_region
        %p338 = scmp.lt.s32.totalorder %s23, 1
        %s339 = scalar_select %p338, %s23, 1
        %s340 = smul.addr %s339, 4
        %s341 = scalar_lea.vmem %s1, %s340
      $region48: #{transformer_decoder_forward.14} parent=39 // pred_fallthru
        _
      // Predicated region
      $region49: #{transformer_decoder_forward.14} parent=39 // pred_check
        %p342 = pneg %p102
      $region50: #{transformer_decoder_forward.14} parent=39 // pred_check_branch
        %344 = sbr.rel (%p342) target = $region52
      $region51: #{transformer_decoder_forward.14} parent=39 // pred_region
        %p345 = scmp.lt.s32.totalorder %s23, 1
        %s346 = scalar_select %p345, %s23, 1
        %s347 = smul.addr %s346, 4
        %s348 = scalar_lea.vmem %s2, %s347
      $region52: #{transformer_decoder_forward.14} parent=39 // pred_fallthru
        _
      // Predicated region
      $region53: #{transformer_decoder_forward.14} parent=39 // pred_check
        %p349 = pneg %p128
      $region54: #{transformer_decoder_forward.14} parent=39 // pred_check_branch
        %351 = sbr.rel (%p349) target = $region56
      $region55: #{transformer_decoder_forward.14} parent=39 // pred_region
        %p352 = scmp.lt.s32.totalorder %s23, 1
        %s353 = scalar_select %p352, %s23, 1
        %s354 = scalar_lea.vmem %s3, %s353
      $region56: #{transformer_decoder_forward.14} parent=39 // pred_fallthru
        _
    $region40: #{transformer_decoder_forward.14} parent=5 // pred_fallthru
      _
    %p355 = scmp.le.s32.totalorder 1, %s16
    %p356 = scmp.lt.s32.totalorder %s16, 3
    %p357 = pnand %p355, %p356
    %p358 = pneg %p357
    // Predicated region
    $region57: #{transformer_decoder_forward.14} parent=5 // pred_check
      _
    $region58: #{transformer_decoder_forward.14} parent=5 // pred_check_branch
      %360 = sbr.rel (%p357) target = $region60
    $region59: #{transformer_decoder_forward.14} parent=5 // pred_region
      %s361 = ssub.s32 %s16, 1
      %p362 = scmp.lt.s32.totalorder %s25, 1
      %s363 = scalar_select %p362, %s25, 1
      %p364 = scmp.lt.s32.totalorder %s26, 0
      %s365 = scalar_select %p364, %s26, 0
      %s366 = sadd.s32 %s365, %s363
      %s367 = smul.addr %s366, 4
      %s368 = scalar_lea.vmem %s0, %s367
      %p369 = pneg %p56
      %p370 = pneg %p53
      %p371 = scmp.lt.s32.totalorder %s25, 1
      %s372 = scalar_select %p371, %s25, 1
      %s373 = smul.addr %s372, 4
      %s374 = scalar_lea.vmem %s1, %s373
      %p375 = pneg %p82
      %p376 = pneg %p79
      %p377 = scmp.lt.s32.totalorder %s25, 1
      %s378 = scalar_select %p377, %s25, 1
      %s379 = smul.addr %s378, 4
      %s380 = scalar_lea.vmem %s2, %s379
      %p381 = pneg %p108
      %p382 = pneg %p105
      %p383 = scmp.lt.s32.totalorder %s25, 1
      %s384 = scalar_select %p383, %s25, 1
      %s385 = scalar_lea.vmem %s3, %s384
      %p386 = pneg %p134
      %p387 = pneg %p131
      %p388 = pneg %p155
      %p389 = pneg %p152
      %p390 = pneg %p176
      %p391 = pneg %p173
      %p392 = pneg %p197
      %p393 = pneg %p194
      %p394 = pneg %p218
      %p395 = pneg %p215
      %p396 = pneg %p239
      %p397 = pneg %p236
      %p398 = pneg %p260
      %p399 = pneg %p257
      %p400 = pneg %p288
      %p401 = pneg %p285
      %p402 = scmp.lt.s32.totalorder %s25, 1
      %s403 = scalar_select %p402, %s25, 1
      %p404 = scmp.lt.s32.totalorder %s26, 0
      %s405 = scalar_select %p404, %s26, 0
      %s406 = sadd.s32 %s405, %s403
      %s407 = smul.addr %s406, 4
      %s408 = scalar_lea.vmem %s10, %s407
      %p409 = scmp.lt.s32.totalorder %s25, 1
      %s410 = scalar_select %p409, %s25, 1
      %p411 = scmp.lt.s32.totalorder %s26, 0
      %s412 = scalar_select %p411, %s26, 0
      %s413 = sadd.s32 %s412, %s410
      %s414 = smul.addr %s413, 4
      %s415 = scalar_lea.vmem %s0, %s414
      %p416 = scmp.lt.s32.totalorder %s25, 1
      %s417 = scalar_select %p416, %s25, 1
      %s418 = smul.addr %s417, 4
      %s419 = scalar_lea.vmem %s1, %s418
      %p420 = scmp.lt.s32.totalorder %s25, 1
      %s421 = scalar_select %p420, %s25, 1
      %s422 = smul.addr %s421, 4
      %s423 = scalar_lea.vmem %s2, %s422
      %p424 = scmp.lt.s32.totalorder %s25, 1
      %s425 = scalar_select %p424, %s25, 1
      %s426 = scalar_lea.vmem %s3, %s425
      %p427 = scmp.lt.s32.totalorder %s25, 1
      %s428 = scalar_select %p427, %s25, 1
      %p429 = scmp.lt.s32.totalorder %s26, 0
      %s430 = scalar_select %p429, %s26, 0
      %s431 = sadd.s32 %s430, %s428
      %s432 = smul.addr %s431, 4
      %s433 = scalar_lea.vmem %s10, %s432
      %v435 = vld [vmem:[%s415] sm:$0xf]
      %v436 = vld [vmem:[%s419] sm:$0xf]
      %v437 = vld [vmem:[%s423] sm:$0xf]
      %v438 = vld [vmem:[%s4] sm:$0xf]
      %v439 = vld [vmem:[%s4 + $0x4] sm:$0xf]
      %v440 = vld [vmem:[%s4 + $0x8] sm:$0xf]
      %v441 = vld [vmem:[%s4 + $0xc] sm:$0xf]
      %v442 = vld [vmem:[%s5] sm:$0x1]
      %v444 = vperm.slane %v442, 0
      %v450 = vunpack.c.l.b16 %v438
      %v451 = vunpack.c.l.b16 %v439
      %v452 = vunpack.c.l.b16 %v440
      %v453 = vunpack.c.l.b16 %v441
      %v454 = vpack.c.b16 %v451, %v450
      %v455 = vpack.c.b16 %v453, %v452
      %vm458 = vcmask 261120
      %v460 = vsel %vm458, %v435, 0
      %462 = vmatpush.bf16.msra.mxu0 0
      %463 = vmatpush.bf16.msra.mxu0 0
      %464 = vmatpush.bf16.msra.mxu0 0
      %465 = vmatpush.bf16.msra.mxu0 0
      %466 = vmatpush.bf16.msra.mxu0 0
      %467 = vmatpush.bf16.msra.mxu0 0
      %468 = vmatpush.bf16.msra.mxu0 %v455
      %469 = vmatpush.bf16.msra.mxu0 %v454
      %470 = vmatmul.bf16.gmra.mxu0 %v460
      %v471 = vpop.f32.mrf.mxu0
      %v472 = vadd.f32 %v444, %v471
      %v473 = vpop.f32.mrf.mxu0
      %474 = vdwg.mxu0
      %v475 = vpack.c.bf16 %v472, %v472
      %v476 = vld [vmem:[%s426] sm:$0x1]
      %vm477 = vcmask 64512
      %v479 = vsel %vm477, %v475, 0
      %v482 = vsel %vm477, %v436, 0
      %484 = vmatpush.bf16.xpose.msra.mxu0 0
      %485 = vmatpush.bf16.xpose.msra.mxu0 0
      %486 = vmatpush.bf16.xpose.msra.mxu0 0
      %487 = vmatpush.bf16.xpose.msra.mxu0 0
      %488 = vmatpush.bf16.xpose.msra.mxu0 0
      %489 = vmatpush.bf16.xpose.msra.mxu0 0
      %490 = vmatpush.bf16.xpose.msra.mxu0 0
      %491 = vmatpush.bf16.xpose.msra.mxu0 %v482
      %492 = vmatmul.bf16.gmra.mxu0 %v479
      %v493 = vpop.f32.mrf.mxu0
      %v494 = vadd.f32 0.0, %v493
      %v495 = vpop.f32.mrf.mxu0
      %496 = vdwg.mxu0
      %v497 = vmul.f32 %v494, 0.35355338
      %v499 = vperm.slane %v476, 0
      %v501 = vadd.f32 %v497, %v499
      %v502 = vsel %vm477, %v501, -inf
      %503 = vmax.xlane.f32.xlu0 %v502
      %v504 = vpop.xlane.xlu0 %503
      %v505 = vsub.f32 %v501, %v504
      %v506 = vmul.f32 %v505, 1.442695
      %v507 = vpow.pop %v506
      %v508 = vsel %vm477, %v507, 0.0
      %509 = vadd.xlane.f32.xlu0 %v508
      %v510 = vpop.xlane.xlu0 %509
      %v511 = vrcp.pop %v510
      %v512 = vmul.f32 %v510, %v511
      %v513 = vsub.f32 1.0, %v512
      %v514 = vmul.f32 %v511, %v513
      %v515 = vadd.f32 %v511, %v514
      %vm516 = vweird.f32 %v510
      %vm517 = vweird.f32 %v511
      %vm518 = vmor %vm516, %vm517
      %v519 = vsel %vm518, %v511, %v515
      %v520 = vand.u32 2147483647, %v510
      %vm521 = vcmp.eq.f32.partialorder %v520, 8.507059e+37
      %v522 = vand.u32 %v510, 2147483648
      %v523 = vor.u32 1.1754944e-38, %v522
      %v524 = vsel %vm521, %v523, %v519
      %v525 = vmul.f32 %v507, %v524
      %v526 = vpack.c.bf16 %v525, %v525
      %v528 = vsel %vm477, %v526, 0
      %vm530 = vcmask 1043456
      %v532 = vsel %vm530, %v437, 0
      %534 = vmatpush.bf16.msra.mxu0 0
      %535 = vmatpush.bf16.msra.mxu0 0
      %536 = vmatpush.bf16.msra.mxu0 0
      %537 = vmatpush.bf16.msra.mxu0 0
      %538 = vmatpush.bf16.msra.mxu0 0
      %539 = vmatpush.bf16.msra.mxu0 0
      %540 = vmatpush.bf16.msra.mxu0 0
      %541 = vmatpush.bf16.msra.mxu0 %v532
      %542 = vmatmul.bf16.gmra.mxu0 %v528
      %v543 = vpop.f32.mrf.mxu0
      %v544 = vadd.f32 0.0, %v543
      %v545 = vpop.f32.mrf.mxu0
      %546 = vdwg.mxu0
      %v548 = vunpack.c.l.b16 %v475
      %v549 = vpack.c.b16 %v548, %v548
      %550 = vrot.lane.b32.xlu0 %v549, 120
      %v551 = vpop.permute.xlu0 %550
      %v553 = vunpack.c.l.b16 %v436
      %v554 = vpack.c.b16 %v553, %v553
      %555 = vrot.lane.b32.xlu0 %v554, 120
      %v556 = vpop.permute.xlu0 %555
      %v558 = vsel %vm477, %v551, 0
      %v561 = vsel %vm477, %v556, 0
      %563 = vmatpush.bf16.xpose.msra.mxu0 0
      %564 = vmatpush.bf16.xpose.msra.mxu0 0
      %565 = vmatpush.bf16.xpose.msra.mxu0 0
      %566 = vmatpush.bf16.xpose.msra.mxu0 0
      %567 = vmatpush.bf16.xpose.msra.mxu0 0
      %568 = vmatpush.bf16.xpose.msra.mxu0 0
      %569 = vmatpush.bf16.xpose.msra.mxu0 0
      %570 = vmatpush.bf16.xpose.msra.mxu0 %v561
      %571 = vmatmul.bf16.gmra.mxu0 %v558
      %v572 = vpop.f32.mrf.mxu0
      %v573 = vadd.f32 0.0, %v572
      %v574 = vpop.f32.mrf.mxu0
      %575 = vdwg.mxu0
      %v576 = vmul.f32 %v573, 0.35355338
      %v577 = vadd.f32 %v576, %v499
      %v578 = vsel %vm477, %v577, -inf
      %579 = vmax.xlane.f32.xlu0 %v578
      %v580 = vpop.xlane.xlu0 %579
      %v581 = vsub.f32 %v577, %v580
      %v582 = vmul.f32 %v581, 1.442695
      %v583 = vpow.pop %v582
      %v584 = vsel %vm477, %v583, 0.0
      %585 = vadd.xlane.f32.xlu0 %v584
      %v586 = vpop.xlane.xlu0 %585
      %v587 = vrcp.pop %v586
      %v588 = vmul.f32 %v586, %v587
      %v589 = vsub.f32 1.0, %v588
      %v590 = vmul.f32 %v587, %v589
      %v591 = vadd.f32 %v587, %v590
      %vm592 = vweird.f32 %v586
      %vm593 = vweird.f32 %v587
      %vm594 = vmor %vm592, %vm593
      %v595 = vsel %vm594, %v587, %v591
      %v596 = vand.u32 2147483647, %v586
      %vm597 = vcmp.eq.f32.partialorder %v596, 8.507059e+37
      %v598 = vand.u32 %v586, 2147483648
      %v599 = vor.u32 1.1754944e-38, %v598
      %v600 = vsel %vm597, %v599, %v595
      %v601 = vmul.f32 %v583, %v600
      %v602 = vpack.c.bf16 %v601, %v601
      %v604 = vunpack.c.l.b16 %v437
      %v605 = vpack.c.b16 %v604, %v604
      %606 = vrot.lane.b32.xlu0 %v605, 120
      %v607 = vpop.permute.xlu0 %606
      %v609 = vsel %vm477, %v602, 0
      %v612 = vsel %vm530, %v607, 0
      %614 = vmatpush.bf16.msra.mxu0 0
      %615 = vmatpush.bf16.msra.mxu0 0
      %616 = vmatpush.bf16.msra.mxu0 0
      %617 = vmatpush.bf16.msra.mxu0 0
      %618 = vmatpush.bf16.msra.mxu0 0
      %619 = vmatpush.bf16.msra.mxu0 0
      %620 = vmatpush.bf16.msra.mxu0 0
      %621 = vmatpush.bf16.msra.mxu0 %v612
      %622 = vmatmul.bf16.gmra.mxu0 %v609
      %v623 = vpop.f32.mrf.mxu0
      %v624 = vadd.f32 0.0, %v623
      %v625 = vpop.f32.mrf.mxu0
      %626 = vdwg.mxu0
      %627 = vrot.lane.b32.xlu0 %v549, 112
      %v628 = vpop.permute.xlu0 %627
      %629 = vrot.lane.b32.xlu0 %v554, 112
      %v630 = vpop.permute.xlu0 %629
      %v632 = vsel %vm477, %v628, 0
      %v635 = vsel %vm477, %v630, 0
      %637 = vmatpush.bf16.xpose.msra.mxu0 0
      %638 = vmatpush.bf16.xpose.msra.mxu0 0
      %639 = vmatpush.bf16.xpose.msra.mxu0 0
      %640 = vmatpush.bf16.xpose.msra.mxu0 0
      %641 = vmatpush.bf16.xpose.msra.mxu0 0
      %642 = vmatpush.bf16.xpose.msra.mxu0 0
      %643 = vmatpush.bf16.xpose.msra.mxu0 0
      %644 = vmatpush.bf16.xpose.msra.mxu0 %v635
      %645 = vmatmul.bf16.gmra.mxu0 %v632
      %v646 = vpop.f32.mrf.mxu0
      %v647 = vadd.f32 0.0, %v646
      %v648 = vpop.f32.mrf.mxu0
      %649 = vdwg.mxu0
      %v650 = vmul.f32 %v647, 0.35355338
      %v651 = vadd.f32 %v650, %v499
      %v652 = vsel %vm477, %v651, -inf
      %653 = vmax.xlane.f32.xlu0 %v652
      %v654 = vpop.xlane.xlu0 %653
      %v655 = vsub.f32 %v651, %v654
      %v656 = vmul.f32 %v655, 1.442695
      %v657 = vpow.pop %v656
      %v658 = vsel %vm477, %v657, 0.0
      %659 = vadd.xlane.f32.xlu0 %v658
      %v660 = vpop.xlane.xlu0 %659
      %v661 = vrcp.pop %v660
      %v662 = vmul.f32 %v660, %v661
      %v663 = vsub.f32 1.0, %v662
      %v664 = vmul.f32 %v661, %v663
      %v665 = vadd.f32 %v661, %v664
      %vm666 = vweird.f32 %v660
      %vm667 = vweird.f32 %v661
      %vm668 = vmor %vm666, %vm667
      %v669 = vsel %vm668, %v661, %v665
      %v670 = vand.u32 2147483647, %v660
      %vm671 = vcmp.eq.f32.partialorder %v670, 8.507059e+37
      %v672 = vand.u32 %v660, 2147483648
      %v673 = vor.u32 1.1754944e-38, %v672
      %v674 = vsel %vm671, %v673, %v669
      %v675 = vmul.f32 %v657, %v674
      %v676 = vpack.c.bf16 %v675, %v675
      %677 = vrot.lane.b32.xlu0 %v605, 112
      %v678 = vpop.permute.xlu0 %677
      %v680 = vsel %vm477, %v676, 0
      %v683 = vsel %vm530, %v678, 0
      %685 = vmatpush.bf16.msra.mxu0 0
      %686 = vmatpush.bf16.msra.mxu0 0
      %687 = vmatpush.bf16.msra.mxu0 0
      %688 = vmatpush.bf16.msra.mxu0 0
      %689 = vmatpush.bf16.msra.mxu0 0
      %690 = vmatpush.bf16.msra.mxu0 0
      %691 = vmatpush.bf16.msra.mxu0 0
      %692 = vmatpush.bf16.msra.mxu0 %v683
      %693 = vmatmul.bf16.gmra.mxu0 %v680
      %v694 = vpop.f32.mrf.mxu0
      %v695 = vadd.f32 0.0, %v694
      %v696 = vpop.f32.mrf.mxu0
      %697 = vdwg.mxu0
      %698 = vrot.lane.b32.xlu0 %v549, 104
      %v699 = vpop.permute.xlu0 %698
      %700 = vrot.lane.b32.xlu0 %v554, 104
      %v701 = vpop.permute.xlu0 %700
      %v703 = vsel %vm477, %v699, 0
      %v706 = vsel %vm477, %v701, 0
      %708 = vmatpush.bf16.xpose.msra.mxu0 0
      %709 = vmatpush.bf16.xpose.msra.mxu0 0
      %710 = vmatpush.bf16.xpose.msra.mxu0 0
      %711 = vmatpush.bf16.xpose.msra.mxu0 0
      %712 = vmatpush.bf16.xpose.msra.mxu0 0
      %713 = vmatpush.bf16.xpose.msra.mxu0 0
      %714 = vmatpush.bf16.xpose.msra.mxu0 0
      %715 = vmatpush.bf16.xpose.msra.mxu0 %v706
      %716 = vmatmul.bf16.gmra.mxu0 %v703
      %v717 = vpop.f32.mrf.mxu0
      %v718 = vadd.f32 0.0, %v717
      %v719 = vpop.f32.mrf.mxu0
      %720 = vdwg.mxu0
      %v721 = vmul.f32 %v718, 0.35355338
      %v722 = vadd.f32 %v721, %v499
      %v723 = vsel %vm477, %v722, -inf
      %724 = vmax.xlane.f32.xlu0 %v723
      %v725 = vpop.xlane.xlu0 %724
      %v726 = vsub.f32 %v722, %v725
      %v727 = vmul.f32 %v726, 1.442695
      %v728 = vpow.pop %v727
      %v729 = vsel %vm477, %v728, 0.0
      %730 = vadd.xlane.f32.xlu0 %v729
      %v731 = vpop.xlane.xlu0 %730
      %v732 = vrcp.pop %v731
      %v733 = vmul.f32 %v731, %v732
      %v734 = vsub.f32 1.0, %v733
      %v735 = vmul.f32 %v732, %v734
      %v736 = vadd.f32 %v732, %v735
      %vm737 = vweird.f32 %v731
      %vm738 = vweird.f32 %v732
      %vm739 = vmor %vm737, %vm738
      %v740 = vsel %vm739, %v732, %v736
      %v741 = vand.u32 2147483647, %v731
      %vm742 = vcmp.eq.f32.partialorder %v741, 8.507059e+37
      %v743 = vand.u32 %v731, 2147483648
      %v744 = vor.u32 1.1754944e-38, %v743
      %v745 = vsel %vm742, %v744, %v740
      %v746 = vmul.f32 %v728, %v745
      %v747 = vpack.c.bf16 %v746, %v746
      %748 = vrot.lane.b32.xlu0 %v605, 104
      %v749 = vpop.permute.xlu0 %748
      %v751 = vsel %vm477, %v747, 0
      %v754 = vsel %vm530, %v749, 0
      %756 = vmatpush.bf16.msra.mxu0 0
      %757 = vmatpush.bf16.msra.mxu0 0
      %758 = vmatpush.bf16.msra.mxu0 0
      %759 = vmatpush.bf16.msra.mxu0 0
      %760 = vmatpush.bf16.msra.mxu0 0
      %761 = vmatpush.bf16.msra.mxu0 0
      %762 = vmatpush.bf16.msra.mxu0 0
      %763 = vmatpush.bf16.msra.mxu0 %v754
      %764 = vmatmul.bf16.gmra.mxu0 %v751
      %v765 = vpop.f32.mrf.mxu0
      %v766 = vadd.f32 0.0, %v765
      %v767 = vpop.f32.mrf.mxu0
      %768 = vdwg.mxu0
      %770 = vrot.lane.b32.xlu0 %v624, 8
      %v771 = vpop.permute.xlu0 %770
      %774 = vrot.lane.b32.xlu0 %v695, 16
      %v775 = vpop.permute.xlu0 %774
      %778 = vrot.lane.b32.xlu0 %v766, 24
      %v779 = vpop.permute.xlu0 %778
      %v781 = vsel %vm477, %v544, %v771
      %vm782 = vcmask 130048
      %v783 = vsel %vm782, %v781, %v775
      %vm784 = vcmask 195584
      %v785 = vsel %vm784, %v783, %v779
      %v786 = vpack.c.bf16 %v785, %v785
      %v787 = vld [vmem:[%s6] sm:$0xf]
      %v788 = vld [vmem:[%s6 + $0x4] sm:$0xf]
      %v789 = vld [vmem:[%s6 + $0x8] sm:$0xf]
      %v790 = vld [vmem:[%s6 + $0xc] sm:$0xf]
      %v791 = vld [vmem:[%s7] sm:$0x1]
      %v793 = vperm.slane %v791, 0
      %v799 = vunpack.c.l.b16 %v787
      %v800 = vunpack.c.l.b16 %v788
      %v801 = vunpack.c.l.b16 %v789
      %v802 = vunpack.c.l.b16 %v790
      %v803 = vpack.c.b16 %v800, %v799
      %v804 = vpack.c.b16 %v802, %v801
      %v808 = vsel %vm458, %v786, 0
      %810 = vmatpush.bf16.msra.mxu0 0
      %811 = vmatpush.bf16.msra.mxu0 0
      %812 = vmatpush.bf16.msra.mxu0 0
      %813 = vmatpush.bf16.msra.mxu0 0
      %814 = vmatpush.bf16.msra.mxu0 0
      %815 = vmatpush.bf16.msra.mxu0 0
      %816 = vmatpush.bf16.msra.mxu0 %v804
      %817 = vmatpush.bf16.msra.mxu0 %v803
      %818 = vmatmul.bf16.gmra.mxu0 %v808
      %v819 = vpop.f32.mrf.mxu0
      %v820 = vadd.f32 %v793, %v819
      %v821 = vpop.f32.mrf.mxu0
      %822 = vdwg.mxu0
      %v823 = vunpack.c.l.bf16 %v435
      %v824 = vadd.f32 %v823, %v820
      %v825 = vsel %vm458, %v824, 0.0
      %826 = vadd.xlane.f32.xlu0 %v825
      %v827 = vpop.xlane.xlu0 %826
      %v828 = vrcp.pop 32.0
      %v829 = vmul.f32 32.0, %v828
      %v830 = vsub.f32 1.0, %v829
      %v831 = vmul.f32 %v828, %v830
      %v832 = vadd.f32 %v828, %v831
      %vm833 = vweird.f32 %v828
      %v834 = vsel %vm833, %v828, %v832
      %v835 = vmul.f32 %v827, %v834
      %v836 = vsub.f32 %v824, %v835
      %v837 = vmul.f32 %v836, %v836
      %v838 = vsel %vm458, %v837, 0.0
      %839 = vadd.xlane.f32.xlu0 %v838
      %v840 = vpop.xlane.xlu0 %839
      %v841 = vmul.f32 %v840, %v834
      %v842 = vadd.f32 %v841, 1e-05
      %v843 = vrsqrt.pop %v842
      %v844 = vmul.f32 %v843, %v842
      %v845 = vmul.f32 %v844, %v843
      %v846 = vmul.f32 0.5, %v845
      %v847 = vsub.f32 1.5, %v846
      %v848 = vmul.f32 %v843, %v847
      %vm849 = vweird.f32 %v842
      %vm850 = vweird.f32 %v843
      %vm851 = vmor %vm849, %vm850
      %v852 = vsel %vm851, %v843, %v848
      %v853 = vmul.f32 %v836, %v852
      %v854 = vld [vmem:[%s8] sm:$0x1]
      %v856 = vperm.slane %v854, 0
      %v858 = vmul.f32 %v853, %v856
      %v859 = vld [vmem:[%s9] sm:$0x1]
      %v861 = vperm.slane %v859, 0
      %v863 = vadd.f32 %v858, %v861
      %v864 = vpack.c.bf16 %v863, %v863
      %vm865 = vcmask 257024
      %866 = vst.msk [vmem:[%s433] sm:$0xf] %vm865, %v864
      %p867 = scmp.lt.s32.totalorder %s25, 1
      %s868 = scalar_select %p867, %s25, 1
      %p869 = scmp.lt.s32.totalorder %s26, 0
      %s870 = scalar_select %p869, %s26, 0
      %s871 = sadd.s32 %s870, %s868
      %s872 = smul.addr %s871, 4
      %s873 = scalar_lea.vmem %s10, %s872
      // Predicated region
      $region61: #{transformer_decoder_forward.14} parent=59 // pred_check
        %p874 = pneg %p285
      $region62: #{transformer_decoder_forward.14} parent=59 // pred_check_branch
        %876 = sbr.rel (%p874) target = $region64
      $region63: #{transformer_decoder_forward.14} parent=59 // pred_region
        _
      $region64: #{transformer_decoder_forward.14} parent=59 // pred_fallthru
        _
    $region60: #{transformer_decoder_forward.14} parent=5 // pred_fallthru
      _
    %p877 = scmp.le.s32.totalorder 2, %s16
    // Predicated region
    $region65: #{transformer_decoder_forward.14} parent=5 // pred_check
      %p878 = pneg %p877
    $region66: #{transformer_decoder_forward.14} parent=5 // pred_check_branch
      %880 = sbr.rel (%p878) target = $region68
    $region67: #{transformer_decoder_forward.14} parent=5 // pred_region
      %s881 = ssub.s32 %s16, 2
      // Predicated region
      $region69: #{transformer_decoder_forward.14} parent=67 // pred_check
        %p882 = pneg %p291
      $region70: #{transformer_decoder_forward.14} parent=67 // pred_check_branch
        %884 = sbr.rel (%p882) target = $region72
      $region71: #{transformer_decoder_forward.14} parent=67 // pred_region
        %p885 = scmp.lt.s32.totalorder %s27, 1
        %s886 = scalar_select %p885, %s27, 1
        %p887 = scmp.lt.s32.totalorder %s28, 0
        %s888 = scalar_select %p887, %s28, 0
        %s889 = sadd.s32 %s888, %s886
        %s890 = smul.addr %s889, 4
        %s891 = scalar_lea.vmem %s10, %s890
      $region72: #{transformer_decoder_forward.14} parent=67 // pred_fallthru
        _
    $region68: #{transformer_decoder_forward.14} parent=5 // pred_fallthru
      _
  $region6: #{transformer_decoder_forward.14} parent=0 // loop_footer
    %s20 = sadd.s32 1, %s16
  $region7: #{transformer_decoder_forward.14} parent=0 // loop_footer_branch
    %15 = sbr.rel target = $region3
  $region8: #{transformer_decoder_forward.14} parent=0 // loop_exit
    _

// kernel: transformer_decoder_forward.12
$region0: #{transformer_decoder_forward.12}
  #allocation0 [shape = 'u32[]', space=smem, size = 0x4, offset = 0x4, fixed_abs, tag = 'smem constant byte address 0x4 - core index']
  #allocation1 [shape = 'u32[72,128]{1,0:T(1,128)}', space=vmem, size = 0x9000, scoped, tag = 'internal scratch']
  %s0 = inlined_call_operand.vmem [shape: bf16[2,8,32], index: 0, kind: input, shape index: {}]
  %s1 = inlined_call_operand.vmem [shape: bf16[2,8,32], index: 1, kind: input, shape index: {}]
  %s2 = inlined_call_operand.vmem [shape: bf16[2,8,32], index: 2, kind: input, shape index: {}]
  %s3 = inlined_call_operand.vmem [shape: bf16[32,32], index: 3, kind: input, shape index: {}]
  %s4 = inlined_call_operand.vmem [shape: f32[1,32], index: 4, kind: input, shape index: {}]
  %s5 = inlined_call_operand.vmem [shape: bf16[32,32], index: 5, kind: input, shape index: {}]
  %s6 = inlined_call_operand.vmem [shape: f32[1,32], index: 6, kind: input, shape index: {}]
  %s7 = inlined_call_operand.vmem [shape: f32[1,32], index: 7, kind: input, shape index: {}]
  %s8 = inlined_call_operand.vmem [shape: f32[1,32], index: 8, kind: input, shape index: {}]
  %s9 = inlined_call_operand.vmem [shape: bf16[2,8,32], index: 9, kind: output, shape index: {}]
  %s10 = sld [smem:[#allocation0]]
  $region69: #{transformer_decoder_forward.12} parent=0
    _
  %s12 = ssub.s32 1, %s10
  %s13 = scalar_select 0, %s12, %s10
  loop: start=0, step=1, limit=4
  $region2: #{transformer_decoder_forward.12} parent=0 // loop_pre_header
    _
  $region3: #{transformer_decoder_forward.12} parent=0 // loop_header
    %s15 = sphi 0, %s19
    %p16 = scmp.ge.s32.totalorder %s15, 4
    %s22 = sphi 0, %s34
    %s23 = sphi 0, %s30
    %s24 = sphi 0, %s22
    %s25 = sphi 0, %s23
    %s26 = sphi 0, %s24
    %s27 = sphi 0, %s25
    %s39 = sphi 0, %s41
    %s42 = sphi 0, %s39
    %s43 = sphi 0, %s42
    %s59 = sphi 0, %s43
    %s65 = sphi 0, %s67
    %s68 = sphi 0, %s65
    %s69 = sphi 0, %s68
    %s85 = sphi 0, %s69
    %s91 = sphi 0, %s93
    %s94 = sphi 0, %s91
    %s95 = sphi 0, %s94
    %s111 = sphi 0, %s95
    %s115 = sphi 0, %s115
    %s117 = sphi 0, %s115
    %s118 = sphi 0, %s117
    %s132 = sphi 0, %s118
    %s136 = sphi 0, %s136
    %s138 = sphi 0, %s136
    %s139 = sphi 0, %s138
    %s153 = sphi 0, %s139
    %s157 = sphi 0, %s157
    %s159 = sphi 0, %s157
    %s160 = sphi 0, %s159
    %s174 = sphi 0, %s160
    %s178 = sphi 0, %s178
    %s180 = sphi 0, %s178
    %s181 = sphi 0, %s180
    %s195 = sphi 0, %s181
    %s199 = sphi 0, %s199
    %s201 = sphi 0, %s199
    %s202 = sphi 0, %s201
    %s216 = sphi 0, %s202
    %s220 = sphi 0, %s220
    %s222 = sphi 0, %s220
    %s223 = sphi 0, %s222
    %s237 = sphi 0, %s223
    %s245 = sphi 0, %s247
    %s248 = sphi 0, %s245
    %s249 = sphi 0, %s248
    %s265 = sphi 0, %s249
  $region4: #{transformer_decoder_forward.12} parent=0 // loop_header_branch
    %18 = sbr.rel (%p16) target = $region8
  $region5: #{transformer_decoder_forward.12} parent=0 // loop_body
    %s20 = ssub.s32 %s15, 1
    %s21 = ssub.s32 %s15, 2
    %s28 = sadd.s32 1, %s23
    %p29 = scmp.ge.s32.totalorder %s28, 1
    %s30 = scalar_select %p29, 0, %s28
    %s31 = sadd.s32 1, %s22
    %s32 = scalar_select %p29, %s31, %s22
    %p33 = scmp.ge.s32.totalorder %s32, 2
    %s34 = scalar_select %p33, 0, %s32
    %s35 = ssub.s32 %s22, %s34
    %s36 = ssub.s32 %s23, %s30
    %s37 = sor.u32 %s35, %s36
    %p38 = scmp.eq.s32.totalorder %s37, 0
    %s40 = sadd.s32 %s39, 1
    %s41 = scalar_select %p38, %s39, %s40
    %p44 = pneg %p38
    %p45 = scmp.eq.s32.totalorder %s15, 1
    %p46 = por %p44, %p45
    %p47 = scmp.ne.s32.totalorder %s39, %s42
    %p48 = scmp.eq.s32.totalorder %s15, 0
    %p49 = por %p47, %p48
    %p50 = scmp.ne.s32.totalorder %s39, %s42
    %p51 = scmp.eq.s32.totalorder %s20, 1
    %p52 = por %p50, %p51
    %p53 = scmp.ne.s32.totalorder %s42, %s43
    %p54 = scmp.eq.s32.totalorder %s20, 0
    %p55 = por %p53, %p54
    %p56 = scmp.ne.s32.totalorder %s42, %s43
    %p57 = scmp.eq.s32.totalorder %s21, 1
    %p58 = por %p56, %p57
    %p60 = scmp.ne.s32.totalorder %s43, %s59
    %p61 = scmp.eq.s32.totalorder %s21, 0
    %p62 = por %p60, %p61
    %s63 = ssub.s32 %s22, %s34
    %p64 = scmp.eq.s32.totalorder %s63, 0
    %s66 = sadd.s32 %s65, 1
    %s67 = scalar_select %p64, %s65, %s66
    %p70 = pneg %p64
    %p71 = scmp.eq.s32.totalorder %s15, 1
    %p72 = por %p70, %p71
    %p73 = scmp.ne.s32.totalorder %s65, %s68
    %p74 = scmp.eq.s32.totalorder %s15, 0
    %p75 = por %p73, %p74
    %p76 = scmp.ne.s32.totalorder %s65, %s68
    %p77 = scmp.eq.s32.totalorder %s20, 1
    %p78 = por %p76, %p77
    %p79 = scmp.ne.s32.totalorder %s68, %s69
    %p80 = scmp.eq.s32.totalorder %s20, 0
    %p81 = por %p79, %p80
    %p82 = scmp.ne.s32.totalorder %s68, %s69
    %p83 = scmp.eq.s32.totalorder %s21, 1
    %p84 = por %p82, %p83
    %p86 = scmp.ne.s32.totalorder %s69, %s85
    %p87 = scmp.eq.s32.totalorder %s21, 0
    %p88 = por %p86, %p87
    %s89 = ssub.s32 %s22, %s34
    %p90 = scmp.eq.s32.totalorder %s89, 0
    %s92 = sadd.s32 %s91, 1
    %s93 = scalar_select %p90, %s91, %s92
    %p96 = pneg %p90
    %p97 = scmp.eq.s32.totalorder %s15, 1
    %p98 = por %p96, %p97
    %p99 = scmp.ne.s32.totalorder %s91, %s94
    %p100 = scmp.eq.s32.totalorder %s15, 0
    %p101 = por %p99, %p100
    %p102 = scmp.ne.s32.totalorder %s91, %s94
    %p103 = scmp.eq.s32.totalorder %s20, 1
    %p104 = por %p102, %p103
    %p105 = scmp.ne.s32.totalorder %s94, %s95
    %p106 = scmp.eq.s32.totalorder %s20, 0
    %p107 = por %p105, %p106
    %p108 = scmp.ne.s32.totalorder %s94, %s95
    %p109 = scmp.eq.s32.totalorder %s21, 1
    %p110 = por %p108, %p109
    %p112 = scmp.ne.s32.totalorder %s95, %s111
    %p113 = scmp.eq.s32.totalorder %s21, 0
    %p114 = por %p112, %p113
    %s116 = sadd.s32 %s115, 1
    %p119 = scmp.eq.s32.totalorder %s15, 1
    %p120 = scmp.ne.s32.totalorder %s115, %s117
    %p121 = scmp.eq.s32.totalorder %s15, 0
    %p122 = por %p120, %p121
    %p123 = scmp.ne.s32.totalorder %s115, %s117
    %p124 = scmp.eq.s32.totalorder %s20, 1
    %p125 = por %p123, %p124
    %p126 = scmp.ne.s32.totalorder %s117, %s118
    %p127 = scmp.eq.s32.totalorder %s20, 0
    %p128 = por %p126, %p127
    %p129 = scmp.ne.s32.totalorder %s117, %s118
    %p130 = scmp.eq.s32.totalorder %s21, 1
    %p131 = por %p129, %p130
    %p133 = scmp.ne.s32.totalorder %s118, %s132
    %p134 = scmp.eq.s32.totalorder %s21, 0
    %p135 = por %p133, %p134
    %s137 = sadd.s32 %s136, 1
    %p140 = scmp.eq.s32.totalorder %s15, 1
    %p141 = scmp.ne.s32.totalorder %s136, %s138
    %p142 = scmp.eq.s32.totalorder %s15, 0
    %p143 = por %p141, %p142
    %p144 = scmp.ne.s32.totalorder %s136, %s138
    %p145 = scmp.eq.s32.totalorder %s20, 1
    %p146 = por %p144, %p145
    %p147 = scmp.ne.s32.totalorder %s138, %s139
    %p148 = scmp.eq.s32.totalorder %s20, 0
    %p149 = por %p147, %p148
    %p150 = scmp.ne.s32.totalorder %s138, %s139
    %p151 = scmp.eq.s32.totalorder %s21, 1
    %p152 = por %p150, %p151
    %p154 = scmp.ne.s32.totalorder %s139, %s153
    %p155 = scmp.eq.s32.totalorder %s21, 0
    %p156 = por %p154, %p155
    %s158 = sadd.s32 %s157, 1
    %p161 = scmp.eq.s32.totalorder %s15, 1
    %p162 = scmp.ne.s32.totalorder %s157, %s159
    %p163 = scmp.eq.s32.totalorder %s15, 0
    %p164 = por %p162, %p163
    %p165 = scmp.ne.s32.totalorder %s157, %s159
    %p166 = scmp.eq.s32.totalorder %s20, 1
    %p167 = por %p165, %p166
    %p168 = scmp.ne.s32.totalorder %s159, %s160
    %p169 = scmp.eq.s32.totalorder %s20, 0
    %p170 = por %p168, %p169
    %p171 = scmp.ne.s32.totalorder %s159, %s160
    %p172 = scmp.eq.s32.totalorder %s21, 1
    %p173 = por %p171, %p172
    %p175 = scmp.ne.s32.totalorder %s160, %s174
    %p176 = scmp.eq.s32.totalorder %s21, 0
    %p177 = por %p175, %p176
    %s179 = sadd.s32 %s178, 1
    %p182 = scmp.eq.s32.totalorder %s15, 1
    %p183 = scmp.ne.s32.totalorder %s178, %s180
    %p184 = scmp.eq.s32.totalorder %s15, 0
    %p185 = por %p183, %p184
    %p186 = scmp.ne.s32.totalorder %s178, %s180
    %p187 = scmp.eq.s32.totalorder %s20, 1
    %p188 = por %p186, %p187
    %p189 = scmp.ne.s32.totalorder %s180, %s181
    %p190 = scmp.eq.s32.totalorder %s20, 0
    %p191 = por %p189, %p190
    %p192 = scmp.ne.s32.totalorder %s180, %s181
    %p193 = scmp.eq.s32.totalorder %s21, 1
    %p194 = por %p192, %p193
    %p196 = scmp.ne.s32.totalorder %s181, %s195
    %p197 = scmp.eq.s32.totalorder %s21, 0
    %p198 = por %p196, %p197
    %s200 = sadd.s32 %s199, 1
    %p203 = scmp.eq.s32.totalorder %s15, 1
    %p204 = scmp.ne.s32.totalorder %s199, %s201
    %p205 = scmp.eq.s32.totalorder %s15, 0
    %p206 = por %p204, %p205
    %p207 = scmp.ne.s32.totalorder %s199, %s201
    %p208 = scmp.eq.s32.totalorder %s20, 1
    %p209 = por %p207, %p208
    %p210 = scmp.ne.s32.totalorder %s201, %s202
    %p211 = scmp.eq.s32.totalorder %s20, 0
    %p212 = por %p210, %p211
    %p213 = scmp.ne.s32.totalorder %s201, %s202
    %p214 = scmp.eq.s32.totalorder %s21, 1
    %p215 = por %p213, %p214
    %p217 = scmp.ne.s32.totalorder %s202, %s216
    %p218 = scmp.eq.s32.totalorder %s21, 0
    %p219 = por %p217, %p218
    %s221 = sadd.s32 %s220, 1
    %p224 = scmp.eq.s32.totalorder %s15, 1
    %p225 = scmp.ne.s32.totalorder %s220, %s222
    %p226 = scmp.eq.s32.totalorder %s15, 0
    %p227 = por %p225, %p226
    %p228 = scmp.ne.s32.totalorder %s220, %s222
    %p229 = scmp.eq.s32.totalorder %s20, 1
    %p230 = por %p228, %p229
    %p231 = scmp.ne.s32.totalorder %s222, %s223
    %p232 = scmp.eq.s32.totalorder %s20, 0
    %p233 = por %p231, %p232
    %p234 = scmp.ne.s32.totalorder %s222, %s223
    %p235 = scmp.eq.s32.totalorder %s21, 1
    %p236 = por %p234, %p235
    %p238 = scmp.ne.s32.totalorder %s223, %s237
    %p239 = scmp.eq.s32.totalorder %s21, 0
    %p240 = por %p238, %p239
    %s241 = ssub.s32 %s22, %s34
    %s242 = ssub.s32 %s23, %s30
    %s243 = sor.u32 %s241, %s242
    %p244 = scmp.eq.s32.totalorder %s243, 0
    %s246 = sadd.s32 %s245, 1
    %s247 = scalar_select %p244, %s245, %s246
    %p250 = pneg %p244
    %p251 = scmp.eq.s32.totalorder %s15, 1
    %p252 = por %p250, %p251
    %p253 = scmp.ne.s32.totalorder %s245, %s248
    %p254 = scmp.eq.s32.totalorder %s15, 0
    %p255 = por %p253, %p254
    %p256 = scmp.ne.s32.totalorder %s245, %s248
    %p257 = scmp.eq.s32.totalorder %s20, 1
    %p258 = por %p256, %p257
    %p259 = scmp.ne.s32.totalorder %s248, %s249
    %p260 = scmp.eq.s32.totalorder %s20, 0
    %p261 = por %p259, %p260
    %p262 = scmp.ne.s32.totalorder %s248, %s249
    %p263 = scmp.eq.s32.totalorder %s21, 1
    %p264 = por %p262, %p263
    %p266 = scmp.ne.s32.totalorder %s249, %s265
    %p267 = scmp.eq.s32.totalorder %s21, 0
    %p268 = por %p266, %p267
    %p269 = scmp.le.s32.totalorder 1, %s15
    %p270 = scmp.lt.s32.totalorder %s15, 3
    %p271 = pnand %p269, %p270
    %p272 = pneg %p271
    // Predicated region
    $region9: #{transformer_decoder_forward.12} parent=5 // pred_check
      _
    $region10: #{transformer_decoder_forward.12} parent=5 // pred_check_branch
      %274 = sbr.rel (%p271) target = $region12
    $region11: #{transformer_decoder_forward.12} parent=5 // pred_region
      %s275 = ssub.s32 %s15, 1
      // Predicated region
      $region13: #{transformer_decoder_forward.12} parent=11 // pred_check
        %p276 = pneg %p128
      $region14: #{transformer_decoder_forward.12} parent=11 // pred_check_branch
        %278 = sbr.rel (%p276) target = $region16
      $region15: #{transformer_decoder_forward.12} parent=11 // pred_region
        _
      $region16: #{transformer_decoder_forward.12} parent=11 // pred_fallthru
        _
      // Predicated region
      $region17: #{transformer_decoder_forward.12} parent=11 // pred_check
        %p279 = pneg %p149
      $region18: #{transformer_decoder_forward.12} parent=11 // pred_check_branch
        %281 = sbr.rel (%p279) target = $region20
      $region19: #{transformer_decoder_forward.12} parent=11 // pred_region
        _
      $region20: #{transformer_decoder_forward.12} parent=11 // pred_fallthru
        _
      // Predicated region
      $region21: #{transformer_decoder_forward.12} parent=11 // pred_check
        %p282 = pneg %p170
      $region22: #{transformer_decoder_forward.12} parent=11 // pred_check_branch
        %284 = sbr.rel (%p282) target = $region24
      $region23: #{transformer_decoder_forward.12} parent=11 // pred_region
        _
      $region24: #{transformer_decoder_forward.12} parent=11 // pred_fallthru
        _
      // Predicated region
      $region25: #{transformer_decoder_forward.12} parent=11 // pred_check
        %p285 = pneg %p191
      $region26: #{transformer_decoder_forward.12} parent=11 // pred_check_branch
        %287 = sbr.rel (%p285) target = $region28
      $region27: #{transformer_decoder_forward.12} parent=11 // pred_region
        _
      $region28: #{transformer_decoder_forward.12} parent=11 // pred_fallthru
        _
      // Predicated region
      $region29: #{transformer_decoder_forward.12} parent=11 // pred_check
        %p288 = pneg %p212
      $region30: #{transformer_decoder_forward.12} parent=11 // pred_check_branch
        %290 = sbr.rel (%p288) target = $region32
      $region31: #{transformer_decoder_forward.12} parent=11 // pred_region
        _
      $region32: #{transformer_decoder_forward.12} parent=11 // pred_fallthru
        _
      // Predicated region
      $region33: #{transformer_decoder_forward.12} parent=11 // pred_check
        %p291 = pneg %p233
      $region34: #{transformer_decoder_forward.12} parent=11 // pred_check_branch
        %293 = sbr.rel (%p291) target = $region36
      $region35: #{transformer_decoder_forward.12} parent=11 // pred_region
        _
      $region36: #{transformer_decoder_forward.12} parent=11 // pred_fallthru
        _
    $region12: #{transformer_decoder_forward.12} parent=5 // pred_fallthru
      _
    %p294 = scmp.lt.s32.totalorder %s15, 2
    // Predicated region
    $region37: #{transformer_decoder_forward.12} parent=5 // pred_check
      %p295 = pneg %p294
    $region38: #{transformer_decoder_forward.12} parent=5 // pred_check_branch
      %297 = sbr.rel (%p295) target = $region40
    $region39: #{transformer_decoder_forward.12} parent=5 // pred_region
      // Predicated region
      $region41: #{transformer_decoder_forward.12} parent=39 // pred_check
        %p298 = pneg %p49
      $region42: #{transformer_decoder_forward.12} parent=39 // pred_check_branch
        %300 = sbr.rel (%p298) target = $region44
      $region43: #{transformer_decoder_forward.12} parent=39 // pred_region
        %p301 = scmp.lt.s32.totalorder %s22, 1
        %s302 = scalar_select %p301, %s22, 1
        %p303 = scmp.lt.s32.totalorder %s23, 0
        %s304 = scalar_select %p303, %s23, 0
        %s305 = sadd.s32 %s304, %s302
        %s306 = smul.addr %s305, 4
        %s307 = scalar_lea.vmem %s0, %s306
      $region44: #{transformer_decoder_forward.12} parent=39 // pred_fallthru
        _
      // Predicated region
      $region45: #{transformer_decoder_forward.12} parent=39 // pred_check
        %p308 = pneg %p75
      $region46: #{transformer_decoder_forward.12} parent=39 // pred_check_branch
        %310 = sbr.rel (%p308) target = $region48
      $region47: #{transformer_decoder_forward.12} parent=39 // pred_region
        %p311 = scmp.lt.s32.totalorder %s22, 1
        %s312 = scalar_select %p311, %s22, 1
        %s313 = smul.addr %s312, 4
        %s314 = scalar_lea.vmem %s1, %s313
      $region48: #{transformer_decoder_forward.12} parent=39 // pred_fallthru
        _
      // Predicated region
      $region49: #{transformer_decoder_forward.12} parent=39 // pred_check
        %p315 = pneg %p101
      $region50: #{transformer_decoder_forward.12} parent=39 // pred_check_branch
        %317 = sbr.rel (%p315) target = $region52
      $region51: #{transformer_decoder_forward.12} parent=39 // pred_region
        %p318 = scmp.lt.s32.totalorder %s22, 1
        %s319 = scalar_select %p318, %s22, 1
        %s320 = smul.addr %s319, 4
        %s321 = scalar_lea.vmem %s2, %s320
      $region52: #{transformer_decoder_forward.12} parent=39 // pred_fallthru
        _
    $region40: #{transformer_decoder_forward.12} parent=5 // pred_fallthru
      _
    %p322 = scmp.le.s32.totalorder 1, %s15
    %p323 = scmp.lt.s32.totalorder %s15, 3
    %p324 = pnand %p322, %p323
    %p325 = pneg %p324
    // Predicated region
    $region53: #{transformer_decoder_forward.12} parent=5 // pred_check
      _
    $region54: #{transformer_decoder_forward.12} parent=5 // pred_check_branch
      %327 = sbr.rel (%p324) target = $region56
    $region55: #{transformer_decoder_forward.12} parent=5 // pred_region
      %s328 = ssub.s32 %s15, 1
      %p329 = scmp.lt.s32.totalorder %s24, 1
      %s330 = scalar_select %p329, %s24, 1
      %p331 = scmp.lt.s32.totalorder %s25, 0
      %s332 = scalar_select %p331, %s25, 0
      %s333 = sadd.s32 %s332, %s330
      %s334 = smul.addr %s333, 4
      %s335 = scalar_lea.vmem %s0, %s334
      %p336 = pneg %p55
      %p337 = pneg %p52
      %p338 = scmp.lt.s32.totalorder %s24, 1
      %s339 = scalar_select %p338, %s24, 1
      %s340 = smul.addr %s339, 4
      %s341 = scalar_lea.vmem %s1, %s340
      %p342 = pneg %p81
      %p343 = pneg %p78
      %p344 = scmp.lt.s32.totalorder %s24, 1
      %s345 = scalar_select %p344, %s24, 1
      %s346 = smul.addr %s345, 4
      %s347 = scalar_lea.vmem %s2, %s346
      %p348 = pneg %p107
      %p349 = pneg %p104
      %p350 = pneg %p128
      %p351 = pneg %p125
      %p352 = pneg %p149
      %p353 = pneg %p146
      %p354 = pneg %p170
      %p355 = pneg %p167
      %p356 = pneg %p191
      %p357 = pneg %p188
      %p358 = pneg %p212
      %p359 = pneg %p209
      %p360 = pneg %p233
      %p361 = pneg %p230
      %p362 = pneg %p261
      %p363 = pneg %p258
      %p364 = scmp.lt.s32.totalorder %s24, 1
      %s365 = scalar_select %p364, %s24, 1
      %p366 = scmp.lt.s32.totalorder %s25, 0
      %s367 = scalar_select %p366, %s25, 0
      %s368 = sadd.s32 %s367, %s365
      %s369 = smul.addr %s368, 4
      %s370 = scalar_lea.vmem %s9, %s369
      %p371 = scmp.lt.s32.totalorder %s24, 1
      %s372 = scalar_select %p371, %s24, 1
      %p373 = scmp.lt.s32.totalorder %s25, 0
      %s374 = scalar_select %p373, %s25, 0
      %s375 = sadd.s32 %s374, %s372
      %s376 = smul.addr %s375, 4
      %s377 = scalar_lea.vmem %s0, %s376
      %p378 = scmp.lt.s32.totalorder %s24, 1
      %s379 = scalar_select %p378, %s24, 1
      %s380 = smul.addr %s379, 4
      %s381 = scalar_lea.vmem %s1, %s380
      %p382 = scmp.lt.s32.totalorder %s24, 1
      %s383 = scalar_select %p382, %s24, 1
      %s384 = smul.addr %s383, 4
      %s385 = scalar_lea.vmem %s2, %s384
      %p386 = scmp.lt.s32.totalorder %s24, 1
      %s387 = scalar_select %p386, %s24, 1
      %p388 = scmp.lt.s32.totalorder %s25, 0
      %s389 = scalar_select %p388, %s25, 0
      %s390 = sadd.s32 %s389, %s387
      %s391 = smul.addr %s390, 4
      %s392 = scalar_lea.vmem %s9, %s391
      %v394 = vld [vmem:[%s377] sm:$0xf]
      %v395 = vld [vmem:[%s381] sm:$0xf]
      %v396 = vld [vmem:[%s385] sm:$0xf]
      %v397 = vld [vmem:[%s3] sm:$0xf]
      %v398 = vld [vmem:[%s3 + $0x4] sm:$0xf]
      %v399 = vld [vmem:[%s3 + $0x8] sm:$0xf]
      %v400 = vld [vmem:[%s3 + $0xc] sm:$0xf]
      %v401 = vld [vmem:[%s4] sm:$0x1]
      %v403 = vperm.slane %v401, 0
      %v409 = vunpack.c.l.b16 %v397
      %v410 = vunpack.c.l.b16 %v398
      %v411 = vunpack.c.l.b16 %v399
      %v412 = vunpack.c.l.b16 %v400
      %v413 = vpack.c.b16 %v410, %v409
      %v414 = vpack.c.b16 %v412, %v411
      %vm417 = vcmask 261120
      %v419 = vsel %vm417, %v394, 0
      %421 = vmatpush.bf16.msra.mxu0 0
      %422 = vmatpush.bf16.msra.mxu0 0
      %423 = vmatpush.bf16.msra.mxu0 0
      %424 = vmatpush.bf16.msra.mxu0 0
      %425 = vmatpush.bf16.msra.mxu0 0
      %426 = vmatpush.bf16.msra.mxu0 0
      %427 = vmatpush.bf16.msra.mxu0 %v414
      %428 = vmatpush.bf16.msra.mxu0 %v413
      %429 = vmatmul.bf16.gmra.mxu0 %v419
      %v430 = vpop.f32.mrf.mxu0
      %v431 = vadd.f32 %v403, %v430
      %v432 = vpop.f32.mrf.mxu0
      %433 = vdwg.mxu0
      %v434 = vpack.c.bf16 %v431, %v431
      %s435 = smul.u32 %s25, 8
      %v436 = vlaneseq
      %v437 = vshrl.u32 %v436, 7
      %v438 = vstv %s435
      %v439 = vadd.s32 %v437, %v438
      %v440 = vlaneseq
      %v441 = vand.u32 %v440, 127
      %vm442 = vcmp.le.s32.totalorder %v441, %v439
      %vm443 = vcmask 64512
      %v445 = vsel %vm443, %v434, 0
      %v448 = vsel %vm443, %v395, 0
      %450 = vmatpush.bf16.xpose.msra.mxu0 0
      %451 = vmatpush.bf16.xpose.msra.mxu0 0
      %452 = vmatpush.bf16.xpose.msra.mxu0 0
      %453 = vmatpush.bf16.xpose.msra.mxu0 0
      %454 = vmatpush.bf16.xpose.msra.mxu0 0
      %455 = vmatpush.bf16.xpose.msra.mxu0 0
      %456 = vmatpush.bf16.xpose.msra.mxu0 0
      %457 = vmatpush.bf16.xpose.msra.mxu0 %v448
      %458 = vmatmul.bf16.gmra.mxu0 %v445
      %v459 = vpop.f32.mrf.mxu0
      %v460 = vadd.f32 0.0, %v459
      %v461 = vpop.f32.mrf.mxu0
      %462 = vdwg.mxu0
      %v463 = vmul.f32 %v460, 0.35355338
      %v464 = vsel %vm442, %v463, -1e+30
      %v465 = vsel %vm443, %v464, -inf
      %466 = vmax.xlane.f32.xlu0 %v465
      %v467 = vpop.xlane.xlu0 %466
      %v468 = vsub.f32 %v464, %v467
      %v469 = vmul.f32 %v468, 1.442695
      %v470 = vpow.pop %v469
      %v471 = vsel %vm443, %v470, 0.0
      %472 = vadd.xlane.f32.xlu0 %v471
      %v473 = vpop.xlane.xlu0 %472
      %v474 = vrcp.pop %v473
      %v475 = vmul.f32 %v473, %v474
      %v476 = vsub.f32 1.0, %v475
      %v477 = vmul.f32 %v474, %v476
      %v478 = vadd.f32 %v474, %v477
      %vm479 = vweird.f32 %v473
      %vm480 = vweird.f32 %v474
      %vm481 = vmor %vm479, %vm480
      %v482 = vsel %vm481, %v474, %v478
      %v483 = vand.u32 2147483647, %v473
      %vm484 = vcmp.eq.f32.partialorder %v483, 8.507059e+37
      %v485 = vand.u32 %v473, 2147483648
      %v486 = vor.u32 1.1754944e-38, %v485
      %v487 = vsel %vm484, %v486, %v482
      %v488 = vmul.f32 %v470, %v487
      %v489 = vpack.c.bf16 %v488, %v488
      %v491 = vsel %vm443, %v489, 0
      %vm493 = vcmask 1043456
      %v495 = vsel %vm493, %v396, 0
      %497 = vmatpush.bf16.msra.mxu0 0
      %498 = vmatpush.bf16.msra.mxu0 0
      %499 = vmatpush.bf16.msra.mxu0 0
      %500 = vmatpush.bf16.msra.mxu0 0
      %501 = vmatpush.bf16.msra.mxu0 0
      %502 = vmatpush.bf16.msra.mxu0 0
      %503 = vmatpush.bf16.msra.mxu0 0
      %504 = vmatpush.bf16.msra.mxu0 %v495
      %505 = vmatmul.bf16.gmra.mxu0 %v491
      %v506 = vpop.f32.mrf.mxu0
      %v507 = vadd.f32 0.0, %v506
      %v508 = vpop.f32.mrf.mxu0
      %509 = vdwg.mxu0
      %v511 = vunpack.c.l.b16 %v434
      %v512 = vpack.c.b16 %v511, %v511
      %513 = vrot.lane.b32.xlu0 %v512, 120
      %v514 = vpop.permute.xlu0 %513
      %v516 = vunpack.c.l.b16 %v395
      %v517 = vpack.c.b16 %v516, %v516
      %518 = vrot.lane.b32.xlu0 %v517, 120
      %v519 = vpop.permute.xlu0 %518
      %v521 = vsel %vm443, %v514, 0
      %v524 = vsel %vm443, %v519, 0
      %526 = vmatpush.bf16.xpose.msra.mxu0 0
      %527 = vmatpush.bf16.xpose.msra.mxu0 0
      %528 = vmatpush.bf16.xpose.msra.mxu0 0
      %529 = vmatpush.bf16.xpose.msra.mxu0 0
      %530 = vmatpush.bf16.xpose.msra.mxu0 0
      %531 = vmatpush.bf16.xpose.msra.mxu0 0
      %532 = vmatpush.bf16.xpose.msra.mxu0 0
      %533 = vmatpush.bf16.xpose.msra.mxu0 %v524
      %534 = vmatmul.bf16.gmra.mxu0 %v521
      %v535 = vpop.f32.mrf.mxu0
      %v536 = vadd.f32 0.0, %v535
      %v537 = vpop.f32.mrf.mxu0
      %538 = vdwg.mxu0
      %v539 = vmul.f32 %v536, 0.35355338
      %v540 = vsel %vm442, %v539, -1e+30
      %v541 = vsel %vm443, %v540, -inf
      %542 = vmax.xlane.f32.xlu0 %v541
      %v543 = vpop.xlane.xlu0 %542
      %v544 = vsub.f32 %v540, %v543
      %v545 = vmul.f32 %v544, 1.442695
      %v546 = vpow.pop %v545
      %v547 = vsel %vm443, %v546, 0.0
      %548 = vadd.xlane.f32.xlu0 %v547
      %v549 = vpop.xlane.xlu0 %548
      %v550 = vrcp.pop %v549
      %v551 = vmul.f32 %v549, %v550
      %v552 = vsub.f32 1.0, %v551
      %v553 = vmul.f32 %v550, %v552
      %v554 = vadd.f32 %v550, %v553
      %vm555 = vweird.f32 %v549
      %vm556 = vweird.f32 %v550
      %vm557 = vmor %vm555, %vm556
      %v558 = vsel %vm557, %v550, %v554
      %v559 = vand.u32 2147483647, %v549
      %vm560 = vcmp.eq.f32.partialorder %v559, 8.507059e+37
      %v561 = vand.u32 %v549, 2147483648
      %v562 = vor.u32 1.1754944e-38, %v561
      %v563 = vsel %vm560, %v562, %v558
      %v564 = vmul.f32 %v546, %v563
      %v565 = vpack.c.bf16 %v564, %v564
      %v567 = vunpack.c.l.b16 %v396
      %v568 = vpack.c.b16 %v567, %v567
      %569 = vrot.lane.b32.xlu0 %v568, 120
      %v570 = vpop.permute.xlu0 %569
      %v572 = vsel %vm443, %v565, 0
      %v575 = vsel %vm493, %v570, 0
      %577 = vmatpush.bf16.msra.mxu0 0
      %578 = vmatpush.bf16.msra.mxu0 0
      %579 = vmatpush.bf16.msra.mxu0 0
      %580 = vmatpush.bf16.msra.mxu0 0
      %581 = vmatpush.bf16.msra.mxu0 0
      %582 = vmatpush.bf16.msra.mxu0 0
      %583 = vmatpush.bf16.msra.mxu0 0
      %584 = vmatpush.bf16.msra.mxu0 %v575
      %585 = vmatmul.bf16.gmra.mxu0 %v572
      %v586 = vpop.f32.mrf.mxu0
      %v587 = vadd.f32 0.0, %v586
      %v588 = vpop.f32.mrf.mxu0
      %589 = vdwg.mxu0
      %590 = vrot.lane.b32.xlu0 %v512, 112
      %v591 = vpop.permute.xlu0 %590
      %592 = vrot.lane.b32.xlu0 %v517, 112
      %v593 = vpop.permute.xlu0 %592
      %v595 = vsel %vm443, %v591, 0
      %v598 = vsel %vm443, %v593, 0
      %600 = vmatpush.bf16.xpose.msra.mxu0 0
      %601 = vmatpush.bf16.xpose.msra.mxu0 0
      %602 = vmatpush.bf16.xpose.msra.mxu0 0
      %603 = vmatpush.bf16.xpose.msra.mxu0 0
      %604 = vmatpush.bf16.xpose.msra.mxu0 0
      %605 = vmatpush.bf16.xpose.msra.mxu0 0
      %606 = vmatpush.bf16.xpose.msra.mxu0 0
      %607 = vmatpush.bf16.xpose.msra.mxu0 %v598
      %608 = vmatmul.bf16.gmra.mxu0 %v595
      %v609 = vpop.f32.mrf.mxu0
      %v610 = vadd.f32 0.0, %v609
      %v611 = vpop.f32.mrf.mxu0
      %612 = vdwg.mxu0
      %v613 = vmul.f32 %v610, 0.35355338
      %v614 = vsel %vm442, %v613, -1e+30
      %v615 = vsel %vm443, %v614, -inf
      %616 = vmax.xlane.f32.xlu0 %v615
      %v617 = vpop.xlane.xlu0 %616
      %v618 = vsub.f32 %v614, %v617
      %v619 = vmul.f32 %v618, 1.442695
      %v620 = vpow.pop %v619
      %v621 = vsel %vm443, %v620, 0.0
      %622 = vadd.xlane.f32.xlu0 %v621
      %v623 = vpop.xlane.xlu0 %622
      %v624 = vrcp.pop %v623
      %v625 = vmul.f32 %v623, %v624
      %v626 = vsub.f32 1.0, %v625
      %v627 = vmul.f32 %v624, %v626
      %v628 = vadd.f32 %v624, %v627
      %vm629 = vweird.f32 %v623
      %vm630 = vweird.f32 %v624
      %vm631 = vmor %vm629, %vm630
      %v632 = vsel %vm631, %v624, %v628
      %v633 = vand.u32 2147483647, %v623
      %vm634 = vcmp.eq.f32.partialorder %v633, 8.507059e+37
      %v635 = vand.u32 %v623, 2147483648
      %v636 = vor.u32 1.1754944e-38, %v635
      %v637 = vsel %vm634, %v636, %v632
      %v638 = vmul.f32 %v620, %v637
      %v639 = vpack.c.bf16 %v638, %v638
      %640 = vrot.lane.b32.xlu0 %v568, 112
      %v641 = vpop.permute.xlu0 %640
      %v643 = vsel %vm443, %v639, 0
      %v646 = vsel %vm493, %v641, 0
      %648 = vmatpush.bf16.msra.mxu0 0
      %649 = vmatpush.bf16.msra.mxu0 0
      %650 = vmatpush.bf16.msra.mxu0 0
      %651 = vmatpush.bf16.msra.mxu0 0
      %652 = vmatpush.bf16.msra.mxu0 0
      %653 = vmatpush.bf16.msra.mxu0 0
      %654 = vmatpush.bf16.msra.mxu0 0
      %655 = vmatpush.bf16.msra.mxu0 %v646
      %656 = vmatmul.bf16.gmra.mxu0 %v643
      %v657 = vpop.f32.mrf.mxu0
      %v658 = vadd.f32 0.0, %v657
      %v659 = vpop.f32.mrf.mxu0
      %660 = vdwg.mxu0
      %661 = vrot.lane.b32.xlu0 %v512, 104
      %v662 = vpop.permute.xlu0 %661
      %663 = vrot.lane.b32.xlu0 %v517, 104
      %v664 = vpop.permute.xlu0 %663
      %v666 = vsel %vm443, %v662, 0
      %v669 = vsel %vm443, %v664, 0
      %671 = vmatpush.bf16.xpose.msra.mxu0 0
      %672 = vmatpush.bf16.xpose.msra.mxu0 0
      %673 = vmatpush.bf16.xpose.msra.mxu0 0
      %674 = vmatpush.bf16.xpose.msra.mxu0 0
      %675 = vmatpush.bf16.xpose.msra.mxu0 0
      %676 = vmatpush.bf16.xpose.msra.mxu0 0
      %677 = vmatpush.bf16.xpose.msra.mxu0 0
      %678 = vmatpush.bf16.xpose.msra.mxu0 %v669
      %679 = vmatmul.bf16.gmra.mxu0 %v666
      %v680 = vpop.f32.mrf.mxu0
      %v681 = vadd.f32 0.0, %v680
      %v682 = vpop.f32.mrf.mxu0
      %683 = vdwg.mxu0
      %v684 = vmul.f32 %v681, 0.35355338
      %v685 = vsel %vm442, %v684, -1e+30
      %v686 = vsel %vm443, %v685, -inf
      %687 = vmax.xlane.f32.xlu0 %v686
      %v688 = vpop.xlane.xlu0 %687
      %v689 = vsub.f32 %v685, %v688
      %v690 = vmul.f32 %v689, 1.442695
      %v691 = vpow.pop %v690
      %v692 = vsel %vm443, %v691, 0.0
      %693 = vadd.xlane.f32.xlu0 %v692
      %v694 = vpop.xlane.xlu0 %693
      %v695 = vrcp.pop %v694
      %v696 = vmul.f32 %v694, %v695
      %v697 = vsub.f32 1.0, %v696
      %v698 = vmul.f32 %v695, %v697
      %v699 = vadd.f32 %v695, %v698
      %vm700 = vweird.f32 %v694
      %vm701 = vweird.f32 %v695
      %vm702 = vmor %vm700, %vm701
      %v703 = vsel %vm702, %v695, %v699
      %v704 = vand.u32 2147483647, %v694
      %vm705 = vcmp.eq.f32.partialorder %v704, 8.507059e+37
      %v706 = vand.u32 %v694, 2147483648
      %v707 = vor.u32 1.1754944e-38, %v706
      %v708 = vsel %vm705, %v707, %v703
      %v709 = vmul.f32 %v691, %v708
      %v710 = vpack.c.bf16 %v709, %v709
      %711 = vrot.lane.b32.xlu0 %v568, 104
      %v712 = vpop.permute.xlu0 %711
      %v714 = vsel %vm443, %v710, 0
      %v717 = vsel %vm493, %v712, 0
      %719 = vmatpush.bf16.msra.mxu0 0
      %720 = vmatpush.bf16.msra.mxu0 0
      %721 = vmatpush.bf16.msra.mxu0 0
      %722 = vmatpush.bf16.msra.mxu0 0
      %723 = vmatpush.bf16.msra.mxu0 0
      %724 = vmatpush.bf16.msra.mxu0 0
      %725 = vmatpush.bf16.msra.mxu0 0
      %726 = vmatpush.bf16.msra.mxu0 %v717
      %727 = vmatmul.bf16.gmra.mxu0 %v714
      %v728 = vpop.f32.mrf.mxu0
      %v729 = vadd.f32 0.0, %v728
      %v730 = vpop.f32.mrf.mxu0
      %731 = vdwg.mxu0
      %733 = vrot.lane.b32.xlu0 %v587, 8
      %v734 = vpop.permute.xlu0 %733
      %737 = vrot.lane.b32.xlu0 %v658, 16
      %v738 = vpop.permute.xlu0 %737
      %741 = vrot.lane.b32.xlu0 %v729, 24
      %v742 = vpop.permute.xlu0 %741
      %v744 = vsel %vm443, %v507, %v734
      %vm745 = vcmask 130048
      %v746 = vsel %vm745, %v744, %v738
      %vm747 = vcmask 195584
      %v748 = vsel %vm747, %v746, %v742
      %v749 = vpack.c.bf16 %v748, %v748
      %v750 = vld [vmem:[%s5] sm:$0xf]
      %v751 = vld [vmem:[%s5 + $0x4] sm:$0xf]
      %v752 = vld [vmem:[%s5 + $0x8] sm:$0xf]
      %v753 = vld [vmem:[%s5 + $0xc] sm:$0xf]
      %v754 = vld [vmem:[%s6] sm:$0x1]
      %v756 = vperm.slane %v754, 0
      %v762 = vunpack.c.l.b16 %v750
      %v763 = vunpack.c.l.b16 %v751
      %v764 = vunpack.c.l.b16 %v752
      %v765 = vunpack.c.l.b16 %v753
      %v766 = vpack.c.b16 %v763, %v762
      %v767 = vpack.c.b16 %v765, %v764
      %v771 = vsel %vm417, %v749, 0
      %773 = vmatpush.bf16.msra.mxu0 0
      %774 = vmatpush.bf16.msra.mxu0 0
      %775 = vmatpush.bf16.msra.mxu0 0
      %776 = vmatpush.bf16.msra.mxu0 0
      %777 = vmatpush.bf16.msra.mxu0 0
      %778 = vmatpush.bf16.msra.mxu0 0
      %779 = vmatpush.bf16.msra.mxu0 %v767
      %780 = vmatpush.bf16.msra.mxu0 %v766
      %781 = vmatmul.bf16.gmra.mxu0 %v771
      %v782 = vpop.f32.mrf.mxu0
      %v783 = vadd.f32 %v756, %v782
      %v784 = vpop.f32.mrf.mxu0
      %785 = vdwg.mxu0
      %v786 = vunpack.c.l.bf16 %v394
      %v787 = vadd.f32 %v786, %v783
      %v788 = vsel %vm417, %v787, 0.0
      %789 = vadd.xlane.f32.xlu0 %v788
      %v790 = vpop.xlane.xlu0 %789
      %v791 = vrcp.pop 32.0
      %v792 = vmul.f32 32.0, %v791
      %v793 = vsub.f32 1.0, %v792
      %v794 = vmul.f32 %v791, %v793
      %v795 = vadd.f32 %v791, %v794
      %vm796 = vweird.f32 %v791
      %v797 = vsel %vm796, %v791, %v795
      %v798 = vmul.f32 %v790, %v797
      %v799 = vsub.f32 %v787, %v798
      %v800 = vmul.f32 %v799, %v799
      %v801 = vsel %vm417, %v800, 0.0
      %802 = vadd.xlane.f32.xlu0 %v801
      %v803 = vpop.xlane.xlu0 %802
      %v804 = vmul.f32 %v803, %v797
      %v805 = vadd.f32 %v804, 1e-05
      %v806 = vrsqrt.pop %v805
      %v807 = vmul.f32 %v806, %v805
      %v808 = vmul.f32 %v807, %v806
      %v809 = vmul.f32 0.5, %v808
      %v810 = vsub.f32 1.5, %v809
      %v811 = vmul.f32 %v806, %v810
      %vm812 = vweird.f32 %v805
      %vm813 = vweird.f32 %v806
      %vm814 = vmor %vm812, %vm813
      %v815 = vsel %vm814, %v806, %v811
      %v816 = vmul.f32 %v799, %v815
      %v817 = vld [vmem:[%s7] sm:$0x1]
      %v819 = vperm.slane %v817, 0
      %v821 = vmul.f32 %v816, %v819
      %v822 = vld [vmem:[%s8] sm:$0x1]
      %v824 = vperm.slane %v822, 0
      %v826 = vadd.f32 %v821, %v824
      %v827 = vpack.c.bf16 %v826, %v826
      %vm828 = vcmask 257024
      %829 = vst.msk [vmem:[%s392] sm:$0xf] %vm828, %v827
      %p830 = scmp.lt.s32.totalorder %s24, 1
      %s831 = scalar_select %p830, %s24, 1
      %p832 = scmp.lt.s32.totalorder %s25, 0
      %s833 = scalar_select %p832, %s25, 0
      %s834 = sadd.s32 %s833, %s831
      %s835 = smul.addr %s834, 4
      %s836 = scalar_lea.vmem %s9, %s835
      // Predicated region
      $region57: #{transformer_decoder_forward.12} parent=55 // pred_check
        %p837 = pneg %p258
      $region58: #{transformer_decoder_forward.12} parent=55 // pred_check_branch
        %839 = sbr.rel (%p837) target = $region60
      $region59: #{transformer_decoder_forward.12} parent=55 // pred_region
        _
      $region60: #{transformer_decoder_forward.12} parent=55 // pred_fallthru
        _
    $region56: #{transformer_decoder_forward.12} parent=5 // pred_fallthru
      _
    %p840 = scmp.le.s32.totalorder 2, %s15
    // Predicated region
    $region61: #{transformer_decoder_forward.12} parent=5 // pred_check
      %p841 = pneg %p840
    $region62: #{transformer_decoder_forward.12} parent=5 // pred_check_branch
      %843 = sbr.rel (%p841) target = $region64
    $region63: #{transformer_decoder_forward.12} parent=5 // pred_region
      %s844 = ssub.s32 %s15, 2
      // Predicated region
      $region65: #{transformer_decoder_forward.12} parent=63 // pred_check
        %p845 = pneg %p264
      $region66: #{transformer_decoder_forward.12} parent=63 // pred_check_branch
        %847 = sbr.rel (%p845) target = $region68
      $region67: #{transformer_decoder_forward.12} parent=63 // pred_region
        %p848 = scmp.lt.s32.totalorder %s26, 1
        %s849 = scalar_select %p848, %s26, 1
        %p850 = scmp.lt.s32.totalorder %s27, 0
        %s851 = scalar_select %p850, %s27, 0
        %s852 = sadd.s32 %s851, %s849
        %s853 = smul.addr %s852, 4
        %s854 = scalar_lea.vmem %s9, %s853
      $region68: #{transformer_decoder_forward.12} parent=63 // pred_fallthru
        _
    $region64: #{transformer_decoder_forward.12} parent=5 // pred_fallthru
      _
  $region6: #{transformer_decoder_forward.12} parent=0 // loop_footer
    %s19 = sadd.s32 1, %s15
  $region7: #{transformer_decoder_forward.12} parent=0 // loop_footer_branch
    %14 = sbr.rel target = $region3
  $region8: #{transformer_decoder_forward.12} parent=0 // loop_exit
    _

// kernel: transformer_decoder_forward.21
$region0: #{transformer_decoder_forward.21}
  #allocation0 [shape = 'u32[]', space=smem, size = 0x4, offset = 0x4, fixed_abs, tag = 'smem constant byte address 0x4 - core index']
  #allocation1 [shape = 'u32[72,128]{1,0:T(1,128)}', space=vmem, size = 0x9000, scoped, tag = 'internal scratch']
  #allocation2 [shape = 'bf16[16,32]{1,0:T(8,128)(2,1)}', space=vmem, size = 0x1000, scoped, tag = 'scratch operand']
  %s0 = inlined_call_operand.vmem [shape: bf16[16,32], index: 0, kind: input, shape index: {}]
  %s1 = inlined_call_operand.vmem [shape: f32[1,32], index: 1, kind: input, shape index: {}]
  %s2 = inlined_call_operand.vmem [shape: f32[1,32], index: 2, kind: input, shape index: {}]
  %s3 = inlined_call_operand.vmem [shape: bf16[32,40], index: 3, kind: input, shape index: {}]
  %s4 = inlined_call_operand.vmem [shape: f32[1,40], index: 4, kind: input, shape index: {}]
  %s5 = inlined_call_operand.hbm [shape: f32[16,40], index: 5, kind: output, shape index: {}]
  %s6 = sld [smem:[#allocation0]]
  $region34: #{transformer_decoder_forward.21} parent=0
    _
  %s8 = ssub.s32 1, %s6
  %s9 = scalar_select 0, %s8, %s6
  $region1: #{transformer_decoder_forward.21} parent=0
    #allocation3 [shape = 'u8[8192]{0}', space=vmem, size = 0x2000, scoped, tag = 'output window, operand 0, single buffered']
    #allocation4 [shape = 's32[1]{0}', space=sflag, size = 0x4, scoped, tag = 'scoped memory for transformer_decoder_forward.21']
    %10 = vsyncpa [#allocation4], 0
    // Predicated region
    $region2: #{transformer_decoder_forward.21} parent=1 // pred_check
      _
    $region3: #{transformer_decoder_forward.21} parent=1 // pred_check_branch
      %12 = sbr.rel (0) target = $region5
    $region4: #{transformer_decoder_forward.21} parent=1 // pred_region
      _
    $region5: #{transformer_decoder_forward.21} parent=1 // pred_fallthru
      _
    // Predicated region
    $region6: #{transformer_decoder_forward.21} parent=1 // pred_check
      _
    $region7: #{transformer_decoder_forward.21} parent=1 // pred_check_branch
      %14 = sbr.rel (0) target = $region9
    $region8: #{transformer_decoder_forward.21} parent=1 // pred_region
      _
    $region9: #{transformer_decoder_forward.21} parent=1 // pred_fallthru
      _
    // Predicated region
    $region10: #{transformer_decoder_forward.21} parent=1 // pred_check
      _
    $region11: #{transformer_decoder_forward.21} parent=1 // pred_check_branch
      %16 = sbr.rel (0) target = $region13
    $region12: #{transformer_decoder_forward.21} parent=1 // pred_region
      _
    $region13: #{transformer_decoder_forward.21} parent=1 // pred_fallthru
      _
    // Predicated region
    $region14: #{transformer_decoder_forward.21} parent=1 // pred_check
      _
    $region15: #{transformer_decoder_forward.21} parent=1 // pred_check_branch
      %18 = sbr.rel (0) target = $region17
    $region16: #{transformer_decoder_forward.21} parent=1 // pred_region
      _
    $region17: #{transformer_decoder_forward.21} parent=1 // pred_fallthru
      _
    // Predicated region
    $region18: #{transformer_decoder_forward.21} parent=1 // pred_check
      _
    $region19: #{transformer_decoder_forward.21} parent=1 // pred_check_branch
      %20 = sbr.rel (0) target = $region21
    $region20: #{transformer_decoder_forward.21} parent=1 // pred_region
      _
    $region21: #{transformer_decoder_forward.21} parent=1 // pred_fallthru
      _
    %p22 = scmp.eq.s32.totalorder 0, 0
    // Predicated region
    $region22: #{transformer_decoder_forward.21} parent=1 // pred_check
      %p23 = pneg %p22
    $region23: #{transformer_decoder_forward.21} parent=1 // pred_check_branch
      %25 = sbr.rel (%p23) target = $region25
    $region24: #{transformer_decoder_forward.21} parent=1 // pred_region
      %v26 = vld [vmem:[%s0] sm:$0xf]
      %v27 = vld [vmem:[%s0 + $0x4] sm:$0xf]
      %v28 = vunpack.c.l.bf16 %v26
      %v29 = vunpack.c.l.bf16 %v27
      %vm30 = vcmask 261120
      %v31 = vsel %vm30, %v28, 0.0
      %32 = vadd.xlane.f32.xlu0 %v31
      %v33 = vpop.xlane.xlu0 %32
      %v34 = vsel %vm30, %v29, 0.0
      %35 = vadd.xlane.f32.xlu0 %v34
      %v36 = vpop.xlane.xlu0 %35
      %v37 = vrcp.pop 32.0
      %v38 = vmul.f32 32.0, %v37
      %v39 = vsub.f32 1.0, %v38
      %v40 = vmul.f32 %v37, %v39
      %v41 = vadd.f32 %v37, %v40
      %vm42 = vweird.f32 %v37
      %v43 = vsel %vm42, %v37, %v41
      %v44 = vmul.f32 %v33, %v43
      %v45 = vmul.f32 %v36, %v43
      %v46 = vsub.f32 %v28, %v44
      %v47 = vsub.f32 %v29, %v45
      %v48 = vmul.f32 %v46, %v46
      %v49 = vmul.f32 %v47, %v47
      %v50 = vsel %vm30, %v48, 0.0
      %51 = vadd.xlane.f32.xlu0 %v50
      %v52 = vpop.xlane.xlu0 %51
      %v53 = vsel %vm30, %v49, 0.0
      %54 = vadd.xlane.f32.xlu0 %v53
      %v55 = vpop.xlane.xlu0 %54
      %v56 = vmul.f32 %v52, %v43
      %v57 = vmul.f32 %v55, %v43
      %v58 = vadd.f32 %v56, 1e-05
      %v59 = vadd.f32 %v57, 1e-05
      %v60 = vrsqrt.pop %v58
      %v61 = vmul.f32 %v60, %v58
      %v62 = vmul.f32 %v61, %v60
      %v63 = vmul.f32 0.5, %v62
      %v64 = vsub.f32 1.5, %v63
      %v65 = vmul.f32 %v60, %v64
      %vm66 = vweird.f32 %v58
      %vm67 = vweird.f32 %v60
      %vm68 = vmor %vm66, %vm67
      %v69 = vsel %vm68, %v60, %v65
      %v70 = vrsqrt.pop %v59
      %v71 = vmul.f32 %v70, %v59
      %v72 = vmul.f32 %v71, %v70
      %v73 = vmul.f32 0.5, %v72
      %v74 = vsub.f32 1.5, %v73
      %v75 = vmul.f32 %v70, %v74
      %vm76 = vweird.f32 %v59
      %vm77 = vweird.f32 %v70
      %vm78 = vmor %vm76, %vm77
      %v79 = vsel %vm78, %v70, %v75
      %v80 = vmul.f32 %v46, %v69
      %v81 = vmul.f32 %v47, %v79
      %v82 = vld [vmem:[%s1] sm:$0x1]
      %v84 = vperm.slane %v82, 0
      %v86 = vmul.f32 %v80, %v84
      %v87 = vmul.f32 %v81, %v84
      %v88 = vld [vmem:[%s2] sm:$0x1]
      %v90 = vperm.slane %v88, 0
      %v92 = vadd.f32 %v86, %v90
      %v93 = vadd.f32 %v87, %v90
      %v94 = vpack.c.bf16 %v92, %v92
      %v95 = vpack.c.bf16 %v93, %v93
      %vm96 = vcmask 257024
      %97 = vst.msk [vmem:[#allocation2] sm:$0xf] %vm96, %v94
      %98 = vst.msk [vmem:[#allocation2 + $0x4] sm:$0xf] %vm96, %v95
    $region25: #{transformer_decoder_forward.21} parent=1 // pred_fallthru
      _
    %v99 = vld [vmem:[#allocation2] sm:$0xf]
    %v100 = vld [vmem:[#allocation2 + $0x4] sm:$0xf]
    %v101 = vld [vmem:[%s3] sm:$0xf]
    %v102 = vld [vmem:[%s3 + $0x4] sm:$0xf]
    %v103 = vld [vmem:[%s3 + $0x8] sm:$0xf]
    %v104 = vld [vmem:[%s3 + $0xc] sm:$0xf]
    %v105 = vld [vmem:[%s4] sm:$0x1]
    %v107 = vperm.slane %v105, 0
    %v111 = vunpack.c.l.b16 %v99
    %v112 = vunpack.c.l.b16 %v100
    %v113 = vpack.c.b16 %v112, %v111
    %v118 = vunpack.c.l.b16 %v101
    %v119 = vunpack.c.l.b16 %v102
    %v120 = vunpack.c.l.b16 %v103
    %v121 = vunpack.c.l.b16 %v104
    %v122 = vpack.c.b16 %v119, %v118
    %v123 = vpack.c.b16 %v121, %v120
    %vm126 = vcmask 261120
    %v128 = vsel %vm126, %v113, 0
    %130 = vmatpush.bf16.msra.mxu0 0
    %131 = vmatpush.bf16.msra.mxu0 0
    %132 = vmatpush.bf16.msra.mxu0 0
    %133 = vmatpush.bf16.msra.mxu0 0
    %134 = vmatpush.bf16.msra.mxu0 0
    %135 = vmatpush.bf16.msra.mxu0 0
    %136 = vmatpush.bf16.msra.mxu0 %v123
    %137 = vmatpush.bf16.msra.mxu0 %v122
    %138 = vmatmul.bf16.gmra.mxu0 %v128
    %v139 = vpop.f32.mrf.mxu0
    %v140 = vadd.f32 %v107, %v139
    %v141 = vpop.f32.mrf.mxu0
    %v142 = vadd.f32 %v107, %v141
    %143 = vdwg.mxu0
    %vm144 = vcmask 326656
    %145 = vst.msk [vmem:[#allocation3] sm:$0xff] %vm144, %v140
    %146 = vst.msk [vmem:[#allocation3 + $0x8] sm:$0xff] %vm144, %v142
    // Predicated region
    $region26: #{transformer_decoder_forward.21} parent=1 // pred_check
      _
    $region27: #{transformer_decoder_forward.21} parent=1 // pred_check_branch
      %148 = sbr.rel (0) target = $region29
    $region28: #{transformer_decoder_forward.21} parent=1 // pred_region
      %150 = vsyncadd [#allocation4], 0
      %s151 = sshll.u32 [#allocation3], 4
      %s152 = int_to_ptr.vmem [resolvable:$true] %s151
      %s153 = sshll.u32 %s5, 4
      %s154 = int_to_ptr.hbm [resolvable:$true] %s153
      %159 = dma.vmem_to_hbm [thread:$0]  %s152, 256, %s154, [#allocation4], 128, 128, 8
    $region29: #{transformer_decoder_forward.21} parent=1 // pred_fallthru
      _
    // Predicated region
    $region30: #{transformer_decoder_forward.21} parent=1 // pred_check
      _
    $region31: #{transformer_decoder_forward.21} parent=1 // pred_check_branch
      %161 = sbr.rel (0) target = $region33
    $region32: #{transformer_decoder_forward.21} parent=1 // pred_region
      %163 = dma.done [#allocation4], 256
    $region33: #{transformer_decoder_forward.21} parent=1 // pred_fallthru
      _
    %164 = vsyncpa [#allocation4], 1

</llo_original>
